<compile_context>
chip_gen: v7x
topology: tpu7x:2x2x1
jax: 0.10.0
libtpu: 0.0.40
codegen_flags: <defaults>
</compile_context>

<pallas_src>
import math

import jax
import jax.numpy as jnp
from jax.experimental import pallas as pl
from jax.experimental.pallas import tpu as pltpu

N_BATCH = 2
N_FEATURES = 4
HIDDEN_DIM = 16
INPUT_LEN = 8
TARGET_LEN = 8


def encoder_decoder_kernel(x_ref,
                           ewi_ref, ewh_ref, ebi_ref, ebh_ref,
                           dwi_ref, dwh_ref, dbi_ref, dbh_ref,
                           wq_ref, bq_ref, wk_ref, bk_ref,
                           wr_ref, br_ref,
                           out_ref,
                           hs_ref):
    H = HIDDEN_DIM
    F = N_FEATURES
    L = INPUT_LEN
    N = out_ref.shape[0]
    LN = L * N

    # x is time-major 2D: row s*N + n holds X[n, s, :].
    x2 = x_ref[...].astype(jnp.float32)                     # ((L+T)*N, F)

    ewi, ewh = ewi_ref[...], ewh_ref[...]
    ebi, ebh = ebi_ref[...], ebh_ref[...]
    dwi, dwh = dwi_ref[...], dwh_ref[...]
    dbi, dbh = dbi_ref[...], dbh_ref[...]
    wq, bq = wq_ref[...], bq_ref[...]
    wk, bk = wk_ref[...], bk_ref[...]
    wr, br = wr_ref[...], br_ref[...]

    # ---- one-time precomputation (hoisted out of the unrolled loops) -------
    # Encoder hidden-path biases (input-path bias is folded into gi_all below).
    ebh_rz = jnp.broadcast_to(ebh[:, :2 * H], (N, 2 * H))
    ebh_n = jnp.broadcast_to(ebh[:, 2 * H:], (N, H))
    # Decoder: combine r/z input+hidden biases; the hidden-path n-gate bias
    # must stay inside the r * (...) term (PyTorch GRU semantics).
    db_rz = jnp.broadcast_to(dbi[:, :2 * H] + dbh[:, :2 * H], (N, 2 * H))
    dbi_n = jnp.broadcast_to(dbi[:, 2 * H:], (N, H))
    dbh_n = jnp.broadcast_to(dbh[:, 2 * H:], (N, H))
    # 1/sqrt(H) attention scale folded into the query projection.
    scale = 1.0 / math.sqrt(H)
    wq_s = wq * scale                                        # (H, H)
    bq_s = bq * scale                                        # (1, H)
    # Regression head split: concat([context, query]) @ wr
    #   == context @ wr[:H] + query @ wr[H:].
    wr_ctx = wr[:H, :]                                       # (H, F)
    wr_q = wr[H:, :]                                         # (H, F)
    br_b = jnp.broadcast_to(br, (N, F))

    # ------------------------------ Encoder ---------------------------------
    # Batched input-to-hidden projection over all source timesteps at once.
    x_src = x2[:LN, :]                                                # (L*N, F)
    gi_all = jnp.dot(x_src, ewi, preferred_element_type=jnp.float32) + ebi

    h = jnp.zeros((N, H), jnp.float32)
    for t in range(L):
        gi = gi_all[t * N:(t + 1) * N, :]            # (N, 3H), input bias included
        gh = jnp.dot(h, ewh, preferred_element_type=jnp.float32)      # (N, 3H)
        rz = jax.nn.sigmoid(gi[:, :2 * H] + gh[:, :2 * H] + ebh_rz)
        r, z = rz[:, :H], rz[:, H:]
        n = jnp.tanh(gi[:, 2 * H:] + r * (gh[:, 2 * H:] + ebh_n))
        h = (1.0 - z) * n + z * h
        # Time-major scratch: step t occupies contiguous rows [t*N, (t+1)*N).
        hs_ref[t * N:(t + 1) * N, :] = h

    values_2d = hs_ref[...]                                           # (L*N, H)

    # Fused post-encoder projections: attention keys and values @ wr_ctx.
    w_post = jnp.concatenate([wk, wr_ctx], axis=1)                    # (H, H+F)
    post = jnp.dot(values_2d, w_post,
                   preferred_element_type=jnp.float32)                # (L*N, H+F)
    proj_keys_t = (post[:, :H] + bk).T                                # (H, L*N)
    vr = post[:, H:]                                                  # (L*N, F)

    # Fold the query projection into the keys (associativity):
    #   (q @ wq_s + bq_s) @ keys^T == q @ (wq_s @ keys^T) + bq_s @ keys^T
    w_qk = jnp.dot(wq_s, proj_keys_t,
                   preferred_element_type=jnp.float32)                # (H, L*N)
    bqk = jnp.dot(bq_s, proj_keys_t,
                  preferred_element_type=jnp.float32)                 # (1, L*N)

    # Additive mask so per-batch attention becomes plain 2D matmuls:
    # row n may only attend to columns m with (m % N) == n.  The folded query
    # bias is merged into the same additive term.
    col_batch = jax.lax.broadcasted_iota(jnp.int32, (N, LN), 1) % N
    row_batch = jax.lax.broadcasted_iota(jnp.int32, (N, LN), 0)
    score_bias = (jnp.where(col_batch == row_batch, 0.0, -1e30)
                  + jnp.broadcast_to(bqk, (N, LN)))                   # (N, L*N)

    # Fuse the two post-hidden matmuls (attention scores, query @ wr_q).
    w_att = jnp.concatenate([w_qk, wr_q], axis=1)                     # (H, L*N+F)

    # ------------------------------ Decoder ---------------------------------
    dec_h = h                                        # last encoder hidden state
    dec_in = x2[(L - 1) * N:LN, :]                   # last source element (N, F)

    # TODO(synk): stochastic teacher forcing (torch.rand <= prob) is a
    # training-time branch; this kernel reproduces eval-mode semantics (prob=0).
    for i in range(TARGET_LEN):
        gi = jnp.dot(dec_in, dwi, preferred_element_type=jnp.float32)
        gh = jnp.dot(dec_h, dwh, preferred_element_type=jnp.float32)
        rz = jax.nn.sigmoid(gi[:, :2 * H] + gh[:, :2 * H] + db_rz)
        r, z = rz[:, :H], rz[:, H:]
        n = jnp.tanh(gi[:, 2 * H:] + dbi_n + r * (gh[:, 2 * H:] + dbh_n))
        dec_h = (1.0 - z) * n + z * dec_h            # query == new hidden state

        att = jnp.dot(dec_h, w_att,
                      preferred_element_type=jnp.float32)             # (N, LN+F)
        scores = att[:, :LN] + score_bias                             # (N, L*N)
        m = jnp.max(scores, axis=-1, keepdims=True)
        p = jnp.exp(scores - m)                      # masked cols underflow to 0
        s = jnp.sum(p, axis=-1, keepdims=True)
        # softmax @ values @ wr_ctx  ==  (p @ (values @ wr_ctx)) / sum(p)
        ctx_out = jnp.dot(p, vr,
                          preferred_element_type=jnp.float32) * (1.0 / s)
        out = ctx_out + att[:, LN:] + br_b                            # (N, F)
        out_ref[:, i * F:(i + 1) * F] = out.astype(out_ref.dtype)
        dec_in = out                                  # feed own prediction back


def encoder_decoder_forward(x, params):
    n, total_len, f = x.shape
    assert total_len == INPUT_LEN + TARGET_LEN and f == N_FEATURES
    # Present X time-major 2D (row = s*N + n) so the kernel never reshapes.
    x_tm = jnp.transpose(x, (1, 0, 2)).reshape(total_len * n, f)
    args = (x_tm,
            params["enc_wi"], params["enc_wh"], params["enc_bi"], params["enc_bh"],
            params["dec_wi"], params["dec_wh"], params["dec_bi"], params["dec_bh"],
            params["attn_wq"], params["attn_bq"], params["attn_wk"], params["attn_bk"],
            params["reg_w"], params["reg_b"])
    in_specs = [pl.BlockSpec(memory_space=pltpu.MemorySpace.VMEM) for _ in args]
    flat = pl.pallas_call(
        encoder_decoder_kernel,
        out_shape=jax.ShapeDtypeStruct((n, TARGET_LEN * N_FEATURES), jnp.float32),
        in_specs=in_specs,
        out_specs=pl.BlockSpec(memory_space=pltpu.MemorySpace.VMEM),
        scratch_shapes=[pltpu.VMEM((INPUT_LEN * n, HIDDEN_DIM), jnp.float32)],
    )(*args)
    return flat.reshape(n, TARGET_LEN, N_FEATURES)


def init_params(key):
    """Deterministic synthetic parameters; shapes follow nn.GRU / nn.Linear."""
    H, F = HIDDEN_DIM, N_FEATURES
    bnd_gru = 1.0 / math.sqrt(H)
    bnd_reg = 1.0 / math.sqrt(2 * H)
    keys = jax.random.split(key, 14)

    def u(kk, shape, bound):
        return jax.random.uniform(kk, shape, jnp.float32, -bound, bound)

    return {
        # encoder GRU (weights stored transposed so kernel does  x @ W)
        "enc_wi": u(keys[0], (F, 3 * H), bnd_gru),
        "enc_wh": u(keys[1], (H, 3 * H), bnd_gru),
        "enc_bi": u(keys[2], (1, 3 * H), bnd_gru),
        "enc_bh": u(keys[3], (1, 3 * H), bnd_gru),
        # decoder GRU
        "dec_wi": u(keys[4], (F, 3 * H), bnd_gru),
        "dec_wh": u(keys[5], (H, 3 * H), bnd_gru),
        "dec_bi": u(keys[6], (1, 3 * H), bnd_gru),
        "dec_bh": u(keys[7], (1, 3 * H), bnd_gru),
        # attention query / key projections: Linear(H, H)
        "attn_wq": u(keys[8], (H, H), bnd_gru),
        "attn_bq": u(keys[9], (1, H), bnd_gru),
        "attn_wk": u(keys[10], (H, H), bnd_gru),
        "attn_bk": u(keys[11], (1, H), bnd_gru),
        # regression head: Linear(2H, F)
        "reg_w": u(keys[12], (2 * H, F), bnd_reg),
        "reg_b": u(keys[13], (1, F), bnd_reg),
    }


if __name__ == "__main__":
    key = jax.random.PRNGKey(0)
    pkey, xkey = jax.random.split(key)
    params = init_params(pkey)
    # X holds source (first INPUT_LEN steps) and target (next TARGET_LEN steps)
    x = jax.random.normal(
        xkey, (N_BATCH, INPUT_LEN + TARGET_LEN, N_FEATURES), jnp.float32)

    out = encoder_decoder_forward(x, params)
    jax.block_until_ready(out)
    assert out.shape == (N_BATCH, TARGET_LEN, N_FEATURES)
    assert bool(jnp.all(jnp.isfinite(out)))
    print("KERNEL_OK")
</pallas_src>

<mosaic_0001>
module attributes {stable_mosaic.version = 11 : i64} {
  func.func @encoder_decoder_kernel(%arg0: memref<32x4xf32, #tpu.memory_space<vmem>>, %arg1: memref<4x48xf32, #tpu.memory_space<vmem>>, %arg2: memref<16x48xf32, #tpu.memory_space<vmem>>, %arg3: memref<1x48xf32, #tpu.memory_space<vmem>>, %arg4: memref<1x48xf32, #tpu.memory_space<vmem>>, %arg5: memref<4x48xf32, #tpu.memory_space<vmem>>, %arg6: memref<16x48xf32, #tpu.memory_space<vmem>>, %arg7: memref<1x48xf32, #tpu.memory_space<vmem>>, %arg8: memref<1x48xf32, #tpu.memory_space<vmem>>, %arg9: memref<16x16xf32, #tpu.memory_space<vmem>>, %arg10: memref<1x16xf32, #tpu.memory_space<vmem>>, %arg11: memref<16x16xf32, #tpu.memory_space<vmem>>, %arg12: memref<1x16xf32, #tpu.memory_space<vmem>>, %arg13: memref<32x4xf32, #tpu.memory_space<vmem>>, %arg14: memref<1x4xf32, #tpu.memory_space<vmem>>, %arg15: memref<2x32xf32, #tpu.memory_space<vmem>>, %arg16: memref<16x16xf32, #tpu.memory_space<vmem>>) attributes {dimension_semantics = [], scalar_prefetch = 0 : i64, scratch_operands = 1 : i64, tpu.core_type = #tpu.core_type<tc>} {
    %c0 = arith.constant 0 : index
    %c0_0 = arith.constant 0 : index
    %0 = vector.load %arg0[%c0, %c0_0] : memref<32x4xf32, #tpu.memory_space<vmem>>, vector<32x4xf32>
    %c0_1 = arith.constant 0 : index
    %c0_2 = arith.constant 0 : index
    %1 = vector.load %arg1[%c0_1, %c0_2] : memref<4x48xf32, #tpu.memory_space<vmem>>, vector<4x48xf32>
    %c0_3 = arith.constant 0 : index
    %c0_4 = arith.constant 0 : index
    %2 = vector.load %arg2[%c0_3, %c0_4] : memref<16x48xf32, #tpu.memory_space<vmem>>, vector<16x48xf32>
    %c0_5 = arith.constant 0 : index
    %c0_6 = arith.constant 0 : index
    %3 = vector.load %arg3[%c0_5, %c0_6] : memref<1x48xf32, #tpu.memory_space<vmem>>, vector<1x48xf32>
    %c0_7 = arith.constant 0 : index
    %c0_8 = arith.constant 0 : index
    %4 = vector.load %arg4[%c0_7, %c0_8] : memref<1x48xf32, #tpu.memory_space<vmem>>, vector<1x48xf32>
    %c0_9 = arith.constant 0 : index
    %c0_10 = arith.constant 0 : index
    %5 = vector.load %arg5[%c0_9, %c0_10] : memref<4x48xf32, #tpu.memory_space<vmem>>, vector<4x48xf32>
    %c0_11 = arith.constant 0 : index
    %c0_12 = arith.constant 0 : index
    %6 = vector.load %arg6[%c0_11, %c0_12] : memref<16x48xf32, #tpu.memory_space<vmem>>, vector<16x48xf32>
    %c0_13 = arith.constant 0 : index
    %c0_14 = arith.constant 0 : index
    %7 = vector.load %arg7[%c0_13, %c0_14] : memref<1x48xf32, #tpu.memory_space<vmem>>, vector<1x48xf32>
    %c0_15 = arith.constant 0 : index
    %c0_16 = arith.constant 0 : index
    %8 = vector.load %arg8[%c0_15, %c0_16] : memref<1x48xf32, #tpu.memory_space<vmem>>, vector<1x48xf32>
    %c0_17 = arith.constant 0 : index
    %c0_18 = arith.constant 0 : index
    %9 = vector.load %arg9[%c0_17, %c0_18] : memref<16x16xf32, #tpu.memory_space<vmem>>, vector<16x16xf32>
    %c0_19 = arith.constant 0 : index
    %c0_20 = arith.constant 0 : index
    %10 = vector.load %arg10[%c0_19, %c0_20] : memref<1x16xf32, #tpu.memory_space<vmem>>, vector<1x16xf32>
    %c0_21 = arith.constant 0 : index
    %c0_22 = arith.constant 0 : index
    %11 = vector.load %arg11[%c0_21, %c0_22] : memref<16x16xf32, #tpu.memory_space<vmem>>, vector<16x16xf32>
    %c0_23 = arith.constant 0 : index
    %c0_24 = arith.constant 0 : index
    %12 = vector.load %arg12[%c0_23, %c0_24] : memref<1x16xf32, #tpu.memory_space<vmem>>, vector<1x16xf32>
    %c0_25 = arith.constant 0 : index
    %c0_26 = arith.constant 0 : index
    %13 = vector.load %arg13[%c0_25, %c0_26] : memref<32x4xf32, #tpu.memory_space<vmem>>, vector<32x4xf32>
    %c0_27 = arith.constant 0 : index
    %c0_28 = arith.constant 0 : index
    %14 = vector.load %arg14[%c0_27, %c0_28] : memref<1x4xf32, #tpu.memory_space<vmem>>, vector<1x4xf32>
    %15 = vector.extract_strided_slice %4 {offsets = [0, 0], sizes = [1, 32], strides = [1, 1]} : vector<1x48xf32> to vector<1x32xf32>
    %16 = vector.shape_cast %15 : vector<1x32xf32> to vector<1x32xf32>
    %17 = vector.broadcast %16 : vector<1x32xf32> to vector<2x32xf32>
    %18 = vector.extract_strided_slice %4 {offsets = [0, 32], sizes = [1, 16], strides = [1, 1]} : vector<1x48xf32> to vector<1x16xf32>
    %19 = vector.shape_cast %18 : vector<1x16xf32> to vector<1x16xf32>
    %20 = vector.broadcast %19 : vector<1x16xf32> to vector<2x16xf32>
    %21 = vector.extract_strided_slice %7 {offsets = [0, 0], sizes = [1, 32], strides = [1, 1]} : vector<1x48xf32> to vector<1x32xf32>
    %22 = vector.extract_strided_slice %8 {offsets = [0, 0], sizes = [1, 32], strides = [1, 1]} : vector<1x48xf32> to vector<1x32xf32>
    %23 = arith.addf %21, %22 : vector<1x32xf32>
    %24 = vector.shape_cast %23 : vector<1x32xf32> to vector<1x32xf32>
    %25 = vector.broadcast %24 : vector<1x32xf32> to vector<2x32xf32>
    %26 = vector.extract_strided_slice %7 {offsets = [0, 32], sizes = [1, 16], strides = [1, 1]} : vector<1x48xf32> to vector<1x16xf32>
    %27 = vector.shape_cast %26 : vector<1x16xf32> to vector<1x16xf32>
    %28 = vector.broadcast %27 : vector<1x16xf32> to vector<2x16xf32>
    %29 = vector.extract_strided_slice %8 {offsets = [0, 32], sizes = [1, 16], strides = [1, 1]} : vector<1x48xf32> to vector<1x16xf32>
    %30 = vector.shape_cast %29 : vector<1x16xf32> to vector<1x16xf32>
    %31 = vector.broadcast %30 : vector<1x16xf32> to vector<2x16xf32>
    %cst = arith.constant 2.500000e-01 : f32
    %32 = vector.broadcast %cst : f32 to vector<16x16xf32>
    %33 = arith.mulf %9, %32 : vector<16x16xf32>
    %cst_29 = arith.constant 2.500000e-01 : f32
    %34 = vector.broadcast %cst_29 : f32 to vector<1x16xf32>
    %35 = arith.mulf %10, %34 : vector<1x16xf32>
    %36 = vector.extract_strided_slice %13 {offsets = [0, 0], sizes = [16, 4], strides = [1, 1]} : vector<32x4xf32> to vector<16x4xf32>
    %37 = vector.extract_strided_slice %13 {offsets = [16, 0], sizes = [16, 4], strides = [1, 1]} : vector<32x4xf32> to vector<16x4xf32>
    %38 = vector.shape_cast %14 : vector<1x4xf32> to vector<1x4xf32>
    %39 = vector.broadcast %38 : vector<1x4xf32> to vector<2x4xf32>
    %40 = vector.extract_strided_slice %0 {offsets = [0, 0], sizes = [16, 4], strides = [1, 1]} : vector<32x4xf32> to vector<16x4xf32>
    %cst_30 = arith.constant dense<0.000000e+00> : vector<16x48xf32>
    %41 = tpu.matmul %40, %1, %cst_30 {dimension_numbers = #tpu.dot_dimension_numbers<[1], [0], [0], [1], [0, 0, 1, 1], [], []>} : vector<16x4xf32>, vector<4x48xf32>, vector<16x48xf32> -> vector<16x48xf32>
    %42 = vector.broadcast %3 : vector<1x48xf32> to vector<16x48xf32>
    %43 = arith.addf %41, %42 : vector<16x48xf32>
    %cst_31 = arith.constant 0.000000e+00 : f32
    %44 = vector.broadcast %cst_31 : f32 to vector<2x16xf32>
    %45 = vector.extract_strided_slice %43 {offsets = [0, 0], sizes = [2, 48], strides = [1, 1]} : vector<16x48xf32> to vector<2x48xf32>
    %cst_32 = arith.constant dense<0.000000e+00> : vector<2x48xf32>
    %46 = tpu.matmul %44, %2, %cst_32 {dimension_numbers = #tpu.dot_dimension_numbers<[1], [0], [0], [1], [0, 0, 1, 1], [], []>} : vector<2x16xf32>, vector<16x48xf32>, vector<2x48xf32> -> vector<2x48xf32>
    %47 = vector.extract_strided_slice %45 {offsets = [0, 0], sizes = [2, 32], strides = [1, 1]} : vector<2x48xf32> to vector<2x32xf32>
    %48 = vector.extract_strided_slice %46 {offsets = [0, 0], sizes = [2, 32], strides = [1, 1]} : vector<2x48xf32> to vector<2x32xf32>
    %49 = arith.addf %47, %48 : vector<2x32xf32>
    %50 = arith.addf %49, %17 : vector<2x32xf32>
    %51 = arith.negf %50 : vector<2x32xf32>
    %52 = math.exp %51 : vector<2x32xf32>
    %cst_33 = arith.constant 1.000000e+00 : f32
    %53 = vector.broadcast %cst_33 : f32 to vector<2x32xf32>
    %54 = arith.addf %53, %52 : vector<2x32xf32>
    %55 = arith.divf %53, %54 : vector<2x32xf32>
    %56 = vector.extract_strided_slice %55 {offsets = [0, 0], sizes = [2, 16], strides = [1, 1]} : vector<2x32xf32> to vector<2x16xf32>
    %57 = vector.extract_strided_slice %55 {offsets = [0, 16], sizes = [2, 16], strides = [1, 1]} : vector<2x32xf32> to vector<2x16xf32>
    %58 = vector.extract_strided_slice %45 {offsets = [0, 32], sizes = [2, 16], strides = [1, 1]} : vector<2x48xf32> to vector<2x16xf32>
    %59 = vector.extract_strided_slice %46 {offsets = [0, 32], sizes = [2, 16], strides = [1, 1]} : vector<2x48xf32> to vector<2x16xf32>
    %60 = arith.addf %59, %20 : vector<2x16xf32>
    %61 = arith.mulf %56, %60 : vector<2x16xf32>
    %62 = arith.addf %58, %61 : vector<2x16xf32>
    %63 = math.tanh %62 : vector<2x16xf32>
    %cst_34 = arith.constant 1.000000e+00 : f32
    %64 = vector.broadcast %cst_34 : f32 to vector<2x16xf32>
    %65 = arith.subf %64, %57 : vector<2x16xf32>
    %66 = arith.mulf %65, %63 : vector<2x16xf32>
    %67 = arith.mulf %57, %44 : vector<2x16xf32>
    %68 = arith.addf %66, %67 : vector<2x16xf32>
    %c0_35 = arith.constant 0 : index
    %c0_36 = arith.constant 0 : index
    %69 = vector.load %arg16[%c0_35, %c0_36] : memref<16x16xf32, #tpu.memory_space<vmem>>, vector<2x16xf32>
    tpu.vector_store %arg16[%c0_35, %c0_36], %68 {strides = array<i32>} : memref<16x16xf32, #tpu.memory_space<vmem>>, vector<2x16xf32>,
    %70 = vector.extract_strided_slice %43 {offsets = [2, 0], sizes = [2, 48], strides = [1, 1]} : vector<16x48xf32> to vector<2x48xf32>
    %cst_37 = arith.constant dense<0.000000e+00> : vector<2x48xf32>
    %71 = tpu.matmul %68, %2, %cst_37 {dimension_numbers = #tpu.dot_dimension_numbers<[1], [0], [0], [1], [0, 0, 1, 1], [], []>} : vector<2x16xf32>, vector<16x48xf32>, vector<2x48xf32> -> vector<2x48xf32>
    %72 = vector.extract_strided_slice %70 {offsets = [0, 0], sizes = [2, 32], strides = [1, 1]} : vector<2x48xf32> to vector<2x32xf32>
    %73 = vector.extract_strided_slice %71 {offsets = [0, 0], sizes = [2, 32], strides = [1, 1]} : vector<2x48xf32> to vector<2x32xf32>
    %74 = arith.addf %72, %73 : vector<2x32xf32>
    %75 = arith.addf %74, %17 : vector<2x32xf32>
    %76 = arith.negf %75 : vector<2x32xf32>
    %77 = math.exp %76 : vector<2x32xf32>
    %cst_38 = arith.constant 1.000000e+00 : f32
    %78 = vector.broadcast %cst_38 : f32 to vector<2x32xf32>
    %79 = arith.addf %78, %77 : vector<2x32xf32>
    %80 = arith.divf %78, %79 : vector<2x32xf32>
    %81 = vector.extract_strided_slice %80 {offsets = [0, 0], sizes = [2, 16], strides = [1, 1]} : vector<2x32xf32> to vector<2x16xf32>
    %82 = vector.extract_strided_slice %80 {offsets = [0, 16], sizes = [2, 16], strides = [1, 1]} : vector<2x32xf32> to vector<2x16xf32>
    %83 = vector.extract_strided_slice %70 {offsets = [0, 32], sizes = [2, 16], strides = [1, 1]} : vector<2x48xf32> to vector<2x16xf32>
    %84 = vector.extract_strided_slice %71 {offsets = [0, 32], sizes = [2, 16], strides = [1, 1]} : vector<2x48xf32> to vector<2x16xf32>
    %85 = arith.addf %84, %20 : vector<2x16xf32>
    %86 = arith.mulf %81, %85 : vector<2x16xf32>
    %87 = arith.addf %83, %86 : vector<2x16xf32>
    %88 = math.tanh %87 : vector<2x16xf32>
    %cst_39 = arith.constant 1.000000e+00 : f32
    %89 = vector.broadcast %cst_39 : f32 to vector<2x16xf32>
    %90 = arith.subf %89, %82 : vector<2x16xf32>
    %91 = arith.mulf %90, %88 : vector<2x16xf32>
    %92 = arith.mulf %82, %68 : vector<2x16xf32>
    %93 = arith.addf %91, %92 : vector<2x16xf32>
    %c2 = arith.constant 2 : index
    %c0_40 = arith.constant 0 : index
    %94 = vector.load %arg16[%c2, %c0_40] : memref<16x16xf32, #tpu.memory_space<vmem>>, vector<2x16xf32>
    tpu.vector_store %arg16[%c2, %c0_40], %93 {strides = array<i32>} : memref<16x16xf32, #tpu.memory_space<vmem>>, vector<2x16xf32>,
    %95 = vector.extract_strided_slice %43 {offsets = [4, 0], sizes = [2, 48], strides = [1, 1]} : vector<16x48xf32> to vector<2x48xf32>
    %cst_41 = arith.constant dense<0.000000e+00> : vector<2x48xf32>
    %96 = tpu.matmul %93, %2, %cst_41 {dimension_numbers = #tpu.dot_dimension_numbers<[1], [0], [0], [1], [0, 0, 1, 1], [], []>} : vector<2x16xf32>, vector<16x48xf32>, vector<2x48xf32> -> vector<2x48xf32>
    %97 = vector.extract_strided_slice %95 {offsets = [0, 0], sizes = [2, 32], strides = [1, 1]} : vector<2x48xf32> to vector<2x32xf32>
    %98 = vector.extract_strided_slice %96 {offsets = [0, 0], sizes = [2, 32], strides = [1, 1]} : vector<2x48xf32> to vector<2x32xf32>
    %99 = arith.addf %97, %98 : vector<2x32xf32>
    %100 = arith.addf %99, %17 : vector<2x32xf32>
    %101 = arith.negf %100 : vector<2x32xf32>
    %102 = math.exp %101 : vector<2x32xf32>
    %cst_42 = arith.constant 1.000000e+00 : f32
    %103 = vector.broadcast %cst_42 : f32 to vector<2x32xf32>
    %104 = arith.addf %103, %102 : vector<2x32xf32>
    %105 = arith.divf %103, %104 : vector<2x32xf32>
    %106 = vector.extract_strided_slice %105 {offsets = [0, 0], sizes = [2, 16], strides = [1, 1]} : vector<2x32xf32> to vector<2x16xf32>
    %107 = vector.extract_strided_slice %105 {offsets = [0, 16], sizes = [2, 16], strides = [1, 1]} : vector<2x32xf32> to vector<2x16xf32>
    %108 = vector.extract_strided_slice %95 {offsets = [0, 32], sizes = [2, 16], strides = [1, 1]} : vector<2x48xf32> to vector<2x16xf32>
    %109 = vector.extract_strided_slice %96 {offsets = [0, 32], sizes = [2, 16], strides = [1, 1]} : vector<2x48xf32> to vector<2x16xf32>
    %110 = arith.addf %109, %20 : vector<2x16xf32>
    %111 = arith.mulf %106, %110 : vector<2x16xf32>
    %112 = arith.addf %108, %111 : vector<2x16xf32>
    %113 = math.tanh %112 : vector<2x16xf32>
    %cst_43 = arith.constant 1.000000e+00 : f32
    %114 = vector.broadcast %cst_43 : f32 to vector<2x16xf32>
    %115 = arith.subf %114, %107 : vector<2x16xf32>
    %116 = arith.mulf %115, %113 : vector<2x16xf32>
    %117 = arith.mulf %107, %93 : vector<2x16xf32>
    %118 = arith.addf %116, %117 : vector<2x16xf32>
    %c4 = arith.constant 4 : index
    %c0_44 = arith.constant 0 : index
    %119 = vector.load %arg16[%c4, %c0_44] : memref<16x16xf32, #tpu.memory_space<vmem>>, vector<2x16xf32>
    tpu.vector_store %arg16[%c4, %c0_44], %118 {strides = array<i32>} : memref<16x16xf32, #tpu.memory_space<vmem>>, vector<2x16xf32>,
    %120 = vector.extract_strided_slice %43 {offsets = [6, 0], sizes = [2, 48], strides = [1, 1]} : vector<16x48xf32> to vector<2x48xf32>
    %cst_45 = arith.constant dense<0.000000e+00> : vector<2x48xf32>
    %121 = tpu.matmul %118, %2, %cst_45 {dimension_numbers = #tpu.dot_dimension_numbers<[1], [0], [0], [1], [0, 0, 1, 1], [], []>} : vector<2x16xf32>, vector<16x48xf32>, vector<2x48xf32> -> vector<2x48xf32>
    %122 = vector.extract_strided_slice %120 {offsets = [0, 0], sizes = [2, 32], strides = [1, 1]} : vector<2x48xf32> to vector<2x32xf32>
    %123 = vector.extract_strided_slice %121 {offsets = [0, 0], sizes = [2, 32], strides = [1, 1]} : vector<2x48xf32> to vector<2x32xf32>
    %124 = arith.addf %122, %123 : vector<2x32xf32>
    %125 = arith.addf %124, %17 : vector<2x32xf32>
    %126 = arith.negf %125 : vector<2x32xf32>
    %127 = math.exp %126 : vector<2x32xf32>
    %cst_46 = arith.constant 1.000000e+00 : f32
    %128 = vector.broadcast %cst_46 : f32 to vector<2x32xf32>
    %129 = arith.addf %128, %127 : vector<2x32xf32>
    %130 = arith.divf %128, %129 : vector<2x32xf32>
    %131 = vector.extract_strided_slice %130 {offsets = [0, 0], sizes = [2, 16], strides = [1, 1]} : vector<2x32xf32> to vector<2x16xf32>
    %132 = vector.extract_strided_slice %130 {offsets = [0, 16], sizes = [2, 16], strides = [1, 1]} : vector<2x32xf32> to vector<2x16xf32>
    %133 = vector.extract_strided_slice %120 {offsets = [0, 32], sizes = [2, 16], strides = [1, 1]} : vector<2x48xf32> to vector<2x16xf32>
    %134 = vector.extract_strided_slice %121 {offsets = [0, 32], sizes = [2, 16], strides = [1, 1]} : vector<2x48xf32> to vector<2x16xf32>
    %135 = arith.addf %134, %20 : vector<2x16xf32>
    %136 = arith.mulf %131, %135 : vector<2x16xf32>
    %137 = arith.addf %133, %136 : vector<2x16xf32>
    %138 = math.tanh %137 : vector<2x16xf32>
    %cst_47 = arith.constant 1.000000e+00 : f32
    %139 = vector.broadcast %cst_47 : f32 to vector<2x16xf32>
    %140 = arith.subf %139, %132 : vector<2x16xf32>
    %141 = arith.mulf %140, %138 : vector<2x16xf32>
    %142 = arith.mulf %132, %118 : vector<2x16xf32>
    %143 = arith.addf %141, %142 : vector<2x16xf32>
    %c6 = arith.constant 6 : index
    %c0_48 = arith.constant 0 : index
    %144 = vector.load %arg16[%c6, %c0_48] : memref<16x16xf32, #tpu.memory_space<vmem>>, vector<2x16xf32>
    tpu.vector_store %arg16[%c6, %c0_48], %143 {strides = array<i32>} : memref<16x16xf32, #tpu.memory_space<vmem>>, vector<2x16xf32>,
    %145 = vector.extract_strided_slice %43 {offsets = [8, 0], sizes = [2, 48], strides = [1, 1]} : vector<16x48xf32> to vector<2x48xf32>
    %cst_49 = arith.constant dense<0.000000e+00> : vector<2x48xf32>
    %146 = tpu.matmul %143, %2, %cst_49 {dimension_numbers = #tpu.dot_dimension_numbers<[1], [0], [0], [1], [0, 0, 1, 1], [], []>} : vector<2x16xf32>, vector<16x48xf32>, vector<2x48xf32> -> vector<2x48xf32>
    %147 = vector.extract_strided_slice %145 {offsets = [0, 0], sizes = [2, 32], strides = [1, 1]} : vector<2x48xf32> to vector<2x32xf32>
    %148 = vector.extract_strided_slice %146 {offsets = [0, 0], sizes = [2, 32], strides = [1, 1]} : vector<2x48xf32> to vector<2x32xf32>
    %149 = arith.addf %147, %148 : vector<2x32xf32>
    %150 = arith.addf %149, %17 : vector<2x32xf32>
    %151 = arith.negf %150 : vector<2x32xf32>
    %152 = math.exp %151 : vector<2x32xf32>
    %cst_50 = arith.constant 1.000000e+00 : f32
    %153 = vector.broadcast %cst_50 : f32 to vector<2x32xf32>
    %154 = arith.addf %153, %152 : vector<2x32xf32>
    %155 = arith.divf %153, %154 : vector<2x32xf32>
    %156 = vector.extract_strided_slice %155 {offsets = [0, 0], sizes = [2, 16], strides = [1, 1]} : vector<2x32xf32> to vector<2x16xf32>
    %157 = vector.extract_strided_slice %155 {offsets = [0, 16], sizes = [2, 16], strides = [1, 1]} : vector<2x32xf32> to vector<2x16xf32>
    %158 = vector.extract_strided_slice %145 {offsets = [0, 32], sizes = [2, 16], strides = [1, 1]} : vector<2x48xf32> to vector<2x16xf32>
    %159 = vector.extract_strided_slice %146 {offsets = [0, 32], sizes = [2, 16], strides = [1, 1]} : vector<2x48xf32> to vector<2x16xf32>
    %160 = arith.addf %159, %20 : vector<2x16xf32>
    %161 = arith.mulf %156, %160 : vector<2x16xf32>
    %162 = arith.addf %158, %161 : vector<2x16xf32>
    %163 = math.tanh %162 : vector<2x16xf32>
    %cst_51 = arith.constant 1.000000e+00 : f32
    %164 = vector.broadcast %cst_51 : f32 to vector<2x16xf32>
    %165 = arith.subf %164, %157 : vector<2x16xf32>
    %166 = arith.mulf %165, %163 : vector<2x16xf32>
    %167 = arith.mulf %157, %143 : vector<2x16xf32>
    %168 = arith.addf %166, %167 : vector<2x16xf32>
    %c8 = arith.constant 8 : index
    %c0_52 = arith.constant 0 : index
    %169 = vector.load %arg16[%c8, %c0_52] : memref<16x16xf32, #tpu.memory_space<vmem>>, vector<2x16xf32>
    tpu.vector_store %arg16[%c8, %c0_52], %168 {strides = array<i32>} : memref<16x16xf32, #tpu.memory_space<vmem>>, vector<2x16xf32>,
    %170 = vector.extract_strided_slice %43 {offsets = [10, 0], sizes = [2, 48], strides = [1, 1]} : vector<16x48xf32> to vector<2x48xf32>
    %cst_53 = arith.constant dense<0.000000e+00> : vector<2x48xf32>
    %171 = tpu.matmul %168, %2, %cst_53 {dimension_numbers = #tpu.dot_dimension_numbers<[1], [0], [0], [1], [0, 0, 1, 1], [], []>} : vector<2x16xf32>, vector<16x48xf32>, vector<2x48xf32> -> vector<2x48xf32>
    %172 = vector.extract_strided_slice %170 {offsets = [0, 0], sizes = [2, 32], strides = [1, 1]} : vector<2x48xf32> to vector<2x32xf32>
    %173 = vector.extract_strided_slice %171 {offsets = [0, 0], sizes = [2, 32], strides = [1, 1]} : vector<2x48xf32> to vector<2x32xf32>
    %174 = arith.addf %172, %173 : vector<2x32xf32>
    %175 = arith.addf %174, %17 : vector<2x32xf32>
    %176 = arith.negf %175 : vector<2x32xf32>
    %177 = math.exp %176 : vector<2x32xf32>
    %cst_54 = arith.constant 1.000000e+00 : f32
    %178 = vector.broadcast %cst_54 : f32 to vector<2x32xf32>
    %179 = arith.addf %178, %177 : vector<2x32xf32>
    %180 = arith.divf %178, %179 : vector<2x32xf32>
    %181 = vector.extract_strided_slice %180 {offsets = [0, 0], sizes = [2, 16], strides = [1, 1]} : vector<2x32xf32> to vector<2x16xf32>
    %182 = vector.extract_strided_slice %180 {offsets = [0, 16], sizes = [2, 16], strides = [1, 1]} : vector<2x32xf32> to vector<2x16xf32>
    %183 = vector.extract_strided_slice %170 {offsets = [0, 32], sizes = [2, 16], strides = [1, 1]} : vector<2x48xf32> to vector<2x16xf32>
    %184 = vector.extract_strided_slice %171 {offsets = [0, 32], sizes = [2, 16], strides = [1, 1]} : vector<2x48xf32> to vector<2x16xf32>
    %185 = arith.addf %184, %20 : vector<2x16xf32>
    %186 = arith.mulf %181, %185 : vector<2x16xf32>
    %187 = arith.addf %183, %186 : vector<2x16xf32>
    %188 = math.tanh %187 : vector<2x16xf32>
    %cst_55 = arith.constant 1.000000e+00 : f32
    %189 = vector.broadcast %cst_55 : f32 to vector<2x16xf32>
    %190 = arith.subf %189, %182 : vector<2x16xf32>
    %191 = arith.mulf %190, %188 : vector<2x16xf32>
    %192 = arith.mulf %182, %168 : vector<2x16xf32>
    %193 = arith.addf %191, %192 : vector<2x16xf32>
    %c10 = arith.constant 10 : index
    %c0_56 = arith.constant 0 : index
    %194 = vector.load %arg16[%c10, %c0_56] : memref<16x16xf32, #tpu.memory_space<vmem>>, vector<2x16xf32>
    tpu.vector_store %arg16[%c10, %c0_56], %193 {strides = array<i32>} : memref<16x16xf32, #tpu.memory_space<vmem>>, vector<2x16xf32>,
    %195 = vector.extract_strided_slice %43 {offsets = [12, 0], sizes = [2, 48], strides = [1, 1]} : vector<16x48xf32> to vector<2x48xf32>
    %cst_57 = arith.constant dense<0.000000e+00> : vector<2x48xf32>
    %196 = tpu.matmul %193, %2, %cst_57 {dimension_numbers = #tpu.dot_dimension_numbers<[1], [0], [0], [1], [0, 0, 1, 1], [], []>} : vector<2x16xf32>, vector<16x48xf32>, vector<2x48xf32> -> vector<2x48xf32>
    %197 = vector.extract_strided_slice %195 {offsets = [0, 0], sizes = [2, 32], strides = [1, 1]} : vector<2x48xf32> to vector<2x32xf32>
    %198 = vector.extract_strided_slice %196 {offsets = [0, 0], sizes = [2, 32], strides = [1, 1]} : vector<2x48xf32> to vector<2x32xf32>
    %199 = arith.addf %197, %198 : vector<2x32xf32>
    %200 = arith.addf %199, %17 : vector<2x32xf32>
    %201 = arith.negf %200 : vector<2x32xf32>
    %202 = math.exp %201 : vector<2x32xf32>
    %cst_58 = arith.constant 1.000000e+00 : f32
    %203 = vector.broadcast %cst_58 : f32 to vector<2x32xf32>
    %204 = arith.addf %203, %202 : vector<2x32xf32>
    %205 = arith.divf %203, %204 : vector<2x32xf32>
    %206 = vector.extract_strided_slice %205 {offsets = [0, 0], sizes = [2, 16], strides = [1, 1]} : vector<2x32xf32> to vector<2x16xf32>
    %207 = vector.extract_strided_slice %205 {offsets = [0, 16], sizes = [2, 16], strides = [1, 1]} : vector<2x32xf32> to vector<2x16xf32>
    %208 = vector.extract_strided_slice %195 {offsets = [0, 32], sizes = [2, 16], strides = [1, 1]} : vector<2x48xf32> to vector<2x16xf32>
    %209 = vector.extract_strided_slice %196 {offsets = [0, 32], sizes = [2, 16], strides = [1, 1]} : vector<2x48xf32> to vector<2x16xf32>
    %210 = arith.addf %209, %20 : vector<2x16xf32>
    %211 = arith.mulf %206, %210 : vector<2x16xf32>
    %212 = arith.addf %208, %211 : vector<2x16xf32>
    %213 = math.tanh %212 : vector<2x16xf32>
    %cst_59 = arith.constant 1.000000e+00 : f32
    %214 = vector.broadcast %cst_59 : f32 to vector<2x16xf32>
    %215 = arith.subf %214, %207 : vector<2x16xf32>
    %216 = arith.mulf %215, %213 : vector<2x16xf32>
    %217 = arith.mulf %207, %193 : vector<2x16xf32>
    %218 = arith.addf %216, %217 : vector<2x16xf32>
    %c12 = arith.constant 12 : index
    %c0_60 = arith.constant 0 : index
    %219 = vector.load %arg16[%c12, %c0_60] : memref<16x16xf32, #tpu.memory_space<vmem>>, vector<2x16xf32>
    tpu.vector_store %arg16[%c12, %c0_60], %218 {strides = array<i32>} : memref<16x16xf32, #tpu.memory_space<vmem>>, vector<2x16xf32>,
    %220 = vector.extract_strided_slice %43 {offsets = [14, 0], sizes = [2, 48], strides = [1, 1]} : vector<16x48xf32> to vector<2x48xf32>
    %cst_61 = arith.constant dense<0.000000e+00> : vector<2x48xf32>
    %221 = tpu.matmul %218, %2, %cst_61 {dimension_numbers = #tpu.dot_dimension_numbers<[1], [0], [0], [1], [0, 0, 1, 1], [], []>} : vector<2x16xf32>, vector<16x48xf32>, vector<2x48xf32> -> vector<2x48xf32>
    %222 = vector.extract_strided_slice %220 {offsets = [0, 0], sizes = [2, 32], strides = [1, 1]} : vector<2x48xf32> to vector<2x32xf32>
    %223 = vector.extract_strided_slice %221 {offsets = [0, 0], sizes = [2, 32], strides = [1, 1]} : vector<2x48xf32> to vector<2x32xf32>
    %224 = arith.addf %222, %223 : vector<2x32xf32>
    %225 = arith.addf %224, %17 : vector<2x32xf32>
    %226 = arith.negf %225 : vector<2x32xf32>
    %227 = math.exp %226 : vector<2x32xf32>
    %cst_62 = arith.constant 1.000000e+00 : f32
    %228 = vector.broadcast %cst_62 : f32 to vector<2x32xf32>
    %229 = arith.addf %228, %227 : vector<2x32xf32>
    %230 = arith.divf %228, %229 : vector<2x32xf32>
    %231 = vector.extract_strided_slice %230 {offsets = [0, 0], sizes = [2, 16], strides = [1, 1]} : vector<2x32xf32> to vector<2x16xf32>
    %232 = vector.extract_strided_slice %230 {offsets = [0, 16], sizes = [2, 16], strides = [1, 1]} : vector<2x32xf32> to vector<2x16xf32>
    %233 = vector.extract_strided_slice %220 {offsets = [0, 32], sizes = [2, 16], strides = [1, 1]} : vector<2x48xf32> to vector<2x16xf32>
    %234 = vector.extract_strided_slice %221 {offsets = [0, 32], sizes = [2, 16], strides = [1, 1]} : vector<2x48xf32> to vector<2x16xf32>
    %235 = arith.addf %234, %20 : vector<2x16xf32>
    %236 = arith.mulf %231, %235 : vector<2x16xf32>
    %237 = arith.addf %233, %236 : vector<2x16xf32>
    %238 = math.tanh %237 : vector<2x16xf32>
    %cst_63 = arith.constant 1.000000e+00 : f32
    %239 = vector.broadcast %cst_63 : f32 to vector<2x16xf32>
    %240 = arith.subf %239, %232 : vector<2x16xf32>
    %241 = arith.mulf %240, %238 : vector<2x16xf32>
    %242 = arith.mulf %232, %218 : vector<2x16xf32>
    %243 = arith.addf %241, %242 : vector<2x16xf32>
    %c14 = arith.constant 14 : index
    %c0_64 = arith.constant 0 : index
    %244 = vector.load %arg16[%c14, %c0_64] : memref<16x16xf32, #tpu.memory_space<vmem>>, vector<2x16xf32>
    tpu.vector_store %arg16[%c14, %c0_64], %243 {strides = array<i32>} : memref<16x16xf32, #tpu.memory_space<vmem>>, vector<2x16xf32>,
    %c0_65 = arith.constant 0 : index
    %c0_66 = arith.constant 0 : index
    %245 = vector.load %arg16[%c0_65, %c0_66] : memref<16x16xf32, #tpu.memory_space<vmem>>, vector<16x16xf32>
    %246 = tpu.concatenate %11, %36 in 1 : vector<16x16xf32>, vector<16x4xf32> -> vector<16x20xf32>
    %cst_67 = arith.constant dense<0.000000e+00> : vector<16x20xf32>
    %247 = tpu.matmul %245, %246, %cst_67 {dimension_numbers = #tpu.dot_dimension_numbers<[1], [0], [0], [1], [0, 0, 1, 1], [], []>} : vector<16x16xf32>, vector<16x20xf32>, vector<16x20xf32> -> vector<16x20xf32>
    %248 = vector.extract_strided_slice %247 {offsets = [0, 0], sizes = [16, 16], strides = [1, 1]} : vector<16x20xf32> to vector<16x16xf32>
    %249 = vector.broadcast %12 : vector<1x16xf32> to vector<16x16xf32>
    %250 = arith.addf %248, %249 : vector<16x16xf32>
    %251 = tpu.transpose %250, [1, 0] : vector<16x16xf32> -> vector<16x16xf32>
    %252 = vector.extract_strided_slice %247 {offsets = [0, 16], sizes = [16, 4], strides = [1, 1]} : vector<16x20xf32> to vector<16x4xf32>
    %cst_68 = arith.constant dense<0.000000e+00> : vector<16x16xf32>
    %253 = tpu.matmul %33, %251, %cst_68 {dimension_numbers = #tpu.dot_dimension_numbers<[1], [0], [0], [1], [0, 0, 1, 1], [], []>} : vector<16x16xf32>, vector<16x16xf32>, vector<16x16xf32> -> vector<16x16xf32>
    %cst_69 = arith.constant dense<0.000000e+00> : vector<1x16xf32>
    %254 = tpu.matmul %35, %251, %cst_69 {dimension_numbers = #tpu.dot_dimension_numbers<[1], [0], [0], [1], [0, 0, 1, 1], [], []>} : vector<1x16xf32>, vector<16x16xf32>, vector<1x16xf32> -> vector<1x16xf32>
    %255 = tpu.iota {dimensions = array<i32: 1>} : vector<2x16xi32>
    %c2_i32 = arith.constant 2 : i32
    %c0_i32 = arith.constant 0 : i32
    %256 = arith.cmpi eq, %c2_i32, %c0_i32 : i32
    %c1_i32 = arith.constant 1 : i32
    %257 = arith.select %256, %c1_i32, %c2_i32 : i32
    %258 = vector.broadcast %257 : i32 to vector<2x16xi32>
    %259 = arith.remsi %255, %258 : vector<2x16xi32>
    %c0_i32_70 = arith.constant 0 : i32
    %260 = vector.broadcast %c0_i32_70 : i32 to vector<2x16xi32>
    %261 = arith.cmpi ne, %259, %260 : vector<2x16xi32>
    %c0_i32_71 = arith.constant 0 : i32
    %262 = vector.broadcast %c0_i32_71 : i32 to vector<2x16xi32>
    %263 = arith.cmpi slt, %259, %262 : vector<2x16xi32>
    %c0_i32_72 = arith.constant 0 : i32
    %264 = arith.cmpi slt, %257, %c0_i32_72 : i32
    %265 = vector.broadcast %264 : i1 to vector<2x16xi1>
    %266 = vector.broadcast %265 : vector<2x16xi1> to vector<2x16xi1>
    %267 = arith.xori %263, %266 : vector<2x16xi1>
    %268 = arith.andi %267, %261 : vector<2x16xi1>
    %269 = vector.broadcast %257 : i32 to vector<2x16xi32>
    %270 = arith.addi %259, %269 : vector<2x16xi32>
    %271 = arith.select %268, %270, %259 : vector<2x16xi1>, vector<2x16xi32>
    %272 = tpu.iota {dimensions = array<i32: 0>} : vector<2x16xi32>
    %273 = arith.cmpi eq, %271, %272 : vector<2x16xi32>
    %cst_73 = arith.constant 0.000000e+00 : f32
    %cst_74 = arith.constant -1.000000e+30 : f32
    %274 = vector.broadcast %cst_73 : f32 to vector<2x16xf32>
    %275 = vector.broadcast %cst_74 : f32 to vector<2x16xf32>
    %276 = arith.select %273, %274, %275 : vector<2x16xi1>, vector<2x16xf32>
    %277 = vector.shape_cast %254 : vector<1x16xf32> to vector<1x16xf32>
    %278 = vector.broadcast %277 : vector<1x16xf32> to vector<2x16xf32>
    %279 = arith.addf %276, %278 : vector<2x16xf32>
    %280 = tpu.concatenate %253, %37 in 1 : vector<16x16xf32>, vector<16x4xf32> -> vector<16x20xf32>
    %281 = vector.extract_strided_slice %0 {offsets = [14, 0], sizes = [2, 4], strides = [1, 1]} : vector<32x4xf32> to vector<2x4xf32>
    %cst_75 = arith.constant dense<0.000000e+00> : vector<2x48xf32>
    %282 = tpu.matmul %281, %5, %cst_75 {dimension_numbers = #tpu.dot_dimension_numbers<[1], [0], [0], [1], [0, 0, 1, 1], [], []>} : vector<2x4xf32>, vector<4x48xf32>, vector<2x48xf32> -> vector<2x48xf32>
    %cst_76 = arith.constant dense<0.000000e+00> : vector<2x48xf32>
    %283 = tpu.matmul %243, %6, %cst_76 {dimension_numbers = #tpu.dot_dimension_numbers<[1], [0], [0], [1], [0, 0, 1, 1], [], []>} : vector<2x16xf32>, vector<16x48xf32>, vector<2x48xf32> -> vector<2x48xf32>
    %284 = vector.extract_strided_slice %282 {offsets = [0, 0], sizes = [2, 32], strides = [1, 1]} : vector<2x48xf32> to vector<2x32xf32>
    %285 = vector.extract_strided_slice %283 {offsets = [0, 0], sizes = [2, 32], strides = [1, 1]} : vector<2x48xf32> to vector<2x32xf32>
    %286 = arith.addf %284, %285 : vector<2x32xf32>
    %287 = arith.addf %286, %25 : vector<2x32xf32>
    %288 = arith.negf %287 : vector<2x32xf32>
    %289 = math.exp %288 : vector<2x32xf32>
    %cst_77 = arith.constant 1.000000e+00 : f32
    %290 = vector.broadcast %cst_77 : f32 to vector<2x32xf32>
    %291 = arith.addf %290, %289 : vector<2x32xf32>
    %292 = arith.divf %290, %291 : vector<2x32xf32>
    %293 = vector.extract_strided_slice %292 {offsets = [0, 0], sizes = [2, 16], strides = [1, 1]} : vector<2x32xf32> to vector<2x16xf32>
    %294 = vector.extract_strided_slice %292 {offsets = [0, 16], sizes = [2, 16], strides = [1, 1]} : vector<2x32xf32> to vector<2x16xf32>
    %295 = vector.extract_strided_slice %282 {offsets = [0, 32], sizes = [2, 16], strides = [1, 1]} : vector<2x48xf32> to vector<2x16xf32>
    %296 = arith.addf %295, %28 : vector<2x16xf32>
    %297 = vector.extract_strided_slice %283 {offsets = [0, 32], sizes = [2, 16], strides = [1, 1]} : vector<2x48xf32> to vector<2x16xf32>
    %298 = arith.addf %297, %31 : vector<2x16xf32>
    %299 = arith.mulf %293, %298 : vector<2x16xf32>
    %300 = arith.addf %296, %299 : vector<2x16xf32>
    %301 = math.tanh %300 : vector<2x16xf32>
    %cst_78 = arith.constant 1.000000e+00 : f32
    %302 = vector.broadcast %cst_78 : f32 to vector<2x16xf32>
    %303 = arith.subf %302, %294 : vector<2x16xf32>
    %304 = arith.mulf %303, %301 : vector<2x16xf32>
    %305 = arith.mulf %294, %243 : vector<2x16xf32>
    %306 = arith.addf %304, %305 : vector<2x16xf32>
    %cst_79 = arith.constant dense<0.000000e+00> : vector<2x20xf32>
    %307 = tpu.matmul %306, %280, %cst_79 {dimension_numbers = #tpu.dot_dimension_numbers<[1], [0], [0], [1], [0, 0, 1, 1], [], []>} : vector<2x16xf32>, vector<16x20xf32>, vector<2x20xf32> -> vector<2x20xf32>
    %308 = vector.extract_strided_slice %307 {offsets = [0, 0], sizes = [2, 16], strides = [1, 1]} : vector<2x20xf32> to vector<2x16xf32>
    %309 = arith.addf %308, %279 : vector<2x16xf32>
    %cst_80 = arith.constant dense<0xFF800000> : vector<2xf32>
    %310 = vector.multi_reduction <maximumf>, %309, %cst_80 [1] : vector<2x16xf32> to vector<2xf32>
    %311 = vector.shape_cast %310 : vector<2xf32> to vector<2x1xf32>
    %312 = vector.broadcast %311 : vector<2x1xf32> to vector<2x16xf32>
    %313 = arith.subf %309, %312 : vector<2x16xf32>
    %314 = math.exp %313 : vector<2x16xf32>
    %cst_81 = arith.constant dense<0.000000e+00> : vector<2xf32>
    %315 = vector.multi_reduction <add>, %314, %cst_81 [1] : vector<2x16xf32> to vector<2xf32>
    %316 = vector.shape_cast %315 : vector<2xf32> to vector<2x1xf32>
    %cst_82 = arith.constant dense<0.000000e+00> : vector<2x4xf32>
    %317 = tpu.matmul %314, %252, %cst_82 {dimension_numbers = #tpu.dot_dimension_numbers<[1], [0], [0], [1], [0, 0, 1, 1], [], []>} : vector<2x16xf32>, vector<16x4xf32>, vector<2x4xf32> -> vector<2x4xf32>
    %cst_83 = arith.constant 1.000000e+00 : f32
    %318 = vector.broadcast %cst_83 : f32 to vector<2x1xf32>
    %319 = arith.divf %318, %316 : vector<2x1xf32>
    %320 = vector.broadcast %319 : vector<2x1xf32> to vector<2x4xf32>
    %321 = arith.mulf %317, %320 : vector<2x4xf32>
    %322 = vector.extract_strided_slice %307 {offsets = [0, 16], sizes = [2, 4], strides = [1, 1]} : vector<2x20xf32> to vector<2x4xf32>
    %323 = arith.addf %321, %322 : vector<2x4xf32>
    %324 = arith.addf %323, %39 : vector<2x4xf32>
    %c0_84 = arith.constant 0 : index
    %c0_85 = arith.constant 0 : index
    %325 = vector.load %arg15[%c0_84, %c0_85] : memref<2x32xf32, #tpu.memory_space<vmem>>, vector<2x4xf32>
    tpu.vector_store %arg15[%c0_84, %c0_85], %324 {strides = array<i32>} : memref<2x32xf32, #tpu.memory_space<vmem>>, vector<2x4xf32>,
    %cst_86 = arith.constant dense<0.000000e+00> : vector<2x48xf32>
    %326 = tpu.matmul %324, %5, %cst_86 {dimension_numbers = #tpu.dot_dimension_numbers<[1], [0], [0], [1], [0, 0, 1, 1], [], []>} : vector<2x4xf32>, vector<4x48xf32>, vector<2x48xf32> -> vector<2x48xf32>
    %cst_87 = arith.constant dense<0.000000e+00> : vector<2x48xf32>
    %327 = tpu.matmul %306, %6, %cst_87 {dimension_numbers = #tpu.dot_dimension_numbers<[1], [0], [0], [1], [0, 0, 1, 1], [], []>} : vector<2x16xf32>, vector<16x48xf32>, vector<2x48xf32> -> vector<2x48xf32>
    %328 = vector.extract_strided_slice %326 {offsets = [0, 0], sizes = [2, 32], strides = [1, 1]} : vector<2x48xf32> to vector<2x32xf32>
    %329 = vector.extract_strided_slice %327 {offsets = [0, 0], sizes = [2, 32], strides = [1, 1]} : vector<2x48xf32> to vector<2x32xf32>
    %330 = arith.addf %328, %329 : vector<2x32xf32>
    %331 = arith.addf %330, %25 : vector<2x32xf32>
    %332 = arith.negf %331 : vector<2x32xf32>
    %333 = math.exp %332 : vector<2x32xf32>
    %cst_88 = arith.constant 1.000000e+00 : f32
    %334 = vector.broadcast %cst_88 : f32 to vector<2x32xf32>
    %335 = arith.addf %334, %333 : vector<2x32xf32>
    %336 = arith.divf %334, %335 : vector<2x32xf32>
    %337 = vector.extract_strided_slice %336 {offsets = [0, 0], sizes = [2, 16], strides = [1, 1]} : vector<2x32xf32> to vector<2x16xf32>
    %338 = vector.extract_strided_slice %336 {offsets = [0, 16], sizes = [2, 16], strides = [1, 1]} : vector<2x32xf32> to vector<2x16xf32>
    %339 = vector.extract_strided_slice %326 {offsets = [0, 32], sizes = [2, 16], strides = [1, 1]} : vector<2x48xf32> to vector<2x16xf32>
    %340 = arith.addf %339, %28 : vector<2x16xf32>
    %341 = vector.extract_strided_slice %327 {offsets = [0, 32], sizes = [2, 16], strides = [1, 1]} : vector<2x48xf32> to vector<2x16xf32>
    %342 = arith.addf %341, %31 : vector<2x16xf32>
    %343 = arith.mulf %337, %342 : vector<2x16xf32>
    %344 = arith.addf %340, %343 : vector<2x16xf32>
    %345 = math.tanh %344 : vector<2x16xf32>
    %cst_89 = arith.constant 1.000000e+00 : f32
    %346 = vector.broadcast %cst_89 : f32 to vector<2x16xf32>
    %347 = arith.subf %346, %338 : vector<2x16xf32>
    %348 = arith.mulf %347, %345 : vector<2x16xf32>
    %349 = arith.mulf %338, %306 : vector<2x16xf32>
    %350 = arith.addf %348, %349 : vector<2x16xf32>
    %cst_90 = arith.constant dense<0.000000e+00> : vector<2x20xf32>
    %351 = tpu.matmul %350, %280, %cst_90 {dimension_numbers = #tpu.dot_dimension_numbers<[1], [0], [0], [1], [0, 0, 1, 1], [], []>} : vector<2x16xf32>, vector<16x20xf32>, vector<2x20xf32> -> vector<2x20xf32>
    %352 = vector.extract_strided_slice %351 {offsets = [0, 0], sizes = [2, 16], strides = [1, 1]} : vector<2x20xf32> to vector<2x16xf32>
    %353 = arith.addf %352, %279 : vector<2x16xf32>
    %cst_91 = arith.constant dense<0xFF800000> : vector<2xf32>
    %354 = vector.multi_reduction <maximumf>, %353, %cst_91 [1] : vector<2x16xf32> to vector<2xf32>
    %355 = vector.shape_cast %354 : vector<2xf32> to vector<2x1xf32>
    %356 = vector.broadcast %355 : vector<2x1xf32> to vector<2x16xf32>
    %357 = arith.subf %353, %356 : vector<2x16xf32>
    %358 = math.exp %357 : vector<2x16xf32>
    %cst_92 = arith.constant dense<0.000000e+00> : vector<2xf32>
    %359 = vector.multi_reduction <add>, %358, %cst_92 [1] : vector<2x16xf32> to vector<2xf32>
    %360 = vector.shape_cast %359 : vector<2xf32> to vector<2x1xf32>
    %cst_93 = arith.constant dense<0.000000e+00> : vector<2x4xf32>
    %361 = tpu.matmul %358, %252, %cst_93 {dimension_numbers = #tpu.dot_dimension_numbers<[1], [0], [0], [1], [0, 0, 1, 1], [], []>} : vector<2x16xf32>, vector<16x4xf32>, vector<2x4xf32> -> vector<2x4xf32>
    %cst_94 = arith.constant 1.000000e+00 : f32
    %362 = vector.broadcast %cst_94 : f32 to vector<2x1xf32>
    %363 = arith.divf %362, %360 : vector<2x1xf32>
    %364 = vector.broadcast %363 : vector<2x1xf32> to vector<2x4xf32>
    %365 = arith.mulf %361, %364 : vector<2x4xf32>
    %366 = vector.extract_strided_slice %351 {offsets = [0, 16], sizes = [2, 4], strides = [1, 1]} : vector<2x20xf32> to vector<2x4xf32>
    %367 = arith.addf %365, %366 : vector<2x4xf32>
    %368 = arith.addf %367, %39 : vector<2x4xf32>
    %c0_95 = arith.constant 0 : index
    %c4_96 = arith.constant 4 : index
    %369 = vector.load %arg15[%c0_95, %c4_96] : memref<2x32xf32, #tpu.memory_space<vmem>>, vector<2x4xf32>
    tpu.vector_store %arg15[%c0_95, %c4_96], %368 {strides = array<i32>} : memref<2x32xf32, #tpu.memory_space<vmem>>, vector<2x4xf32>,
    %cst_97 = arith.constant dense<0.000000e+00> : vector<2x48xf32>
    %370 = tpu.matmul %368, %5, %cst_97 {dimension_numbers = #tpu.dot_dimension_numbers<[1], [0], [0], [1], [0, 0, 1, 1], [], []>} : vector<2x4xf32>, vector<4x48xf32>, vector<2x48xf32> -> vector<2x48xf32>
    %cst_98 = arith.constant dense<0.000000e+00> : vector<2x48xf32>
    %371 = tpu.matmul %350, %6, %cst_98 {dimension_numbers = #tpu.dot_dimension_numbers<[1], [0], [0], [1], [0, 0, 1, 1], [], []>} : vector<2x16xf32>, vector<16x48xf32>, vector<2x48xf32> -> vector<2x48xf32>
    %372 = vector.extract_strided_slice %370 {offsets = [0, 0], sizes = [2, 32], strides = [1, 1]} : vector<2x48xf32> to vector<2x32xf32>
    %373 = vector.extract_strided_slice %371 {offsets = [0, 0], sizes = [2, 32], strides = [1, 1]} : vector<2x48xf32> to vector<2x32xf32>
    %374 = arith.addf %372, %373 : vector<2x32xf32>
    %375 = arith.addf %374, %25 : vector<2x32xf32>
    %376 = arith.negf %375 : vector<2x32xf32>
    %377 = math.exp %376 : vector<2x32xf32>
    %cst_99 = arith.constant 1.000000e+00 : f32
    %378 = vector.broadcast %cst_99 : f32 to vector<2x32xf32>
    %379 = arith.addf %378, %377 : vector<2x32xf32>
    %380 = arith.divf %378, %379 : vector<2x32xf32>
    %381 = vector.extract_strided_slice %380 {offsets = [0, 0], sizes = [2, 16], strides = [1, 1]} : vector<2x32xf32> to vector<2x16xf32>
    %382 = vector.extract_strided_slice %380 {offsets = [0, 16], sizes = [2, 16], strides = [1, 1]} : vector<2x32xf32> to vector<2x16xf32>
    %383 = vector.extract_strided_slice %370 {offsets = [0, 32], sizes = [2, 16], strides = [1, 1]} : vector<2x48xf32> to vector<2x16xf32>
    %384 = arith.addf %383, %28 : vector<2x16xf32>
    %385 = vector.extract_strided_slice %371 {offsets = [0, 32], sizes = [2, 16], strides = [1, 1]} : vector<2x48xf32> to vector<2x16xf32>
    %386 = arith.addf %385, %31 : vector<2x16xf32>
    %387 = arith.mulf %381, %386 : vector<2x16xf32>
    %388 = arith.addf %384, %387 : vector<2x16xf32>
    %389 = math.tanh %388 : vector<2x16xf32>
    %cst_100 = arith.constant 1.000000e+00 : f32
    %390 = vector.broadcast %cst_100 : f32 to vector<2x16xf32>
    %391 = arith.subf %390, %382 : vector<2x16xf32>
    %392 = arith.mulf %391, %389 : vector<2x16xf32>
    %393 = arith.mulf %382, %350 : vector<2x16xf32>
    %394 = arith.addf %392, %393 : vector<2x16xf32>
    %cst_101 = arith.constant dense<0.000000e+00> : vector<2x20xf32>
    %395 = tpu.matmul %394, %280, %cst_101 {dimension_numbers = #tpu.dot_dimension_numbers<[1], [0], [0], [1], [0, 0, 1, 1], [], []>} : vector<2x16xf32>, vector<16x20xf32>, vector<2x20xf32> -> vector<2x20xf32>
    %396 = vector.extract_strided_slice %395 {offsets = [0, 0], sizes = [2, 16], strides = [1, 1]} : vector<2x20xf32> to vector<2x16xf32>
    %397 = arith.addf %396, %279 : vector<2x16xf32>
    %cst_102 = arith.constant dense<0xFF800000> : vector<2xf32>
    %398 = vector.multi_reduction <maximumf>, %397, %cst_102 [1] : vector<2x16xf32> to vector<2xf32>
    %399 = vector.shape_cast %398 : vector<2xf32> to vector<2x1xf32>
    %400 = vector.broadcast %399 : vector<2x1xf32> to vector<2x16xf32>
    %401 = arith.subf %397, %400 : vector<2x16xf32>
    %402 = math.exp %401 : vector<2x16xf32>
    %cst_103 = arith.constant dense<0.000000e+00> : vector<2xf32>
    %403 = vector.multi_reduction <add>, %402, %cst_103 [1] : vector<2x16xf32> to vector<2xf32>
    %404 = vector.shape_cast %403 : vector<2xf32> to vector<2x1xf32>
    %cst_104 = arith.constant dense<0.000000e+00> : vector<2x4xf32>
    %405 = tpu.matmul %402, %252, %cst_104 {dimension_numbers = #tpu.dot_dimension_numbers<[1], [0], [0], [1], [0, 0, 1, 1], [], []>} : vector<2x16xf32>, vector<16x4xf32>, vector<2x4xf32> -> vector<2x4xf32>
    %cst_105 = arith.constant 1.000000e+00 : f32
    %406 = vector.broadcast %cst_105 : f32 to vector<2x1xf32>
    %407 = arith.divf %406, %404 : vector<2x1xf32>
    %408 = vector.broadcast %407 : vector<2x1xf32> to vector<2x4xf32>
    %409 = arith.mulf %405, %408 : vector<2x4xf32>
    %410 = vector.extract_strided_slice %395 {offsets = [0, 16], sizes = [2, 4], strides = [1, 1]} : vector<2x20xf32> to vector<2x4xf32>
    %411 = arith.addf %409, %410 : vector<2x4xf32>
    %412 = arith.addf %411, %39 : vector<2x4xf32>
    %c0_106 = arith.constant 0 : index
    %c8_107 = arith.constant 8 : index
    %413 = vector.load %arg15[%c0_106, %c8_107] : memref<2x32xf32, #tpu.memory_space<vmem>>, vector<2x4xf32>
    tpu.vector_store %arg15[%c0_106, %c8_107], %412 {strides = array<i32>} : memref<2x32xf32, #tpu.memory_space<vmem>>, vector<2x4xf32>,
    %cst_108 = arith.constant dense<0.000000e+00> : vector<2x48xf32>
    %414 = tpu.matmul %412, %5, %cst_108 {dimension_numbers = #tpu.dot_dimension_numbers<[1], [0], [0], [1], [0, 0, 1, 1], [], []>} : vector<2x4xf32>, vector<4x48xf32>, vector<2x48xf32> -> vector<2x48xf32>
    %cst_109 = arith.constant dense<0.000000e+00> : vector<2x48xf32>
    %415 = tpu.matmul %394, %6, %cst_109 {dimension_numbers = #tpu.dot_dimension_numbers<[1], [0], [0], [1], [0, 0, 1, 1], [], []>} : vector<2x16xf32>, vector<16x48xf32>, vector<2x48xf32> -> vector<2x48xf32>
    %416 = vector.extract_strided_slice %414 {offsets = [0, 0], sizes = [2, 32], strides = [1, 1]} : vector<2x48xf32> to vector<2x32xf32>
    %417 = vector.extract_strided_slice %415 {offsets = [0, 0], sizes = [2, 32], strides = [1, 1]} : vector<2x48xf32> to vector<2x32xf32>
    %418 = arith.addf %416, %417 : vector<2x32xf32>
    %419 = arith.addf %418, %25 : vector<2x32xf32>
    %420 = arith.negf %419 : vector<2x32xf32>
    %421 = math.exp %420 : vector<2x32xf32>
    %cst_110 = arith.constant 1.000000e+00 : f32
    %422 = vector.broadcast %cst_110 : f32 to vector<2x32xf32>
    %423 = arith.addf %422, %421 : vector<2x32xf32>
    %424 = arith.divf %422, %423 : vector<2x32xf32>
    %425 = vector.extract_strided_slice %424 {offsets = [0, 0], sizes = [2, 16], strides = [1, 1]} : vector<2x32xf32> to vector<2x16xf32>
    %426 = vector.extract_strided_slice %424 {offsets = [0, 16], sizes = [2, 16], strides = [1, 1]} : vector<2x32xf32> to vector<2x16xf32>
    %427 = vector.extract_strided_slice %414 {offsets = [0, 32], sizes = [2, 16], strides = [1, 1]} : vector<2x48xf32> to vector<2x16xf32>
    %428 = arith.addf %427, %28 : vector<2x16xf32>
    %429 = vector.extract_strided_slice %415 {offsets = [0, 32], sizes = [2, 16], strides = [1, 1]} : vector<2x48xf32> to vector<2x16xf32>
    %430 = arith.addf %429, %31 : vector<2x16xf32>
    %431 = arith.mulf %425, %430 : vector<2x16xf32>
    %432 = arith.addf %428, %431 : vector<2x16xf32>
    %433 = math.tanh %432 : vector<2x16xf32>
    %cst_111 = arith.constant 1.000000e+00 : f32
    %434 = vector.broadcast %cst_111 : f32 to vector<2x16xf32>
    %435 = arith.subf %434, %426 : vector<2x16xf32>
    %436 = arith.mulf %435, %433 : vector<2x16xf32>
    %437 = arith.mulf %426, %394 : vector<2x16xf32>
    %438 = arith.addf %436, %437 : vector<2x16xf32>
    %cst_112 = arith.constant dense<0.000000e+00> : vector<2x20xf32>
    %439 = tpu.matmul %438, %280, %cst_112 {dimension_numbers = #tpu.dot_dimension_numbers<[1], [0], [0], [1], [0, 0, 1, 1], [], []>} : vector<2x16xf32>, vector<16x20xf32>, vector<2x20xf32> -> vector<2x20xf32>
    %440 = vector.extract_strided_slice %439 {offsets = [0, 0], sizes = [2, 16], strides = [1, 1]} : vector<2x20xf32> to vector<2x16xf32>
    %441 = arith.addf %440, %279 : vector<2x16xf32>
    %cst_113 = arith.constant dense<0xFF800000> : vector<2xf32>
    %442 = vector.multi_reduction <maximumf>, %441, %cst_113 [1] : vector<2x16xf32> to vector<2xf32>
    %443 = vector.shape_cast %442 : vector<2xf32> to vector<2x1xf32>
    %444 = vector.broadcast %443 : vector<2x1xf32> to vector<2x16xf32>
    %445 = arith.subf %441, %444 : vector<2x16xf32>
    %446 = math.exp %445 : vector<2x16xf32>
    %cst_114 = arith.constant dense<0.000000e+00> : vector<2xf32>
    %447 = vector.multi_reduction <add>, %446, %cst_114 [1] : vector<2x16xf32> to vector<2xf32>
    %448 = vector.shape_cast %447 : vector<2xf32> to vector<2x1xf32>
    %cst_115 = arith.constant dense<0.000000e+00> : vector<2x4xf32>
    %449 = tpu.matmul %446, %252, %cst_115 {dimension_numbers = #tpu.dot_dimension_numbers<[1], [0], [0], [1], [0, 0, 1, 1], [], []>} : vector<2x16xf32>, vector<16x4xf32>, vector<2x4xf32> -> vector<2x4xf32>
    %cst_116 = arith.constant 1.000000e+00 : f32
    %450 = vector.broadcast %cst_116 : f32 to vector<2x1xf32>
    %451 = arith.divf %450, %448 : vector<2x1xf32>
    %452 = vector.broadcast %451 : vector<2x1xf32> to vector<2x4xf32>
    %453 = arith.mulf %449, %452 : vector<2x4xf32>
    %454 = vector.extract_strided_slice %439 {offsets = [0, 16], sizes = [2, 4], strides = [1, 1]} : vector<2x20xf32> to vector<2x4xf32>
    %455 = arith.addf %453, %454 : vector<2x4xf32>
    %456 = arith.addf %455, %39 : vector<2x4xf32>
    %c0_117 = arith.constant 0 : index
    %c12_118 = arith.constant 12 : index
    %457 = vector.load %arg15[%c0_117, %c12_118] : memref<2x32xf32, #tpu.memory_space<vmem>>, vector<2x4xf32>
    tpu.vector_store %arg15[%c0_117, %c12_118], %456 {strides = array<i32>} : memref<2x32xf32, #tpu.memory_space<vmem>>, vector<2x4xf32>,
    %cst_119 = arith.constant dense<0.000000e+00> : vector<2x48xf32>
    %458 = tpu.matmul %456, %5, %cst_119 {dimension_numbers = #tpu.dot_dimension_numbers<[1], [0], [0], [1], [0, 0, 1, 1], [], []>} : vector<2x4xf32>, vector<4x48xf32>, vector<2x48xf32> -> vector<2x48xf32>
    %cst_120 = arith.constant dense<0.000000e+00> : vector<2x48xf32>
    %459 = tpu.matmul %438, %6, %cst_120 {dimension_numbers = #tpu.dot_dimension_numbers<[1], [0], [0], [1], [0, 0, 1, 1], [], []>} : vector<2x16xf32>, vector<16x48xf32>, vector<2x48xf32> -> vector<2x48xf32>
    %460 = vector.extract_strided_slice %458 {offsets = [0, 0], sizes = [2, 32], strides = [1, 1]} : vector<2x48xf32> to vector<2x32xf32>
    %461 = vector.extract_strided_slice %459 {offsets = [0, 0], sizes = [2, 32], strides = [1, 1]} : vector<2x48xf32> to vector<2x32xf32>
    %462 = arith.addf %460, %461 : vector<2x32xf32>
    %463 = arith.addf %462, %25 : vector<2x32xf32>
    %464 = arith.negf %463 : vector<2x32xf32>
    %465 = math.exp %464 : vector<2x32xf32>
    %cst_121 = arith.constant 1.000000e+00 : f32
    %466 = vector.broadcast %cst_121 : f32 to vector<2x32xf32>
    %467 = arith.addf %466, %465 : vector<2x32xf32>
    %468 = arith.divf %466, %467 : vector<2x32xf32>
    %469 = vector.extract_strided_slice %468 {offsets = [0, 0], sizes = [2, 16], strides = [1, 1]} : vector<2x32xf32> to vector<2x16xf32>
    %470 = vector.extract_strided_slice %468 {offsets = [0, 16], sizes = [2, 16], strides = [1, 1]} : vector<2x32xf32> to vector<2x16xf32>
    %471 = vector.extract_strided_slice %458 {offsets = [0, 32], sizes = [2, 16], strides = [1, 1]} : vector<2x48xf32> to vector<2x16xf32>
    %472 = arith.addf %471, %28 : vector<2x16xf32>
    %473 = vector.extract_strided_slice %459 {offsets = [0, 32], sizes = [2, 16], strides = [1, 1]} : vector<2x48xf32> to vector<2x16xf32>
    %474 = arith.addf %473, %31 : vector<2x16xf32>
    %475 = arith.mulf %469, %474 : vector<2x16xf32>
    %476 = arith.addf %472, %475 : vector<2x16xf32>
    %477 = math.tanh %476 : vector<2x16xf32>
    %cst_122 = arith.constant 1.000000e+00 : f32
    %478 = vector.broadcast %cst_122 : f32 to vector<2x16xf32>
    %479 = arith.subf %478, %470 : vector<2x16xf32>
    %480 = arith.mulf %479, %477 : vector<2x16xf32>
    %481 = arith.mulf %470, %438 : vector<2x16xf32>
    %482 = arith.addf %480, %481 : vector<2x16xf32>
    %cst_123 = arith.constant dense<0.000000e+00> : vector<2x20xf32>
    %483 = tpu.matmul %482, %280, %cst_123 {dimension_numbers = #tpu.dot_dimension_numbers<[1], [0], [0], [1], [0, 0, 1, 1], [], []>} : vector<2x16xf32>, vector<16x20xf32>, vector<2x20xf32> -> vector<2x20xf32>
    %484 = vector.extract_strided_slice %483 {offsets = [0, 0], sizes = [2, 16], strides = [1, 1]} : vector<2x20xf32> to vector<2x16xf32>
    %485 = arith.addf %484, %279 : vector<2x16xf32>
    %cst_124 = arith.constant dense<0xFF800000> : vector<2xf32>
    %486 = vector.multi_reduction <maximumf>, %485, %cst_124 [1] : vector<2x16xf32> to vector<2xf32>
    %487 = vector.shape_cast %486 : vector<2xf32> to vector<2x1xf32>
    %488 = vector.broadcast %487 : vector<2x1xf32> to vector<2x16xf32>
    %489 = arith.subf %485, %488 : vector<2x16xf32>
    %490 = math.exp %489 : vector<2x16xf32>
    %cst_125 = arith.constant dense<0.000000e+00> : vector<2xf32>
    %491 = vector.multi_reduction <add>, %490, %cst_125 [1] : vector<2x16xf32> to vector<2xf32>
    %492 = vector.shape_cast %491 : vector<2xf32> to vector<2x1xf32>
    %cst_126 = arith.constant dense<0.000000e+00> : vector<2x4xf32>
    %493 = tpu.matmul %490, %252, %cst_126 {dimension_numbers = #tpu.dot_dimension_numbers<[1], [0], [0], [1], [0, 0, 1, 1], [], []>} : vector<2x16xf32>, vector<16x4xf32>, vector<2x4xf32> -> vector<2x4xf32>
    %cst_127 = arith.constant 1.000000e+00 : f32
    %494 = vector.broadcast %cst_127 : f32 to vector<2x1xf32>
    %495 = arith.divf %494, %492 : vector<2x1xf32>
    %496 = vector.broadcast %495 : vector<2x1xf32> to vector<2x4xf32>
    %497 = arith.mulf %493, %496 : vector<2x4xf32>
    %498 = vector.extract_strided_slice %483 {offsets = [0, 16], sizes = [2, 4], strides = [1, 1]} : vector<2x20xf32> to vector<2x4xf32>
    %499 = arith.addf %497, %498 : vector<2x4xf32>
    %500 = arith.addf %499, %39 : vector<2x4xf32>
    %c0_128 = arith.constant 0 : index
    %c16 = arith.constant 16 : index
    %501 = vector.load %arg15[%c0_128, %c16] : memref<2x32xf32, #tpu.memory_space<vmem>>, vector<2x4xf32>
    tpu.vector_store %arg15[%c0_128, %c16], %500 {strides = array<i32>} : memref<2x32xf32, #tpu.memory_space<vmem>>, vector<2x4xf32>,
    %cst_129 = arith.constant dense<0.000000e+00> : vector<2x48xf32>
    %502 = tpu.matmul %500, %5, %cst_129 {dimension_numbers = #tpu.dot_dimension_numbers<[1], [0], [0], [1], [0, 0, 1, 1], [], []>} : vector<2x4xf32>, vector<4x48xf32>, vector<2x48xf32> -> vector<2x48xf32>
    %cst_130 = arith.constant dense<0.000000e+00> : vector<2x48xf32>
    %503 = tpu.matmul %482, %6, %cst_130 {dimension_numbers = #tpu.dot_dimension_numbers<[1], [0], [0], [1], [0, 0, 1, 1], [], []>} : vector<2x16xf32>, vector<16x48xf32>, vector<2x48xf32> -> vector<2x48xf32>
    %504 = vector.extract_strided_slice %502 {offsets = [0, 0], sizes = [2, 32], strides = [1, 1]} : vector<2x48xf32> to vector<2x32xf32>
    %505 = vector.extract_strided_slice %503 {offsets = [0, 0], sizes = [2, 32], strides = [1, 1]} : vector<2x48xf32> to vector<2x32xf32>
    %506 = arith.addf %504, %505 : vector<2x32xf32>
    %507 = arith.addf %506, %25 : vector<2x32xf32>
    %508 = arith.negf %507 : vector<2x32xf32>
    %509 = math.exp %508 : vector<2x32xf32>
    %cst_131 = arith.constant 1.000000e+00 : f32
    %510 = vector.broadcast %cst_131 : f32 to vector<2x32xf32>
    %511 = arith.addf %510, %509 : vector<2x32xf32>
    %512 = arith.divf %510, %511 : vector<2x32xf32>
    %513 = vector.extract_strided_slice %512 {offsets = [0, 0], sizes = [2, 16], strides = [1, 1]} : vector<2x32xf32> to vector<2x16xf32>
    %514 = vector.extract_strided_slice %512 {offsets = [0, 16], sizes = [2, 16], strides = [1, 1]} : vector<2x32xf32> to vector<2x16xf32>
    %515 = vector.extract_strided_slice %502 {offsets = [0, 32], sizes = [2, 16], strides = [1, 1]} : vector<2x48xf32> to vector<2x16xf32>
    %516 = arith.addf %515, %28 : vector<2x16xf32>
    %517 = vector.extract_strided_slice %503 {offsets = [0, 32], sizes = [2, 16], strides = [1, 1]} : vector<2x48xf32> to vector<2x16xf32>
    %518 = arith.addf %517, %31 : vector<2x16xf32>
    %519 = arith.mulf %513, %518 : vector<2x16xf32>
    %520 = arith.addf %516, %519 : vector<2x16xf32>
    %521 = math.tanh %520 : vector<2x16xf32>
    %cst_132 = arith.constant 1.000000e+00 : f32
    %522 = vector.broadcast %cst_132 : f32 to vector<2x16xf32>
    %523 = arith.subf %522, %514 : vector<2x16xf32>
    %524 = arith.mulf %523, %521 : vector<2x16xf32>
    %525 = arith.mulf %514, %482 : vector<2x16xf32>
    %526 = arith.addf %524, %525 : vector<2x16xf32>
    %cst_133 = arith.constant dense<0.000000e+00> : vector<2x20xf32>
    %527 = tpu.matmul %526, %280, %cst_133 {dimension_numbers = #tpu.dot_dimension_numbers<[1], [0], [0], [1], [0, 0, 1, 1], [], []>} : vector<2x16xf32>, vector<16x20xf32>, vector<2x20xf32> -> vector<2x20xf32>
    %528 = vector.extract_strided_slice %527 {offsets = [0, 0], sizes = [2, 16], strides = [1, 1]} : vector<2x20xf32> to vector<2x16xf32>
    %529 = arith.addf %528, %279 : vector<2x16xf32>
    %cst_134 = arith.constant dense<0xFF800000> : vector<2xf32>
    %530 = vector.multi_reduction <maximumf>, %529, %cst_134 [1] : vector<2x16xf32> to vector<2xf32>
    %531 = vector.shape_cast %530 : vector<2xf32> to vector<2x1xf32>
    %532 = vector.broadcast %531 : vector<2x1xf32> to vector<2x16xf32>
    %533 = arith.subf %529, %532 : vector<2x16xf32>
    %534 = math.exp %533 : vector<2x16xf32>
    %cst_135 = arith.constant dense<0.000000e+00> : vector<2xf32>
    %535 = vector.multi_reduction <add>, %534, %cst_135 [1] : vector<2x16xf32> to vector<2xf32>
    %536 = vector.shape_cast %535 : vector<2xf32> to vector<2x1xf32>
    %cst_136 = arith.constant dense<0.000000e+00> : vector<2x4xf32>
    %537 = tpu.matmul %534, %252, %cst_136 {dimension_numbers = #tpu.dot_dimension_numbers<[1], [0], [0], [1], [0, 0, 1, 1], [], []>} : vector<2x16xf32>, vector<16x4xf32>, vector<2x4xf32> -> vector<2x4xf32>
    %cst_137 = arith.constant 1.000000e+00 : f32
    %538 = vector.broadcast %cst_137 : f32 to vector<2x1xf32>
    %539 = arith.divf %538, %536 : vector<2x1xf32>
    %540 = vector.broadcast %539 : vector<2x1xf32> to vector<2x4xf32>
    %541 = arith.mulf %537, %540 : vector<2x4xf32>
    %542 = vector.extract_strided_slice %527 {offsets = [0, 16], sizes = [2, 4], strides = [1, 1]} : vector<2x20xf32> to vector<2x4xf32>
    %543 = arith.addf %541, %542 : vector<2x4xf32>
    %544 = arith.addf %543, %39 : vector<2x4xf32>
    %c0_138 = arith.constant 0 : index
    %c20 = arith.constant 20 : index
    %545 = vector.load %arg15[%c0_138, %c20] : memref<2x32xf32, #tpu.memory_space<vmem>>, vector<2x4xf32>
    tpu.vector_store %arg15[%c0_138, %c20], %544 {strides = array<i32>} : memref<2x32xf32, #tpu.memory_space<vmem>>, vector<2x4xf32>,
    %cst_139 = arith.constant dense<0.000000e+00> : vector<2x48xf32>
    %546 = tpu.matmul %544, %5, %cst_139 {dimension_numbers = #tpu.dot_dimension_numbers<[1], [0], [0], [1], [0, 0, 1, 1], [], []>} : vector<2x4xf32>, vector<4x48xf32>, vector<2x48xf32> -> vector<2x48xf32>
    %cst_140 = arith.constant dense<0.000000e+00> : vector<2x48xf32>
    %547 = tpu.matmul %526, %6, %cst_140 {dimension_numbers = #tpu.dot_dimension_numbers<[1], [0], [0], [1], [0, 0, 1, 1], [], []>} : vector<2x16xf32>, vector<16x48xf32>, vector<2x48xf32> -> vector<2x48xf32>
    %548 = vector.extract_strided_slice %546 {offsets = [0, 0], sizes = [2, 32], strides = [1, 1]} : vector<2x48xf32> to vector<2x32xf32>
    %549 = vector.extract_strided_slice %547 {offsets = [0, 0], sizes = [2, 32], strides = [1, 1]} : vector<2x48xf32> to vector<2x32xf32>
    %550 = arith.addf %548, %549 : vector<2x32xf32>
    %551 = arith.addf %550, %25 : vector<2x32xf32>
    %552 = arith.negf %551 : vector<2x32xf32>
    %553 = math.exp %552 : vector<2x32xf32>
    %cst_141 = arith.constant 1.000000e+00 : f32
    %554 = vector.broadcast %cst_141 : f32 to vector<2x32xf32>
    %555 = arith.addf %554, %553 : vector<2x32xf32>
    %556 = arith.divf %554, %555 : vector<2x32xf32>
    %557 = vector.extract_strided_slice %556 {offsets = [0, 0], sizes = [2, 16], strides = [1, 1]} : vector<2x32xf32> to vector<2x16xf32>
    %558 = vector.extract_strided_slice %556 {offsets = [0, 16], sizes = [2, 16], strides = [1, 1]} : vector<2x32xf32> to vector<2x16xf32>
    %559 = vector.extract_strided_slice %546 {offsets = [0, 32], sizes = [2, 16], strides = [1, 1]} : vector<2x48xf32> to vector<2x16xf32>
    %560 = arith.addf %559, %28 : vector<2x16xf32>
    %561 = vector.extract_strided_slice %547 {offsets = [0, 32], sizes = [2, 16], strides = [1, 1]} : vector<2x48xf32> to vector<2x16xf32>
    %562 = arith.addf %561, %31 : vector<2x16xf32>
    %563 = arith.mulf %557, %562 : vector<2x16xf32>
    %564 = arith.addf %560, %563 : vector<2x16xf32>
    %565 = math.tanh %564 : vector<2x16xf32>
    %cst_142 = arith.constant 1.000000e+00 : f32
    %566 = vector.broadcast %cst_142 : f32 to vector<2x16xf32>
    %567 = arith.subf %566, %558 : vector<2x16xf32>
    %568 = arith.mulf %567, %565 : vector<2x16xf32>
    %569 = arith.mulf %558, %526 : vector<2x16xf32>
    %570 = arith.addf %568, %569 : vector<2x16xf32>
    %cst_143 = arith.constant dense<0.000000e+00> : vector<2x20xf32>
    %571 = tpu.matmul %570, %280, %cst_143 {dimension_numbers = #tpu.dot_dimension_numbers<[1], [0], [0], [1], [0, 0, 1, 1], [], []>} : vector<2x16xf32>, vector<16x20xf32>, vector<2x20xf32> -> vector<2x20xf32>
    %572 = vector.extract_strided_slice %571 {offsets = [0, 0], sizes = [2, 16], strides = [1, 1]} : vector<2x20xf32> to vector<2x16xf32>
    %573 = arith.addf %572, %279 : vector<2x16xf32>
    %cst_144 = arith.constant dense<0xFF800000> : vector<2xf32>
    %574 = vector.multi_reduction <maximumf>, %573, %cst_144 [1] : vector<2x16xf32> to vector<2xf32>
    %575 = vector.shape_cast %574 : vector<2xf32> to vector<2x1xf32>
    %576 = vector.broadcast %575 : vector<2x1xf32> to vector<2x16xf32>
    %577 = arith.subf %573, %576 : vector<2x16xf32>
    %578 = math.exp %577 : vector<2x16xf32>
    %cst_145 = arith.constant dense<0.000000e+00> : vector<2xf32>
    %579 = vector.multi_reduction <add>, %578, %cst_145 [1] : vector<2x16xf32> to vector<2xf32>
    %580 = vector.shape_cast %579 : vector<2xf32> to vector<2x1xf32>
    %cst_146 = arith.constant dense<0.000000e+00> : vector<2x4xf32>
    %581 = tpu.matmul %578, %252, %cst_146 {dimension_numbers = #tpu.dot_dimension_numbers<[1], [0], [0], [1], [0, 0, 1, 1], [], []>} : vector<2x16xf32>, vector<16x4xf32>, vector<2x4xf32> -> vector<2x4xf32>
    %cst_147 = arith.constant 1.000000e+00 : f32
    %582 = vector.broadcast %cst_147 : f32 to vector<2x1xf32>
    %583 = arith.divf %582, %580 : vector<2x1xf32>
    %584 = vector.broadcast %583 : vector<2x1xf32> to vector<2x4xf32>
    %585 = arith.mulf %581, %584 : vector<2x4xf32>
    %586 = vector.extract_strided_slice %571 {offsets = [0, 16], sizes = [2, 4], strides = [1, 1]} : vector<2x20xf32> to vector<2x4xf32>
    %587 = arith.addf %585, %586 : vector<2x4xf32>
    %588 = arith.addf %587, %39 : vector<2x4xf32>
    %c0_148 = arith.constant 0 : index
    %c24 = arith.constant 24 : index
    %589 = vector.load %arg15[%c0_148, %c24] : memref<2x32xf32, #tpu.memory_space<vmem>>, vector<2x4xf32>
    tpu.vector_store %arg15[%c0_148, %c24], %588 {strides = array<i32>} : memref<2x32xf32, #tpu.memory_space<vmem>>, vector<2x4xf32>,
    %cst_149 = arith.constant dense<0.000000e+00> : vector<2x48xf32>
    %590 = tpu.matmul %588, %5, %cst_149 {dimension_numbers = #tpu.dot_dimension_numbers<[1], [0], [0], [1], [0, 0, 1, 1], [], []>} : vector<2x4xf32>, vector<4x48xf32>, vector<2x48xf32> -> vector<2x48xf32>
    %cst_150 = arith.constant dense<0.000000e+00> : vector<2x48xf32>
    %591 = tpu.matmul %570, %6, %cst_150 {dimension_numbers = #tpu.dot_dimension_numbers<[1], [0], [0], [1], [0, 0, 1, 1], [], []>} : vector<2x16xf32>, vector<16x48xf32>, vector<2x48xf32> -> vector<2x48xf32>
    %592 = vector.extract_strided_slice %590 {offsets = [0, 0], sizes = [2, 32], strides = [1, 1]} : vector<2x48xf32> to vector<2x32xf32>
    %593 = vector.extract_strided_slice %591 {offsets = [0, 0], sizes = [2, 32], strides = [1, 1]} : vector<2x48xf32> to vector<2x32xf32>
    %594 = arith.addf %592, %593 : vector<2x32xf32>
    %595 = arith.addf %594, %25 : vector<2x32xf32>
    %596 = arith.negf %595 : vector<2x32xf32>
    %597 = math.exp %596 : vector<2x32xf32>
    %cst_151 = arith.constant 1.000000e+00 : f32
    %598 = vector.broadcast %cst_151 : f32 to vector<2x32xf32>
    %599 = arith.addf %598, %597 : vector<2x32xf32>
    %600 = arith.divf %598, %599 : vector<2x32xf32>
    %601 = vector.extract_strided_slice %600 {offsets = [0, 0], sizes = [2, 16], strides = [1, 1]} : vector<2x32xf32> to vector<2x16xf32>
    %602 = vector.extract_strided_slice %600 {offsets = [0, 16], sizes = [2, 16], strides = [1, 1]} : vector<2x32xf32> to vector<2x16xf32>
    %603 = vector.extract_strided_slice %590 {offsets = [0, 32], sizes = [2, 16], strides = [1, 1]} : vector<2x48xf32> to vector<2x16xf32>
    %604 = arith.addf %603, %28 : vector<2x16xf32>
    %605 = vector.extract_strided_slice %591 {offsets = [0, 32], sizes = [2, 16], strides = [1, 1]} : vector<2x48xf32> to vector<2x16xf32>
    %606 = arith.addf %605, %31 : vector<2x16xf32>
    %607 = arith.mulf %601, %606 : vector<2x16xf32>
    %608 = arith.addf %604, %607 : vector<2x16xf32>
    %609 = math.tanh %608 : vector<2x16xf32>
    %cst_152 = arith.constant 1.000000e+00 : f32
    %610 = vector.broadcast %cst_152 : f32 to vector<2x16xf32>
    %611 = arith.subf %610, %602 : vector<2x16xf32>
    %612 = arith.mulf %611, %609 : vector<2x16xf32>
    %613 = arith.mulf %602, %570 : vector<2x16xf32>
    %614 = arith.addf %612, %613 : vector<2x16xf32>
    %cst_153 = arith.constant dense<0.000000e+00> : vector<2x20xf32>
    %615 = tpu.matmul %614, %280, %cst_153 {dimension_numbers = #tpu.dot_dimension_numbers<[1], [0], [0], [1], [0, 0, 1, 1], [], []>} : vector<2x16xf32>, vector<16x20xf32>, vector<2x20xf32> -> vector<2x20xf32>
    %616 = vector.extract_strided_slice %615 {offsets = [0, 0], sizes = [2, 16], strides = [1, 1]} : vector<2x20xf32> to vector<2x16xf32>
    %617 = arith.addf %616, %279 : vector<2x16xf32>
    %cst_154 = arith.constant dense<0xFF800000> : vector<2xf32>
    %618 = vector.multi_reduction <maximumf>, %617, %cst_154 [1] : vector<2x16xf32> to vector<2xf32>
    %619 = vector.shape_cast %618 : vector<2xf32> to vector<2x1xf32>
    %620 = vector.broadcast %619 : vector<2x1xf32> to vector<2x16xf32>
    %621 = arith.subf %617, %620 : vector<2x16xf32>
    %622 = math.exp %621 : vector<2x16xf32>
    %cst_155 = arith.constant dense<0.000000e+00> : vector<2xf32>
    %623 = vector.multi_reduction <add>, %622, %cst_155 [1] : vector<2x16xf32> to vector<2xf32>
    %624 = vector.shape_cast %623 : vector<2xf32> to vector<2x1xf32>
    %cst_156 = arith.constant dense<0.000000e+00> : vector<2x4xf32>
    %625 = tpu.matmul %622, %252, %cst_156 {dimension_numbers = #tpu.dot_dimension_numbers<[1], [0], [0], [1], [0, 0, 1, 1], [], []>} : vector<2x16xf32>, vector<16x4xf32>, vector<2x4xf32> -> vector<2x4xf32>
    %cst_157 = arith.constant 1.000000e+00 : f32
    %626 = vector.broadcast %cst_157 : f32 to vector<2x1xf32>
    %627 = arith.divf %626, %624 : vector<2x1xf32>
    %628 = vector.broadcast %627 : vector<2x1xf32> to vector<2x4xf32>
    %629 = arith.mulf %625, %628 : vector<2x4xf32>
    %630 = vector.extract_strided_slice %615 {offsets = [0, 16], sizes = [2, 4], strides = [1, 1]} : vector<2x20xf32> to vector<2x4xf32>
    %631 = arith.addf %629, %630 : vector<2x4xf32>
    %632 = arith.addf %631, %39 : vector<2x4xf32>
    %c0_158 = arith.constant 0 : index
    %c28 = arith.constant 28 : index
    %633 = vector.load %arg15[%c0_158, %c28] : memref<2x32xf32, #tpu.memory_space<vmem>>, vector<2x4xf32>
    tpu.vector_store %arg15[%c0_158, %c28], %632 {strides = array<i32>} : memref<2x32xf32, #tpu.memory_space<vmem>>, vector<2x4xf32>,
    return
  }
}

</mosaic_0001>

<llo_original>
// kernel: tpu_custom_call.1
$region0: #{tpu_custom_call.1}
  #allocation0 [shape = 'u32[]', space=smem, size = 0x4, offset = 0x4, fixed_abs, tag = 'smem constant byte address 0x4 - core index']
  #allocation1 [shape = 'u32[144,128]{1,0:T(1,128)}', space=vmem, size = 0x12000, scoped, tag = 'internal scratch']
  #allocation2 [shape = 'f32[16,16]{1,0:T(8,128)}', space=vmem, size = 0x2000, scoped, tag = 'scratch operand']
  %s0 = inlined_call_operand.vmem [shape: f32[32,4], index: 0, kind: input, shape index: {}]
  %s1 = inlined_call_operand.vmem [shape: f32[4,48], index: 1, kind: input, shape index: {}]
  %s2 = inlined_call_operand.vmem [shape: f32[16,48], index: 2, kind: input, shape index: {}]
  %s3 = inlined_call_operand.vmem [shape: f32[1,48], index: 3, kind: input, shape index: {}]
  %s4 = inlined_call_operand.vmem [shape: f32[1,48], index: 4, kind: input, shape index: {}]
  %s5 = inlined_call_operand.vmem [shape: f32[4,48], index: 5, kind: input, shape index: {}]
  %s6 = inlined_call_operand.vmem [shape: f32[16,48], index: 6, kind: input, shape index: {}]
  %s7 = inlined_call_operand.vmem [shape: f32[1,48], index: 7, kind: input, shape index: {}]
  %s8 = inlined_call_operand.vmem [shape: f32[1,48], index: 8, kind: input, shape index: {}]
  %s9 = inlined_call_operand.vmem [shape: f32[16,16], index: 9, kind: input, shape index: {}]
  %s10 = inlined_call_operand.vmem [shape: f32[1,16], index: 10, kind: input, shape index: {}]
  %s11 = inlined_call_operand.vmem [shape: f32[16,16], index: 11, kind: input, shape index: {}]
  %s12 = inlined_call_operand.vmem [shape: f32[1,16], index: 12, kind: input, shape index: {}]
  %s13 = inlined_call_operand.vmem [shape: f32[32,4], index: 13, kind: input, shape index: {}]
  %s14 = inlined_call_operand.vmem [shape: f32[1,4], index: 14, kind: input, shape index: {}]
  %s15 = inlined_call_operand.hbm [shape: f32[2,32], index: 15, kind: output, shape index: {}]
  %s16 = sld [smem:[#allocation0]]
  $region70: #{tpu_custom_call.1} parent=0
    _
  %s18 = ssub.s32 1, %s16
  %s19 = scalar_select 0, %s18, %s16
  $region1: #{tpu_custom_call.1} parent=0
    #allocation3 [shape = 'u8[1024]{0}', space=vmem, size = 0x400, scoped, tag = 'output window, operand 0, single buffered']
    #allocation4 [shape = 's32[1]{0}', space=sflag, size = 0x4, scoped, tag = 'scoped memory for tpu_custom_call.1']
    %20 = vsyncpa [#allocation4], 0
    // Predicated region
    $region2: #{tpu_custom_call.1} parent=1 // pred_check
      _
    $region3: #{tpu_custom_call.1} parent=1 // pred_check_branch
      %22 = sbr.rel (0) target = $region5
    $region4: #{tpu_custom_call.1} parent=1 // pred_region
      _
    $region5: #{tpu_custom_call.1} parent=1 // pred_fallthru
      _
    // Predicated region
    $region6: #{tpu_custom_call.1} parent=1 // pred_check
      _
    $region7: #{tpu_custom_call.1} parent=1 // pred_check_branch
      %24 = sbr.rel (0) target = $region9
    $region8: #{tpu_custom_call.1} parent=1 // pred_region
      _
    $region9: #{tpu_custom_call.1} parent=1 // pred_fallthru
      _
    // Predicated region
    $region10: #{tpu_custom_call.1} parent=1 // pred_check
      _
    $region11: #{tpu_custom_call.1} parent=1 // pred_check_branch
      %26 = sbr.rel (0) target = $region13
    $region12: #{tpu_custom_call.1} parent=1 // pred_region
      _
    $region13: #{tpu_custom_call.1} parent=1 // pred_fallthru
      _
    // Predicated region
    $region14: #{tpu_custom_call.1} parent=1 // pred_check
      _
    $region15: #{tpu_custom_call.1} parent=1 // pred_check_branch
      %28 = sbr.rel (0) target = $region17
    $region16: #{tpu_custom_call.1} parent=1 // pred_region
      _
    $region17: #{tpu_custom_call.1} parent=1 // pred_fallthru
      _
    // Predicated region
    $region18: #{tpu_custom_call.1} parent=1 // pred_check
      _
    $region19: #{tpu_custom_call.1} parent=1 // pred_check_branch
      %30 = sbr.rel (0) target = $region21
    $region20: #{tpu_custom_call.1} parent=1 // pred_region
      _
    $region21: #{tpu_custom_call.1} parent=1 // pred_fallthru
      _
    // Predicated region
    $region22: #{tpu_custom_call.1} parent=1 // pred_check
      _
    $region23: #{tpu_custom_call.1} parent=1 // pred_check_branch
      %32 = sbr.rel (0) target = $region25
    $region24: #{tpu_custom_call.1} parent=1 // pred_region
      _
    $region25: #{tpu_custom_call.1} parent=1 // pred_fallthru
      _
    // Predicated region
    $region26: #{tpu_custom_call.1} parent=1 // pred_check
      _
    $region27: #{tpu_custom_call.1} parent=1 // pred_check_branch
      %34 = sbr.rel (0) target = $region29
    $region28: #{tpu_custom_call.1} parent=1 // pred_region
      _
    $region29: #{tpu_custom_call.1} parent=1 // pred_fallthru
      _
    // Predicated region
    $region30: #{tpu_custom_call.1} parent=1 // pred_check
      _
    $region31: #{tpu_custom_call.1} parent=1 // pred_check_branch
      %36 = sbr.rel (0) target = $region33
    $region32: #{tpu_custom_call.1} parent=1 // pred_region
      _
    $region33: #{tpu_custom_call.1} parent=1 // pred_fallthru
      _
    // Predicated region
    $region34: #{tpu_custom_call.1} parent=1 // pred_check
      _
    $region35: #{tpu_custom_call.1} parent=1 // pred_check_branch
      %38 = sbr.rel (0) target = $region37
    $region36: #{tpu_custom_call.1} parent=1 // pred_region
      _
    $region37: #{tpu_custom_call.1} parent=1 // pred_fallthru
      _
    // Predicated region
    $region38: #{tpu_custom_call.1} parent=1 // pred_check
      _
    $region39: #{tpu_custom_call.1} parent=1 // pred_check_branch
      %40 = sbr.rel (0) target = $region41
    $region40: #{tpu_custom_call.1} parent=1 // pred_region
      _
    $region41: #{tpu_custom_call.1} parent=1 // pred_fallthru
      _
    // Predicated region
    $region42: #{tpu_custom_call.1} parent=1 // pred_check
      _
    $region43: #{tpu_custom_call.1} parent=1 // pred_check_branch
      %42 = sbr.rel (0) target = $region45
    $region44: #{tpu_custom_call.1} parent=1 // pred_region
      _
    $region45: #{tpu_custom_call.1} parent=1 // pred_fallthru
      _
    // Predicated region
    $region46: #{tpu_custom_call.1} parent=1 // pred_check
      _
    $region47: #{tpu_custom_call.1} parent=1 // pred_check_branch
      %44 = sbr.rel (0) target = $region49
    $region48: #{tpu_custom_call.1} parent=1 // pred_region
      _
    $region49: #{tpu_custom_call.1} parent=1 // pred_fallthru
      _
    // Predicated region
    $region50: #{tpu_custom_call.1} parent=1 // pred_check
      _
    $region51: #{tpu_custom_call.1} parent=1 // pred_check_branch
      %46 = sbr.rel (0) target = $region53
    $region52: #{tpu_custom_call.1} parent=1 // pred_region
      _
    $region53: #{tpu_custom_call.1} parent=1 // pred_fallthru
      _
    // Predicated region
    $region54: #{tpu_custom_call.1} parent=1 // pred_check
      _
    $region55: #{tpu_custom_call.1} parent=1 // pred_check_branch
      %48 = sbr.rel (0) target = $region57
    $region56: #{tpu_custom_call.1} parent=1 // pred_region
      _
    $region57: #{tpu_custom_call.1} parent=1 // pred_fallthru
      _
    // Predicated region
    $region58: #{tpu_custom_call.1} parent=1 // pred_check
      _
    $region59: #{tpu_custom_call.1} parent=1 // pred_check_branch
      %50 = sbr.rel (0) target = $region61
    $region60: #{tpu_custom_call.1} parent=1 // pred_region
      _
    $region61: #{tpu_custom_call.1} parent=1 // pred_fallthru
      _
    %v51 = vld [vmem:[%s0] sm:$0xff]
    %v52 = vld [vmem:[%s0 + $0x8] sm:$0xff]
    %v53 = vld [vmem:[%s1] sm:$0xf]
    %v54 = vld [vmem:[%s2] sm:$0xff]
    %v55 = vld [vmem:[%s2 + $0x8] sm:$0xff]
    %v56 = vld [vmem:[%s3] sm:$0x1]
    %v57 = vld [vmem:[%s4] sm:$0x1]
    %v58 = vld [vmem:[%s5] sm:$0xf]
    %v59 = vld [vmem:[%s6] sm:$0xff]
    %v60 = vld [vmem:[%s6 + $0x8] sm:$0xff]
    %v61 = vld [vmem:[%s7] sm:$0x1]
    %v62 = vld [vmem:[%s8] sm:$0x1]
    %v63 = vld [vmem:[%s9] sm:$0xff]
    %v64 = vld [vmem:[%s9 + $0x8] sm:$0xff]
    %v65 = vld [vmem:[%s10] sm:$0x1]
    %v66 = vld [vmem:[%s11] sm:$0xff]
    %v67 = vld [vmem:[%s11 + $0x8] sm:$0xff]
    %v68 = vld [vmem:[%s12] sm:$0x1]
    %v69 = vld [vmem:[%s13] sm:$0xff]
    %v70 = vld [vmem:[%s13 + $0x8] sm:$0xff]
    %v71 = vld [vmem:[%s13 + $0x10] sm:$0xff]
    %v72 = vld [vmem:[%s13 + $0x18] sm:$0xff]
    %v73 = vld [vmem:[%s14] sm:$0x1]
    %v75 = vlaneseq
    %v76 = vshrl.u32 %v75, 7
    %v77 = vsub.s32 0, %v76
    %v78 = vrot.slane %v57, %v77
    %v80 = vadd.f32 %v61, %v62
    %v82 = vlaneseq
    %v83 = vshrl.u32 %v82, 7
    %v84 = vsub.s32 0, %v83
    %v85 = vrot.slane %v80, %v84
    %v88 = vlaneseq
    %v89 = vshrl.u32 %v88, 7
    %v90 = vsub.s32 0, %v89
    %v91 = vrot.slane %v61, %v90
    %v94 = vlaneseq
    %v95 = vshrl.u32 %v94, 7
    %v96 = vsub.s32 0, %v95
    %v97 = vrot.slane %v62, %v96
    %v99 = vmul.f32 %v63, 0.25
    %v100 = vmul.f32 %v64, 0.25
    %v101 = vmul.f32 %v65, 0.25
    %v103 = vlaneseq
    %v104 = vshrl.u32 %v103, 7
    %v105 = vsub.s32 0, %v104
    %v106 = vrot.slane %v73, %v105
    %v109 = vlaneseq
    %v110 = vshrl.u32 %v109, 7
    %v111 = vsub.s32 0, %v110
    %v112 = vrot.slane %v56, %v111
    %vm114 = vcmask 31744
    %v116 = vsel %vm114, %v51, 0
    %v119 = vsel %vm114, %v52, 0
    %vm121 = vcmask 1043456
    %v123 = vsel %vm121, %v53, 0
    %125 = vmatprep.subr.mxu0 0.0
    %126 = vmatpush1.msra.mxu0 %v123
    %127 = vmatprep.subr.mxu0 0.0
    %128 = vmatpush1.msra.mxu0 0.0
    %129 = vmatprep.subr.mxu0 0.0
    %130 = vmatpush1.msra.mxu0 0.0
    %131 = vmatprep.subr.mxu0 0.0
    %132 = vmatpush1.msra.mxu0 0.0
    %133 = vmatprep.subr.mxu0 0.0
    %134 = vmatpush1.msra.mxu0 0.0
    %135 = vmatprep.subr.mxu0 0.0
    %136 = vmatpush1.msra.mxu0 0.0
    %137 = vmatprep.subr.mxu0 0.0
    %138 = vmatpush1.msra.mxu0 0.0
    %139 = vmatprep.subr.mxu0 0.0
    %140 = vmatpush1.msra.mxu0 0.0
    %141 = vmatprep.subr.mxu0 0.0
    %142 = vmatpush1.msra.mxu0 0.0
    %143 = vmatprep.subr.mxu0 0.0
    %144 = vmatpush1.msra.mxu0 0.0
    %145 = vmatprep.subr.mxu0 0.0
    %146 = vmatpush1.msra.mxu0 0.0
    %147 = vmatprep.subr.mxu0 0.0
    %148 = vmatpush1.msra.mxu0 0.0
    %149 = vmatprep.subr.mxu0 0.0
    %150 = vmatpush1.msra.mxu0 0.0
    %151 = vmatprep.subr.mxu0 0.0
    %152 = vmatpush1.msra.mxu0 0.0
    %153 = vmatprep.subr.mxu0 0.0
    %154 = vmatpush1.msra.mxu0 0.0
    %155 = vmatprep.subr.mxu0 0.0
    %156 = vmatpush1.msra.mxu0 0.0
    %157 = vmatprep.subr.mxu0 0.0
    %158 = vmatpush1.msra.mxu0 0.0
    %159 = vmatprep.subr.mxu0 0.0
    %160 = vmatpush1.msra.mxu0 0.0
    %161 = vmatprep.subr.mxu0 0.0
    %162 = vmatpush1.msra.mxu0 0.0
    %163 = vmatprep.subr.mxu0 0.0
    %164 = vmatpush1.msra.mxu0 0.0
    %165 = vmatprep.subr.mxu0 0.0
    %166 = vmatpush1.msra.mxu0 0.0
    %167 = vmatprep.subr.mxu0 0.0
    %168 = vmatpush1.msra.mxu0 0.0
    %169 = vmatprep.subr.mxu0 0.0
    %170 = vmatpush1.msra.mxu0 0.0
    %171 = vmatprep.subr.mxu0 0.0
    %172 = vmatpush1.msra.mxu0 0.0
    %173 = vmatprep.subr.mxu0 0.0
    %174 = vmatpush1.msra.mxu0 0.0
    %175 = vmatprep.subr.mxu0 0.0
    %176 = vmatpush1.msra.mxu0 0.0
    %177 = vmatprep.subr.mxu0 0.0
    %178 = vmatpush1.msra.mxu0 0.0
    %179 = vmatprep.subr.mxu0 0.0
    %180 = vmatpush1.msra.mxu0 0.0
    %181 = vmatprep.subr.mxu0 0.0
    %182 = vmatpush1.msra.mxu0 0.0
    %183 = vmatprep.subr.mxu0 0.0
    %184 = vmatpush1.msra.mxu0 0.0
    %185 = vmatprep.subr.mxu0 0.0
    %186 = vmatpush1.msra.mxu0 0.0
    %187 = vmatprep.subr.mxu0 0.0
    %188 = vmatpush1.msra.mxu0 0.0
    %189 = vmatprep.mubr.f32.mxu0 0.0
    %190 = vmatmul.mubr.f32.gmra.mrb[0].mxu0 %v116
    %v191 = vpop.f32.mrb[0].mxu0
    %v192 = vadd.f32 %v112, %v191
    %v193 = vpop.f32.mrb[0].mxu0
    %194 = vmatprep.mubr.f32.mxu0 0.0
    %195 = vmatmul.mubr.f32.gmra.mrb[0].mxu0 %v119
    %v196 = vpop.f32.mrb[0].mxu0
    %v197 = vadd.f32 %v112, %v196
    %v198 = vpop.f32.mrb[0].mxu0
    %199 = vdwg.mxu0
    %vm200 = vcmask 130048
    %v202 = vsel %vm200, 0.0, 0
    %204 = vmatprep.subr.mxu0 0.0
    %205 = vmatpush1.msra.mxu0 %v54
    %206 = vmatprep.subr.mxu0 0.0
    %207 = vmatpush1.msra.mxu0 %v55
    %208 = vmatprep.subr.mxu0 0.0
    %209 = vmatpush1.msra.mxu0 0.0
    %210 = vmatprep.subr.mxu0 0.0
    %211 = vmatpush1.msra.mxu0 0.0
    %212 = vmatprep.subr.mxu0 0.0
    %213 = vmatpush1.msra.mxu0 0.0
    %214 = vmatprep.subr.mxu0 0.0
    %215 = vmatpush1.msra.mxu0 0.0
    %216 = vmatprep.subr.mxu0 0.0
    %217 = vmatpush1.msra.mxu0 0.0
    %218 = vmatprep.subr.mxu0 0.0
    %219 = vmatpush1.msra.mxu0 0.0
    %220 = vmatprep.subr.mxu0 0.0
    %221 = vmatpush1.msra.mxu0 0.0
    %222 = vmatprep.subr.mxu0 0.0
    %223 = vmatpush1.msra.mxu0 0.0
    %224 = vmatprep.subr.mxu0 0.0
    %225 = vmatpush1.msra.mxu0 0.0
    %226 = vmatprep.subr.mxu0 0.0
    %227 = vmatpush1.msra.mxu0 0.0
    %228 = vmatprep.subr.mxu0 0.0
    %229 = vmatpush1.msra.mxu0 0.0
    %230 = vmatprep.subr.mxu0 0.0
    %231 = vmatpush1.msra.mxu0 0.0
    %232 = vmatprep.subr.mxu0 0.0
    %233 = vmatpush1.msra.mxu0 0.0
    %234 = vmatprep.subr.mxu0 0.0
    %235 = vmatpush1.msra.mxu0 0.0
    %236 = vmatprep.subr.mxu0 0.0
    %237 = vmatpush1.msra.mxu0 0.0
    %238 = vmatprep.subr.mxu0 0.0
    %239 = vmatpush1.msra.mxu0 0.0
    %240 = vmatprep.subr.mxu0 0.0
    %241 = vmatpush1.msra.mxu0 0.0
    %242 = vmatprep.subr.mxu0 0.0
    %243 = vmatpush1.msra.mxu0 0.0
    %244 = vmatprep.subr.mxu0 0.0
    %245 = vmatpush1.msra.mxu0 0.0
    %246 = vmatprep.subr.mxu0 0.0
    %247 = vmatpush1.msra.mxu0 0.0
    %248 = vmatprep.subr.mxu0 0.0
    %249 = vmatpush1.msra.mxu0 0.0
    %250 = vmatprep.subr.mxu0 0.0
    %251 = vmatpush1.msra.mxu0 0.0
    %252 = vmatprep.subr.mxu0 0.0
    %253 = vmatpush1.msra.mxu0 0.0
    %254 = vmatprep.subr.mxu0 0.0
    %255 = vmatpush1.msra.mxu0 0.0
    %256 = vmatprep.subr.mxu0 0.0
    %257 = vmatpush1.msra.mxu0 0.0
    %258 = vmatprep.subr.mxu0 0.0
    %259 = vmatpush1.msra.mxu0 0.0
    %260 = vmatprep.subr.mxu0 0.0
    %261 = vmatpush1.msra.mxu0 0.0
    %262 = vmatprep.subr.mxu0 0.0
    %263 = vmatpush1.msra.mxu0 0.0
    %264 = vmatprep.subr.mxu0 0.0
    %265 = vmatpush1.msra.mxu0 0.0
    %266 = vmatprep.subr.mxu0 0.0
    %267 = vmatpush1.msra.mxu0 0.0
    %268 = vmatprep.mubr.f32.mxu0 0.0
    %269 = vmatmul.mubr.f32.gmra.mrb[0].mxu0 %v202
    %v270 = vpop.f32.mrb[0].mxu0
    %v271 = vadd.f32 0.0, %v270
    %v272 = vpop.f32.mrb[0].mxu0
    %273 = vdwg.mxu0
    %v274 = vadd.f32 %v192, %v271
    %v275 = vadd.f32 %v274, %v78
    %v276 = vxor.u32 %v275, 2147483648
    %v277 = vmul.f32 %v276, 1.442695
    %v278 = vpow.pop %v277
    %v279 = vadd.f32 %v278, 1.0
    %v280 = vrcp.pop %v279
    %v281 = vmul.f32 1.0, %v280
    %v282 = vadd.f32 %v271, %v78
    %284 = vrot.lane.b32.xlu0 %v282, 96
    %v285 = vpop.permute.xlu0 %284
    %v287 = vmul.f32 %v281, %v285
    %289 = vrot.lane.b32.xlu0 %v287, 32
    %v290 = vpop.permute.xlu0 %289
    %v292 = vadd.f32 %v192, %v290
    %v293 = vtanh.pop %v292
    %v294 = vsub.f32 1.0, %v281
    %296 = vrot.lane.b32.xlu0 %v293, 112
    %v297 = vpop.permute.xlu0 %296
    %v299 = vmul.f32 %v294, %v297
    %v300 = vmul.f32 %v281, 0.0
    %v301 = vadd.f32 %v299, %v300
    %303 = vrot.lane.b32.xlu0 %v301, 112
    %v304 = vpop.permute.xlu0 %303
    %vm306 = vcmask 123904
    %307 = vst.msk [vmem:[#allocation2] sm:$0x3] %vm306, %v304
    %v308 = vsel %vm200, %v304, 0
    %310 = vmatprep.subr.mxu0 0.0
    %311 = vmatpush1.msra.mxu0 %v54
    %312 = vmatprep.subr.mxu0 0.0
    %313 = vmatpush1.msra.mxu0 %v55
    %314 = vmatprep.subr.mxu0 0.0
    %315 = vmatpush1.msra.mxu0 0.0
    %316 = vmatprep.subr.mxu0 0.0
    %317 = vmatpush1.msra.mxu0 0.0
    %318 = vmatprep.subr.mxu0 0.0
    %319 = vmatpush1.msra.mxu0 0.0
    %320 = vmatprep.subr.mxu0 0.0
    %321 = vmatpush1.msra.mxu0 0.0
    %322 = vmatprep.subr.mxu0 0.0
    %323 = vmatpush1.msra.mxu0 0.0
    %324 = vmatprep.subr.mxu0 0.0
    %325 = vmatpush1.msra.mxu0 0.0
    %326 = vmatprep.subr.mxu0 0.0
    %327 = vmatpush1.msra.mxu0 0.0
    %328 = vmatprep.subr.mxu0 0.0
    %329 = vmatpush1.msra.mxu0 0.0
    %330 = vmatprep.subr.mxu0 0.0
    %331 = vmatpush1.msra.mxu0 0.0
    %332 = vmatprep.subr.mxu0 0.0
    %333 = vmatpush1.msra.mxu0 0.0
    %334 = vmatprep.subr.mxu0 0.0
    %335 = vmatpush1.msra.mxu0 0.0
    %336 = vmatprep.subr.mxu0 0.0
    %337 = vmatpush1.msra.mxu0 0.0
    %338 = vmatprep.subr.mxu0 0.0
    %339 = vmatpush1.msra.mxu0 0.0
    %340 = vmatprep.subr.mxu0 0.0
    %341 = vmatpush1.msra.mxu0 0.0
    %342 = vmatprep.subr.mxu0 0.0
    %343 = vmatpush1.msra.mxu0 0.0
    %344 = vmatprep.subr.mxu0 0.0
    %345 = vmatpush1.msra.mxu0 0.0
    %346 = vmatprep.subr.mxu0 0.0
    %347 = vmatpush1.msra.mxu0 0.0
    %348 = vmatprep.subr.mxu0 0.0
    %349 = vmatpush1.msra.mxu0 0.0
    %350 = vmatprep.subr.mxu0 0.0
    %351 = vmatpush1.msra.mxu0 0.0
    %352 = vmatprep.subr.mxu0 0.0
    %353 = vmatpush1.msra.mxu0 0.0
    %354 = vmatprep.subr.mxu0 0.0
    %355 = vmatpush1.msra.mxu0 0.0
    %356 = vmatprep.subr.mxu0 0.0
    %357 = vmatpush1.msra.mxu0 0.0
    %358 = vmatprep.subr.mxu0 0.0
    %359 = vmatpush1.msra.mxu0 0.0
    %360 = vmatprep.subr.mxu0 0.0
    %361 = vmatpush1.msra.mxu0 0.0
    %362 = vmatprep.subr.mxu0 0.0
    %363 = vmatpush1.msra.mxu0 0.0
    %364 = vmatprep.subr.mxu0 0.0
    %365 = vmatpush1.msra.mxu0 0.0
    %366 = vmatprep.subr.mxu0 0.0
    %367 = vmatpush1.msra.mxu0 0.0
    %368 = vmatprep.subr.mxu0 0.0
    %369 = vmatpush1.msra.mxu0 0.0
    %370 = vmatprep.subr.mxu0 0.0
    %371 = vmatpush1.msra.mxu0 0.0
    %372 = vmatprep.subr.mxu0 0.0
    %373 = vmatpush1.msra.mxu0 0.0
    %374 = vmatprep.mubr.f32.mxu0 0.0
    %375 = vmatmul.mubr.f32.gmra.mrb[0].mxu0 %v308
    %v376 = vpop.f32.mrb[0].mxu0
    %v377 = vadd.f32 0.0, %v376
    %v378 = vpop.f32.mrb[0].mxu0
    %379 = vdwg.mxu0
    %v381 = vrot.slane %v377, 6
    %v383 = vadd.f32 %v192, %v381
    %v384 = vadd.f32 %v383, %v78
    %v385 = vxor.u32 %v384, 2147483648
    %v386 = vmul.f32 %v385, 1.442695
    %v387 = vpow.pop %v386
    %v388 = vadd.f32 %v387, 1.0
    %v389 = vrcp.pop %v388
    %v390 = vmul.f32 1.0, %v389
    %v391 = vadd.f32 %v377, %v78
    %v393 = vrot.slane %v391, 6
    %394 = vrot.lane.b32.xlu0 %v393, 96
    %v395 = vpop.permute.xlu0 %394
    %v397 = vmul.f32 %v390, %v395
    %399 = vrot.lane.b32.xlu0 %v397, 32
    %v400 = vpop.permute.xlu0 %399
    %v402 = vadd.f32 %v192, %v400
    %v403 = vtanh.pop %v402
    %v404 = vsub.f32 1.0, %v390
    %406 = vrot.lane.b32.xlu0 %v403, 112
    %v407 = vpop.permute.xlu0 %406
    %v409 = vmul.f32 %v404, %v407
    %v410 = vrot.slane %v301, 6
    %v412 = vmul.f32 %v390, %v410
    %v413 = vadd.f32 %v409, %v412
    %415 = vrot.lane.b32.xlu0 %v413, 112
    %v416 = vpop.permute.xlu0 %415
    %vm418 = vcmask 125954
    %419 = vst.msk [vmem:[#allocation2] sm:$0xc] %vm418, %v416
    %v420 = vrot.slane %v413, 2
    %421 = vrot.lane.b32.xlu0 %v420, 112
    %v422 = vpop.permute.xlu0 %421
    %v423 = vsel %vm200, %v422, 0
    %425 = vmatprep.subr.mxu0 0.0
    %426 = vmatpush1.msra.mxu0 %v54
    %427 = vmatprep.subr.mxu0 0.0
    %428 = vmatpush1.msra.mxu0 %v55
    %429 = vmatprep.subr.mxu0 0.0
    %430 = vmatpush1.msra.mxu0 0.0
    %431 = vmatprep.subr.mxu0 0.0
    %432 = vmatpush1.msra.mxu0 0.0
    %433 = vmatprep.subr.mxu0 0.0
    %434 = vmatpush1.msra.mxu0 0.0
    %435 = vmatprep.subr.mxu0 0.0
    %436 = vmatpush1.msra.mxu0 0.0
    %437 = vmatprep.subr.mxu0 0.0
    %438 = vmatpush1.msra.mxu0 0.0
    %439 = vmatprep.subr.mxu0 0.0
    %440 = vmatpush1.msra.mxu0 0.0
    %441 = vmatprep.subr.mxu0 0.0
    %442 = vmatpush1.msra.mxu0 0.0
    %443 = vmatprep.subr.mxu0 0.0
    %444 = vmatpush1.msra.mxu0 0.0
    %445 = vmatprep.subr.mxu0 0.0
    %446 = vmatpush1.msra.mxu0 0.0
    %447 = vmatprep.subr.mxu0 0.0
    %448 = vmatpush1.msra.mxu0 0.0
    %449 = vmatprep.subr.mxu0 0.0
    %450 = vmatpush1.msra.mxu0 0.0
    %451 = vmatprep.subr.mxu0 0.0
    %452 = vmatpush1.msra.mxu0 0.0
    %453 = vmatprep.subr.mxu0 0.0
    %454 = vmatpush1.msra.mxu0 0.0
    %455 = vmatprep.subr.mxu0 0.0
    %456 = vmatpush1.msra.mxu0 0.0
    %457 = vmatprep.subr.mxu0 0.0
    %458 = vmatpush1.msra.mxu0 0.0
    %459 = vmatprep.subr.mxu0 0.0
    %460 = vmatpush1.msra.mxu0 0.0
    %461 = vmatprep.subr.mxu0 0.0
    %462 = vmatpush1.msra.mxu0 0.0
    %463 = vmatprep.subr.mxu0 0.0
    %464 = vmatpush1.msra.mxu0 0.0
    %465 = vmatprep.subr.mxu0 0.0
    %466 = vmatpush1.msra.mxu0 0.0
    %467 = vmatprep.subr.mxu0 0.0
    %468 = vmatpush1.msra.mxu0 0.0
    %469 = vmatprep.subr.mxu0 0.0
    %470 = vmatpush1.msra.mxu0 0.0
    %471 = vmatprep.subr.mxu0 0.0
    %472 = vmatpush1.msra.mxu0 0.0
    %473 = vmatprep.subr.mxu0 0.0
    %474 = vmatpush1.msra.mxu0 0.0
    %475 = vmatprep.subr.mxu0 0.0
    %476 = vmatpush1.msra.mxu0 0.0
    %477 = vmatprep.subr.mxu0 0.0
    %478 = vmatpush1.msra.mxu0 0.0
    %479 = vmatprep.subr.mxu0 0.0
    %480 = vmatpush1.msra.mxu0 0.0
    %481 = vmatprep.subr.mxu0 0.0
    %482 = vmatpush1.msra.mxu0 0.0
    %483 = vmatprep.subr.mxu0 0.0
    %484 = vmatpush1.msra.mxu0 0.0
    %485 = vmatprep.subr.mxu0 0.0
    %486 = vmatpush1.msra.mxu0 0.0
    %487 = vmatprep.subr.mxu0 0.0
    %488 = vmatpush1.msra.mxu0 0.0
    %489 = vmatprep.mubr.f32.mxu0 0.0
    %490 = vmatmul.mubr.f32.gmra.mrb[0].mxu0 %v423
    %v491 = vpop.f32.mrb[0].mxu0
    %v492 = vadd.f32 0.0, %v491
    %v493 = vpop.f32.mrb[0].mxu0
    %494 = vdwg.mxu0
    %v496 = vrot.slane %v492, 4
    %v498 = vadd.f32 %v192, %v496
    %v499 = vadd.f32 %v498, %v78
    %v500 = vxor.u32 %v499, 2147483648
    %v501 = vmul.f32 %v500, 1.442695
    %v502 = vpow.pop %v501
    %v503 = vadd.f32 %v502, 1.0
    %v504 = vrcp.pop %v503
    %v505 = vmul.f32 1.0, %v504
    %v506 = vadd.f32 %v492, %v78
    %v508 = vrot.slane %v506, 4
    %509 = vrot.lane.b32.xlu0 %v508, 96
    %v510 = vpop.permute.xlu0 %509
    %v512 = vmul.f32 %v505, %v510
    %514 = vrot.lane.b32.xlu0 %v512, 32
    %v515 = vpop.permute.xlu0 %514
    %v517 = vadd.f32 %v192, %v515
    %v518 = vtanh.pop %v517
    %v519 = vsub.f32 1.0, %v505
    %521 = vrot.lane.b32.xlu0 %v518, 112
    %v522 = vpop.permute.xlu0 %521
    %v524 = vmul.f32 %v519, %v522
    %v525 = vrot.slane %v413, 6
    %v527 = vmul.f32 %v505, %v525
    %v528 = vadd.f32 %v524, %v527
    %530 = vrot.lane.b32.xlu0 %v528, 112
    %v531 = vpop.permute.xlu0 %530
    %vm533 = vcmask 128004
    %534 = vst.msk [vmem:[#allocation2] sm:$0x30] %vm533, %v531
    %v535 = vrot.slane %v528, 4
    %536 = vrot.lane.b32.xlu0 %v535, 112
    %v537 = vpop.permute.xlu0 %536
    %v538 = vsel %vm200, %v537, 0
    %540 = vmatprep.subr.mxu0 0.0
    %541 = vmatpush1.msra.mxu0 %v54
    %542 = vmatprep.subr.mxu0 0.0
    %543 = vmatpush1.msra.mxu0 %v55
    %544 = vmatprep.subr.mxu0 0.0
    %545 = vmatpush1.msra.mxu0 0.0
    %546 = vmatprep.subr.mxu0 0.0
    %547 = vmatpush1.msra.mxu0 0.0
    %548 = vmatprep.subr.mxu0 0.0
    %549 = vmatpush1.msra.mxu0 0.0
    %550 = vmatprep.subr.mxu0 0.0
    %551 = vmatpush1.msra.mxu0 0.0
    %552 = vmatprep.subr.mxu0 0.0
    %553 = vmatpush1.msra.mxu0 0.0
    %554 = vmatprep.subr.mxu0 0.0
    %555 = vmatpush1.msra.mxu0 0.0
    %556 = vmatprep.subr.mxu0 0.0
    %557 = vmatpush1.msra.mxu0 0.0
    %558 = vmatprep.subr.mxu0 0.0
    %559 = vmatpush1.msra.mxu0 0.0
    %560 = vmatprep.subr.mxu0 0.0
    %561 = vmatpush1.msra.mxu0 0.0
    %562 = vmatprep.subr.mxu0 0.0
    %563 = vmatpush1.msra.mxu0 0.0
    %564 = vmatprep.subr.mxu0 0.0
    %565 = vmatpush1.msra.mxu0 0.0
    %566 = vmatprep.subr.mxu0 0.0
    %567 = vmatpush1.msra.mxu0 0.0
    %568 = vmatprep.subr.mxu0 0.0
    %569 = vmatpush1.msra.mxu0 0.0
    %570 = vmatprep.subr.mxu0 0.0
    %571 = vmatpush1.msra.mxu0 0.0
    %572 = vmatprep.subr.mxu0 0.0
    %573 = vmatpush1.msra.mxu0 0.0
    %574 = vmatprep.subr.mxu0 0.0
    %575 = vmatpush1.msra.mxu0 0.0
    %576 = vmatprep.subr.mxu0 0.0
    %577 = vmatpush1.msra.mxu0 0.0
    %578 = vmatprep.subr.mxu0 0.0
    %579 = vmatpush1.msra.mxu0 0.0
    %580 = vmatprep.subr.mxu0 0.0
    %581 = vmatpush1.msra.mxu0 0.0
    %582 = vmatprep.subr.mxu0 0.0
    %583 = vmatpush1.msra.mxu0 0.0
    %584 = vmatprep.subr.mxu0 0.0
    %585 = vmatpush1.msra.mxu0 0.0
    %586 = vmatprep.subr.mxu0 0.0
    %587 = vmatpush1.msra.mxu0 0.0
    %588 = vmatprep.subr.mxu0 0.0
    %589 = vmatpush1.msra.mxu0 0.0
    %590 = vmatprep.subr.mxu0 0.0
    %591 = vmatpush1.msra.mxu0 0.0
    %592 = vmatprep.subr.mxu0 0.0
    %593 = vmatpush1.msra.mxu0 0.0
    %594 = vmatprep.subr.mxu0 0.0
    %595 = vmatpush1.msra.mxu0 0.0
    %596 = vmatprep.subr.mxu0 0.0
    %597 = vmatpush1.msra.mxu0 0.0
    %598 = vmatprep.subr.mxu0 0.0
    %599 = vmatpush1.msra.mxu0 0.0
    %600 = vmatprep.subr.mxu0 0.0
    %601 = vmatpush1.msra.mxu0 0.0
    %602 = vmatprep.subr.mxu0 0.0
    %603 = vmatpush1.msra.mxu0 0.0
    %604 = vmatprep.mubr.f32.mxu0 0.0
    %605 = vmatmul.mubr.f32.gmra.mrb[0].mxu0 %v538
    %v606 = vpop.f32.mrb[0].mxu0
    %v607 = vadd.f32 0.0, %v606
    %v608 = vpop.f32.mrb[0].mxu0
    %609 = vdwg.mxu0
    %v611 = vrot.slane %v607, 2
    %v613 = vadd.f32 %v192, %v611
    %v614 = vadd.f32 %v613, %v78
    %v615 = vxor.u32 %v614, 2147483648
    %v616 = vmul.f32 %v615, 1.442695
    %v617 = vpow.pop %v616
    %v618 = vadd.f32 %v617, 1.0
    %v619 = vrcp.pop %v618
    %v620 = vmul.f32 1.0, %v619
    %v621 = vadd.f32 %v607, %v78
    %v623 = vrot.slane %v621, 2
    %624 = vrot.lane.b32.xlu0 %v623, 96
    %v625 = vpop.permute.xlu0 %624
    %v627 = vmul.f32 %v620, %v625
    %629 = vrot.lane.b32.xlu0 %v627, 32
    %v630 = vpop.permute.xlu0 %629
    %v632 = vadd.f32 %v192, %v630
    %v633 = vtanh.pop %v632
    %v634 = vsub.f32 1.0, %v620
    %636 = vrot.lane.b32.xlu0 %v633, 112
    %v637 = vpop.permute.xlu0 %636
    %v639 = vmul.f32 %v634, %v637
    %v640 = vrot.slane %v528, 6
    %v642 = vmul.f32 %v620, %v640
    %v643 = vadd.f32 %v639, %v642
    %645 = vrot.lane.b32.xlu0 %v643, 112
    %v646 = vpop.permute.xlu0 %645
    %vm648 = vcmask 130054
    %649 = vst.msk [vmem:[#allocation2] sm:$0xc0] %vm648, %v646
    %v650 = vrot.slane %v643, 6
    %651 = vrot.lane.b32.xlu0 %v650, 112
    %v652 = vpop.permute.xlu0 %651
    %v653 = vsel %vm200, %v652, 0
    %655 = vmatprep.subr.mxu0 0.0
    %656 = vmatpush1.msra.mxu0 %v54
    %657 = vmatprep.subr.mxu0 0.0
    %658 = vmatpush1.msra.mxu0 %v55
    %659 = vmatprep.subr.mxu0 0.0
    %660 = vmatpush1.msra.mxu0 0.0
    %661 = vmatprep.subr.mxu0 0.0
    %662 = vmatpush1.msra.mxu0 0.0
    %663 = vmatprep.subr.mxu0 0.0
    %664 = vmatpush1.msra.mxu0 0.0
    %665 = vmatprep.subr.mxu0 0.0
    %666 = vmatpush1.msra.mxu0 0.0
    %667 = vmatprep.subr.mxu0 0.0
    %668 = vmatpush1.msra.mxu0 0.0
    %669 = vmatprep.subr.mxu0 0.0
    %670 = vmatpush1.msra.mxu0 0.0
    %671 = vmatprep.subr.mxu0 0.0
    %672 = vmatpush1.msra.mxu0 0.0
    %673 = vmatprep.subr.mxu0 0.0
    %674 = vmatpush1.msra.mxu0 0.0
    %675 = vmatprep.subr.mxu0 0.0
    %676 = vmatpush1.msra.mxu0 0.0
    %677 = vmatprep.subr.mxu0 0.0
    %678 = vmatpush1.msra.mxu0 0.0
    %679 = vmatprep.subr.mxu0 0.0
    %680 = vmatpush1.msra.mxu0 0.0
    %681 = vmatprep.subr.mxu0 0.0
    %682 = vmatpush1.msra.mxu0 0.0
    %683 = vmatprep.subr.mxu0 0.0
    %684 = vmatpush1.msra.mxu0 0.0
    %685 = vmatprep.subr.mxu0 0.0
    %686 = vmatpush1.msra.mxu0 0.0
    %687 = vmatprep.subr.mxu0 0.0
    %688 = vmatpush1.msra.mxu0 0.0
    %689 = vmatprep.subr.mxu0 0.0
    %690 = vmatpush1.msra.mxu0 0.0
    %691 = vmatprep.subr.mxu0 0.0
    %692 = vmatpush1.msra.mxu0 0.0
    %693 = vmatprep.subr.mxu0 0.0
    %694 = vmatpush1.msra.mxu0 0.0
    %695 = vmatprep.subr.mxu0 0.0
    %696 = vmatpush1.msra.mxu0 0.0
    %697 = vmatprep.subr.mxu0 0.0
    %698 = vmatpush1.msra.mxu0 0.0
    %699 = vmatprep.subr.mxu0 0.0
    %700 = vmatpush1.msra.mxu0 0.0
    %701 = vmatprep.subr.mxu0 0.0
    %702 = vmatpush1.msra.mxu0 0.0
    %703 = vmatprep.subr.mxu0 0.0
    %704 = vmatpush1.msra.mxu0 0.0
    %705 = vmatprep.subr.mxu0 0.0
    %706 = vmatpush1.msra.mxu0 0.0
    %707 = vmatprep.subr.mxu0 0.0
    %708 = vmatpush1.msra.mxu0 0.0
    %709 = vmatprep.subr.mxu0 0.0
    %710 = vmatpush1.msra.mxu0 0.0
    %711 = vmatprep.subr.mxu0 0.0
    %712 = vmatpush1.msra.mxu0 0.0
    %713 = vmatprep.subr.mxu0 0.0
    %714 = vmatpush1.msra.mxu0 0.0
    %715 = vmatprep.subr.mxu0 0.0
    %716 = vmatpush1.msra.mxu0 0.0
    %717 = vmatprep.subr.mxu0 0.0
    %718 = vmatpush1.msra.mxu0 0.0
    %719 = vmatprep.mubr.f32.mxu0 0.0
    %720 = vmatmul.mubr.f32.gmra.mrb[0].mxu0 %v653
    %v721 = vpop.f32.mrb[0].mxu0
    %v722 = vadd.f32 0.0, %v721
    %v723 = vpop.f32.mrb[0].mxu0
    %724 = vdwg.mxu0
    %v725 = vadd.f32 %v197, %v722
    %v726 = vadd.f32 %v725, %v78
    %v727 = vxor.u32 %v726, 2147483648
    %v728 = vmul.f32 %v727, 1.442695
    %v729 = vpow.pop %v728
    %v730 = vadd.f32 %v729, 1.0
    %v731 = vrcp.pop %v730
    %v732 = vmul.f32 1.0, %v731
    %v733 = vadd.f32 %v722, %v78
    %735 = vrot.lane.b32.xlu0 %v733, 96
    %v736 = vpop.permute.xlu0 %735
    %v738 = vmul.f32 %v732, %v736
    %740 = vrot.lane.b32.xlu0 %v738, 32
    %v741 = vpop.permute.xlu0 %740
    %v743 = vadd.f32 %v197, %v741
    %v744 = vtanh.pop %v743
    %v745 = vsub.f32 1.0, %v732
    %747 = vrot.lane.b32.xlu0 %v744, 112
    %v748 = vpop.permute.xlu0 %747
    %v750 = vmul.f32 %v745, %v748
    %v752 = vmul.f32 %v732, %v650
    %v753 = vadd.f32 %v750, %v752
    %755 = vrot.lane.b32.xlu0 %v753, 112
    %v756 = vpop.permute.xlu0 %755
    %758 = vst.msk [vmem:[#allocation2 + $0x8] sm:$0x3] %vm306, %v756
    %v759 = vsel %vm200, %v756, 0
    %761 = vmatprep.subr.mxu0 0.0
    %762 = vmatpush1.msra.mxu0 %v54
    %763 = vmatprep.subr.mxu0 0.0
    %764 = vmatpush1.msra.mxu0 %v55
    %765 = vmatprep.subr.mxu0 0.0
    %766 = vmatpush1.msra.mxu0 0.0
    %767 = vmatprep.subr.mxu0 0.0
    %768 = vmatpush1.msra.mxu0 0.0
    %769 = vmatprep.subr.mxu0 0.0
    %770 = vmatpush1.msra.mxu0 0.0
    %771 = vmatprep.subr.mxu0 0.0
    %772 = vmatpush1.msra.mxu0 0.0
    %773 = vmatprep.subr.mxu0 0.0
    %774 = vmatpush1.msra.mxu0 0.0
    %775 = vmatprep.subr.mxu0 0.0
    %776 = vmatpush1.msra.mxu0 0.0
    %777 = vmatprep.subr.mxu0 0.0
    %778 = vmatpush1.msra.mxu0 0.0
    %779 = vmatprep.subr.mxu0 0.0
    %780 = vmatpush1.msra.mxu0 0.0
    %781 = vmatprep.subr.mxu0 0.0
    %782 = vmatpush1.msra.mxu0 0.0
    %783 = vmatprep.subr.mxu0 0.0
    %784 = vmatpush1.msra.mxu0 0.0
    %785 = vmatprep.subr.mxu0 0.0
    %786 = vmatpush1.msra.mxu0 0.0
    %787 = vmatprep.subr.mxu0 0.0
    %788 = vmatpush1.msra.mxu0 0.0
    %789 = vmatprep.subr.mxu0 0.0
    %790 = vmatpush1.msra.mxu0 0.0
    %791 = vmatprep.subr.mxu0 0.0
    %792 = vmatpush1.msra.mxu0 0.0
    %793 = vmatprep.subr.mxu0 0.0
    %794 = vmatpush1.msra.mxu0 0.0
    %795 = vmatprep.subr.mxu0 0.0
    %796 = vmatpush1.msra.mxu0 0.0
    %797 = vmatprep.subr.mxu0 0.0
    %798 = vmatpush1.msra.mxu0 0.0
    %799 = vmatprep.subr.mxu0 0.0
    %800 = vmatpush1.msra.mxu0 0.0
    %801 = vmatprep.subr.mxu0 0.0
    %802 = vmatpush1.msra.mxu0 0.0
    %803 = vmatprep.subr.mxu0 0.0
    %804 = vmatpush1.msra.mxu0 0.0
    %805 = vmatprep.subr.mxu0 0.0
    %806 = vmatpush1.msra.mxu0 0.0
    %807 = vmatprep.subr.mxu0 0.0
    %808 = vmatpush1.msra.mxu0 0.0
    %809 = vmatprep.subr.mxu0 0.0
    %810 = vmatpush1.msra.mxu0 0.0
    %811 = vmatprep.subr.mxu0 0.0
    %812 = vmatpush1.msra.mxu0 0.0
    %813 = vmatprep.subr.mxu0 0.0
    %814 = vmatpush1.msra.mxu0 0.0
    %815 = vmatprep.subr.mxu0 0.0
    %816 = vmatpush1.msra.mxu0 0.0
    %817 = vmatprep.subr.mxu0 0.0
    %818 = vmatpush1.msra.mxu0 0.0
    %819 = vmatprep.subr.mxu0 0.0
    %820 = vmatpush1.msra.mxu0 0.0
    %821 = vmatprep.subr.mxu0 0.0
    %822 = vmatpush1.msra.mxu0 0.0
    %823 = vmatprep.subr.mxu0 0.0
    %824 = vmatpush1.msra.mxu0 0.0
    %825 = vmatprep.mubr.f32.mxu0 0.0
    %826 = vmatmul.mubr.f32.gmra.mrb[0].mxu0 %v759
    %v827 = vpop.f32.mrb[0].mxu0
    %v828 = vadd.f32 0.0, %v827
    %v829 = vpop.f32.mrb[0].mxu0
    %830 = vdwg.mxu0
    %v832 = vrot.slane %v828, 6
    %v834 = vadd.f32 %v197, %v832
    %v835 = vadd.f32 %v834, %v78
    %v836 = vxor.u32 %v835, 2147483648
    %v837 = vmul.f32 %v836, 1.442695
    %v838 = vpow.pop %v837
    %v839 = vadd.f32 %v838, 1.0
    %v840 = vrcp.pop %v839
    %v841 = vmul.f32 1.0, %v840
    %v842 = vadd.f32 %v828, %v78
    %v844 = vrot.slane %v842, 6
    %845 = vrot.lane.b32.xlu0 %v844, 96
    %v846 = vpop.permute.xlu0 %845
    %v848 = vmul.f32 %v841, %v846
    %850 = vrot.lane.b32.xlu0 %v848, 32
    %v851 = vpop.permute.xlu0 %850
    %v853 = vadd.f32 %v197, %v851
    %v854 = vtanh.pop %v853
    %v855 = vsub.f32 1.0, %v841
    %857 = vrot.lane.b32.xlu0 %v854, 112
    %v858 = vpop.permute.xlu0 %857
    %v860 = vmul.f32 %v855, %v858
    %v861 = vrot.slane %v753, 6
    %v863 = vmul.f32 %v841, %v861
    %v864 = vadd.f32 %v860, %v863
    %866 = vrot.lane.b32.xlu0 %v864, 112
    %v867 = vpop.permute.xlu0 %866
    %869 = vst.msk [vmem:[#allocation2 + $0x8] sm:$0xc] %vm418, %v867
    %v870 = vrot.slane %v864, 2
    %871 = vrot.lane.b32.xlu0 %v870, 112
    %v872 = vpop.permute.xlu0 %871
    %v873 = vsel %vm200, %v872, 0
    %875 = vmatprep.subr.mxu0 0.0
    %876 = vmatpush1.msra.mxu0 %v54
    %877 = vmatprep.subr.mxu0 0.0
    %878 = vmatpush1.msra.mxu0 %v55
    %879 = vmatprep.subr.mxu0 0.0
    %880 = vmatpush1.msra.mxu0 0.0
    %881 = vmatprep.subr.mxu0 0.0
    %882 = vmatpush1.msra.mxu0 0.0
    %883 = vmatprep.subr.mxu0 0.0
    %884 = vmatpush1.msra.mxu0 0.0
    %885 = vmatprep.subr.mxu0 0.0
    %886 = vmatpush1.msra.mxu0 0.0
    %887 = vmatprep.subr.mxu0 0.0
    %888 = vmatpush1.msra.mxu0 0.0
    %889 = vmatprep.subr.mxu0 0.0
    %890 = vmatpush1.msra.mxu0 0.0
    %891 = vmatprep.subr.mxu0 0.0
    %892 = vmatpush1.msra.mxu0 0.0
    %893 = vmatprep.subr.mxu0 0.0
    %894 = vmatpush1.msra.mxu0 0.0
    %895 = vmatprep.subr.mxu0 0.0
    %896 = vmatpush1.msra.mxu0 0.0
    %897 = vmatprep.subr.mxu0 0.0
    %898 = vmatpush1.msra.mxu0 0.0
    %899 = vmatprep.subr.mxu0 0.0
    %900 = vmatpush1.msra.mxu0 0.0
    %901 = vmatprep.subr.mxu0 0.0
    %902 = vmatpush1.msra.mxu0 0.0
    %903 = vmatprep.subr.mxu0 0.0
    %904 = vmatpush1.msra.mxu0 0.0
    %905 = vmatprep.subr.mxu0 0.0
    %906 = vmatpush1.msra.mxu0 0.0
    %907 = vmatprep.subr.mxu0 0.0
    %908 = vmatpush1.msra.mxu0 0.0
    %909 = vmatprep.subr.mxu0 0.0
    %910 = vmatpush1.msra.mxu0 0.0
    %911 = vmatprep.subr.mxu0 0.0
    %912 = vmatpush1.msra.mxu0 0.0
    %913 = vmatprep.subr.mxu0 0.0
    %914 = vmatpush1.msra.mxu0 0.0
    %915 = vmatprep.subr.mxu0 0.0
    %916 = vmatpush1.msra.mxu0 0.0
    %917 = vmatprep.subr.mxu0 0.0
    %918 = vmatpush1.msra.mxu0 0.0
    %919 = vmatprep.subr.mxu0 0.0
    %920 = vmatpush1.msra.mxu0 0.0
    %921 = vmatprep.subr.mxu0 0.0
    %922 = vmatpush1.msra.mxu0 0.0
    %923 = vmatprep.subr.mxu0 0.0
    %924 = vmatpush1.msra.mxu0 0.0
    %925 = vmatprep.subr.mxu0 0.0
    %926 = vmatpush1.msra.mxu0 0.0
    %927 = vmatprep.subr.mxu0 0.0
    %928 = vmatpush1.msra.mxu0 0.0
    %929 = vmatprep.subr.mxu0 0.0
    %930 = vmatpush1.msra.mxu0 0.0
    %931 = vmatprep.subr.mxu0 0.0
    %932 = vmatpush1.msra.mxu0 0.0
    %933 = vmatprep.subr.mxu0 0.0
    %934 = vmatpush1.msra.mxu0 0.0
    %935 = vmatprep.subr.mxu0 0.0
    %936 = vmatpush1.msra.mxu0 0.0
    %937 = vmatprep.subr.mxu0 0.0
    %938 = vmatpush1.msra.mxu0 0.0
    %939 = vmatprep.mubr.f32.mxu0 0.0
    %940 = vmatmul.mubr.f32.gmra.mrb[0].mxu0 %v873
    %v941 = vpop.f32.mrb[0].mxu0
    %v942 = vadd.f32 0.0, %v941
    %v943 = vpop.f32.mrb[0].mxu0
    %944 = vdwg.mxu0
    %v946 = vrot.slane %v942, 4
    %v948 = vadd.f32 %v197, %v946
    %v949 = vadd.f32 %v948, %v78
    %v950 = vxor.u32 %v949, 2147483648
    %v951 = vmul.f32 %v950, 1.442695
    %v952 = vpow.pop %v951
    %v953 = vadd.f32 %v952, 1.0
    %v954 = vrcp.pop %v953
    %v955 = vmul.f32 1.0, %v954
    %v956 = vadd.f32 %v942, %v78
    %v958 = vrot.slane %v956, 4
    %959 = vrot.lane.b32.xlu0 %v958, 96
    %v960 = vpop.permute.xlu0 %959
    %v962 = vmul.f32 %v955, %v960
    %964 = vrot.lane.b32.xlu0 %v962, 32
    %v965 = vpop.permute.xlu0 %964
    %v967 = vadd.f32 %v197, %v965
    %v968 = vtanh.pop %v967
    %v969 = vsub.f32 1.0, %v955
    %971 = vrot.lane.b32.xlu0 %v968, 112
    %v972 = vpop.permute.xlu0 %971
    %v974 = vmul.f32 %v969, %v972
    %v975 = vrot.slane %v864, 6
    %v977 = vmul.f32 %v955, %v975
    %v978 = vadd.f32 %v974, %v977
    %980 = vrot.lane.b32.xlu0 %v978, 112
    %v981 = vpop.permute.xlu0 %980
    %983 = vst.msk [vmem:[#allocation2 + $0x8] sm:$0x30] %vm533, %v981
    %v984 = vrot.slane %v978, 4
    %985 = vrot.lane.b32.xlu0 %v984, 112
    %v986 = vpop.permute.xlu0 %985
    %v987 = vsel %vm200, %v986, 0
    %989 = vmatprep.subr.mxu0 0.0
    %990 = vmatpush1.msra.mxu0 %v54
    %991 = vmatprep.subr.mxu0 0.0
    %992 = vmatpush1.msra.mxu0 %v55
    %993 = vmatprep.subr.mxu0 0.0
    %994 = vmatpush1.msra.mxu0 0.0
    %995 = vmatprep.subr.mxu0 0.0
    %996 = vmatpush1.msra.mxu0 0.0
    %997 = vmatprep.subr.mxu0 0.0
    %998 = vmatpush1.msra.mxu0 0.0
    %999 = vmatprep.subr.mxu0 0.0
    %1000 = vmatpush1.msra.mxu0 0.0
    %1001 = vmatprep.subr.mxu0 0.0
    %1002 = vmatpush1.msra.mxu0 0.0
    %1003 = vmatprep.subr.mxu0 0.0
    %1004 = vmatpush1.msra.mxu0 0.0
    %1005 = vmatprep.subr.mxu0 0.0
    %1006 = vmatpush1.msra.mxu0 0.0
    %1007 = vmatprep.subr.mxu0 0.0
    %1008 = vmatpush1.msra.mxu0 0.0
    %1009 = vmatprep.subr.mxu0 0.0
    %1010 = vmatpush1.msra.mxu0 0.0
    %1011 = vmatprep.subr.mxu0 0.0
    %1012 = vmatpush1.msra.mxu0 0.0
    %1013 = vmatprep.subr.mxu0 0.0
    %1014 = vmatpush1.msra.mxu0 0.0
    %1015 = vmatprep.subr.mxu0 0.0
    %1016 = vmatpush1.msra.mxu0 0.0
    %1017 = vmatprep.subr.mxu0 0.0
    %1018 = vmatpush1.msra.mxu0 0.0
    %1019 = vmatprep.subr.mxu0 0.0
    %1020 = vmatpush1.msra.mxu0 0.0
    %1021 = vmatprep.subr.mxu0 0.0
    %1022 = vmatpush1.msra.mxu0 0.0
    %1023 = vmatprep.subr.mxu0 0.0
    %1024 = vmatpush1.msra.mxu0 0.0
    %1025 = vmatprep.subr.mxu0 0.0
    %1026 = vmatpush1.msra.mxu0 0.0
    %1027 = vmatprep.subr.mxu0 0.0
    %1028 = vmatpush1.msra.mxu0 0.0
    %1029 = vmatprep.subr.mxu0 0.0
    %1030 = vmatpush1.msra.mxu0 0.0
    %1031 = vmatprep.subr.mxu0 0.0
    %1032 = vmatpush1.msra.mxu0 0.0
    %1033 = vmatprep.subr.mxu0 0.0
    %1034 = vmatpush1.msra.mxu0 0.0
    %1035 = vmatprep.subr.mxu0 0.0
    %1036 = vmatpush1.msra.mxu0 0.0
    %1037 = vmatprep.subr.mxu0 0.0
    %1038 = vmatpush1.msra.mxu0 0.0
    %1039 = vmatprep.subr.mxu0 0.0
    %1040 = vmatpush1.msra.mxu0 0.0
    %1041 = vmatprep.subr.mxu0 0.0
    %1042 = vmatpush1.msra.mxu0 0.0
    %1043 = vmatprep.subr.mxu0 0.0
    %1044 = vmatpush1.msra.mxu0 0.0
    %1045 = vmatprep.subr.mxu0 0.0
    %1046 = vmatpush1.msra.mxu0 0.0
    %1047 = vmatprep.subr.mxu0 0.0
    %1048 = vmatpush1.msra.mxu0 0.0
    %1049 = vmatprep.subr.mxu0 0.0
    %1050 = vmatpush1.msra.mxu0 0.0
    %1051 = vmatprep.subr.mxu0 0.0
    %1052 = vmatpush1.msra.mxu0 0.0
    %1053 = vmatprep.mubr.f32.mxu0 0.0
    %1054 = vmatmul.mubr.f32.gmra.mrb[0].mxu0 %v987
    %v1055 = vpop.f32.mrb[0].mxu0
    %v1056 = vadd.f32 0.0, %v1055
    %v1057 = vpop.f32.mrb[0].mxu0
    %1058 = vdwg.mxu0
    %v1060 = vrot.slane %v1056, 2
    %v1062 = vadd.f32 %v197, %v1060
    %v1063 = vadd.f32 %v1062, %v78
    %v1064 = vxor.u32 %v1063, 2147483648
    %v1065 = vmul.f32 %v1064, 1.442695
    %v1066 = vpow.pop %v1065
    %v1067 = vadd.f32 %v1066, 1.0
    %v1068 = vrcp.pop %v1067
    %v1069 = vmul.f32 1.0, %v1068
    %v1070 = vadd.f32 %v1056, %v78
    %v1072 = vrot.slane %v1070, 2
    %1073 = vrot.lane.b32.xlu0 %v1072, 96
    %v1074 = vpop.permute.xlu0 %1073
    %v1076 = vmul.f32 %v1069, %v1074
    %1078 = vrot.lane.b32.xlu0 %v1076, 32
    %v1079 = vpop.permute.xlu0 %1078
    %v1081 = vadd.f32 %v197, %v1079
    %v1082 = vtanh.pop %v1081
    %v1083 = vsub.f32 1.0, %v1069
    %1085 = vrot.lane.b32.xlu0 %v1082, 112
    %v1086 = vpop.permute.xlu0 %1085
    %v1088 = vmul.f32 %v1083, %v1086
    %v1089 = vrot.slane %v978, 6
    %v1091 = vmul.f32 %v1069, %v1089
    %v1092 = vadd.f32 %v1088, %v1091
    %1094 = vrot.lane.b32.xlu0 %v1092, 112
    %v1095 = vpop.permute.xlu0 %1094
    %1097 = vst.msk [vmem:[#allocation2 + $0x8] sm:$0xc0] %vm648, %v1095
    %v1098 = vld [vmem:[#allocation2] sm:$0xff]
    %v1099 = vld [vmem:[#allocation2 + $0x8] sm:$0xff]
    %1102 = vrot.lane.b32.xlu0 %v69, 16
    %v1103 = vpop.permute.xlu0 %1102
    %1104 = vrot.lane.b32.xlu0 %v70, 16
    %v1105 = vpop.permute.xlu0 %1104
    %v1108 = vsel %vm200, %v66, %v1103
    %v1109 = vsel %vm200, %v67, %v1105
    %v1111 = vsel %vm200, %v1098, 0
    %v1114 = vsel %vm200, %v1099, 0
    %1116 = vmatprep.subr.mxu0 0.0
    %1117 = vmatpush1.msra.mxu0 %v1108
    %1118 = vmatprep.subr.mxu0 0.0
    %1119 = vmatpush1.msra.mxu0 %v1109
    %1120 = vmatprep.subr.mxu0 0.0
    %1121 = vmatpush1.msra.mxu0 0.0
    %1122 = vmatprep.subr.mxu0 0.0
    %1123 = vmatpush1.msra.mxu0 0.0
    %1124 = vmatprep.subr.mxu0 0.0
    %1125 = vmatpush1.msra.mxu0 0.0
    %1126 = vmatprep.subr.mxu0 0.0
    %1127 = vmatpush1.msra.mxu0 0.0
    %1128 = vmatprep.subr.mxu0 0.0
    %1129 = vmatpush1.msra.mxu0 0.0
    %1130 = vmatprep.subr.mxu0 0.0
    %1131 = vmatpush1.msra.mxu0 0.0
    %1132 = vmatprep.subr.mxu0 0.0
    %1133 = vmatpush1.msra.mxu0 0.0
    %1134 = vmatprep.subr.mxu0 0.0
    %1135 = vmatpush1.msra.mxu0 0.0
    %1136 = vmatprep.subr.mxu0 0.0
    %1137 = vmatpush1.msra.mxu0 0.0
    %1138 = vmatprep.subr.mxu0 0.0
    %1139 = vmatpush1.msra.mxu0 0.0
    %1140 = vmatprep.subr.mxu0 0.0
    %1141 = vmatpush1.msra.mxu0 0.0
    %1142 = vmatprep.subr.mxu0 0.0
    %1143 = vmatpush1.msra.mxu0 0.0
    %1144 = vmatprep.subr.mxu0 0.0
    %1145 = vmatpush1.msra.mxu0 0.0
    %1146 = vmatprep.subr.mxu0 0.0
    %1147 = vmatpush1.msra.mxu0 0.0
    %1148 = vmatprep.subr.mxu0 0.0
    %1149 = vmatpush1.msra.mxu0 0.0
    %1150 = vmatprep.subr.mxu0 0.0
    %1151 = vmatpush1.msra.mxu0 0.0
    %1152 = vmatprep.subr.mxu0 0.0
    %1153 = vmatpush1.msra.mxu0 0.0
    %1154 = vmatprep.subr.mxu0 0.0
    %1155 = vmatpush1.msra.mxu0 0.0
    %1156 = vmatprep.subr.mxu0 0.0
    %1157 = vmatpush1.msra.mxu0 0.0
    %1158 = vmatprep.subr.mxu0 0.0
    %1159 = vmatpush1.msra.mxu0 0.0
    %1160 = vmatprep.subr.mxu0 0.0
    %1161 = vmatpush1.msra.mxu0 0.0
    %1162 = vmatprep.subr.mxu0 0.0
    %1163 = vmatpush1.msra.mxu0 0.0
    %1164 = vmatprep.subr.mxu0 0.0
    %1165 = vmatpush1.msra.mxu0 0.0
    %1166 = vmatprep.subr.mxu0 0.0
    %1167 = vmatpush1.msra.mxu0 0.0
    %1168 = vmatprep.subr.mxu0 0.0
    %1169 = vmatpush1.msra.mxu0 0.0
    %1170 = vmatprep.subr.mxu0 0.0
    %1171 = vmatpush1.msra.mxu0 0.0
    %1172 = vmatprep.subr.mxu0 0.0
    %1173 = vmatpush1.msra.mxu0 0.0
    %1174 = vmatprep.subr.mxu0 0.0
    %1175 = vmatpush1.msra.mxu0 0.0
    %1176 = vmatprep.subr.mxu0 0.0
    %1177 = vmatpush1.msra.mxu0 0.0
    %1178 = vmatprep.subr.mxu0 0.0
    %1179 = vmatpush1.msra.mxu0 0.0
    %1180 = vmatprep.mubr.f32.mxu0 0.0
    %1181 = vmatmul.mubr.f32.gmra.mrb[0].mxu0 %v1111
    %v1182 = vpop.f32.mrb[0].mxu0
    %v1183 = vadd.f32 0.0, %v1182
    %v1184 = vpop.f32.mrb[0].mxu0
    %1185 = vmatprep.mubr.f32.mxu0 0.0
    %1186 = vmatmul.mubr.f32.gmra.mrb[0].mxu0 %v1114
    %v1187 = vpop.f32.mrb[0].mxu0
    %v1188 = vadd.f32 0.0, %v1187
    %v1189 = vpop.f32.mrb[0].mxu0
    %1190 = vdwg.mxu0
    %v1192 = vlaneseq
    %v1193 = vshrl.u32 %v1192, 7
    %v1194 = vsub.s32 0, %v1193
    %v1195 = vrot.slane %v68, %v1194
    %v1197 = vadd.f32 %v1183, %v1195
    %v1198 = vadd.f32 %v1188, %v1195
    %v1200 = vsel %vm200, %v99, 0
    %v1203 = vsel %vm200, %v100, 0
    %v1206 = vsel %vm200, %v1197, 0
    %v1209 = vsel %vm200, %v1198, 0
    %1211 = vmatprep.subr.mxu0 0.0
    %1212 = vmatpush1.xpose.msra.mxu0 %v1206
    %1213 = vmatprep.subr.mxu0 0.0
    %1214 = vmatpush1.xpose.msra.mxu0 %v1209
    %1215 = vmatprep.subr.mxu0 0.0
    %1216 = vmatpush1.xpose.msra.mxu0 0.0
    %1217 = vmatprep.subr.mxu0 0.0
    %1218 = vmatpush1.xpose.msra.mxu0 0.0
    %1219 = vmatprep.subr.mxu0 0.0
    %1220 = vmatpush1.xpose.msra.mxu0 0.0
    %1221 = vmatprep.subr.mxu0 0.0
    %1222 = vmatpush1.xpose.msra.mxu0 0.0
    %1223 = vmatprep.subr.mxu0 0.0
    %1224 = vmatpush1.xpose.msra.mxu0 0.0
    %1225 = vmatprep.subr.mxu0 0.0
    %1226 = vmatpush1.xpose.msra.mxu0 0.0
    %1227 = vmatprep.subr.mxu0 0.0
    %1228 = vmatpush1.xpose.msra.mxu0 0.0
    %1229 = vmatprep.subr.mxu0 0.0
    %1230 = vmatpush1.xpose.msra.mxu0 0.0
    %1231 = vmatprep.subr.mxu0 0.0
    %1232 = vmatpush1.xpose.msra.mxu0 0.0
    %1233 = vmatprep.subr.mxu0 0.0
    %1234 = vmatpush1.xpose.msra.mxu0 0.0
    %1235 = vmatprep.subr.mxu0 0.0
    %1236 = vmatpush1.xpose.msra.mxu0 0.0
    %1237 = vmatprep.subr.mxu0 0.0
    %1238 = vmatpush1.xpose.msra.mxu0 0.0
    %1239 = vmatprep.subr.mxu0 0.0
    %1240 = vmatpush1.xpose.msra.mxu0 0.0
    %1241 = vmatprep.subr.mxu0 0.0
    %1242 = vmatpush1.xpose.msra.mxu0 0.0
    %1243 = vmatprep.subr.mxu0 0.0
    %1244 = vmatpush1.xpose.msra.mxu0 0.0
    %1245 = vmatprep.subr.mxu0 0.0
    %1246 = vmatpush1.xpose.msra.mxu0 0.0
    %1247 = vmatprep.subr.mxu0 0.0
    %1248 = vmatpush1.xpose.msra.mxu0 0.0
    %1249 = vmatprep.subr.mxu0 0.0
    %1250 = vmatpush1.xpose.msra.mxu0 0.0
    %1251 = vmatprep.subr.mxu0 0.0
    %1252 = vmatpush1.xpose.msra.mxu0 0.0
    %1253 = vmatprep.subr.mxu0 0.0
    %1254 = vmatpush1.xpose.msra.mxu0 0.0
    %1255 = vmatprep.subr.mxu0 0.0
    %1256 = vmatpush1.xpose.msra.mxu0 0.0
    %1257 = vmatprep.subr.mxu0 0.0
    %1258 = vmatpush1.xpose.msra.mxu0 0.0
    %1259 = vmatprep.subr.mxu0 0.0
    %1260 = vmatpush1.xpose.msra.mxu0 0.0
    %1261 = vmatprep.subr.mxu0 0.0
    %1262 = vmatpush1.xpose.msra.mxu0 0.0
    %1263 = vmatprep.subr.mxu0 0.0
    %1264 = vmatpush1.xpose.msra.mxu0 0.0
    %1265 = vmatprep.subr.mxu0 0.0
    %1266 = vmatpush1.xpose.msra.mxu0 0.0
    %1267 = vmatprep.subr.mxu0 0.0
    %1268 = vmatpush1.xpose.msra.mxu0 0.0
    %1269 = vmatprep.subr.mxu0 0.0
    %1270 = vmatpush1.xpose.msra.mxu0 0.0
    %1271 = vmatprep.subr.mxu0 0.0
    %1272 = vmatpush1.xpose.msra.mxu0 0.0
    %1273 = vmatprep.subr.mxu0 0.0
    %1274 = vmatpush1.xpose.msra.mxu0 0.0
    %1275 = vmatprep.mubr.f32.mxu0 0.0
    %1276 = vmatmul.mubr.f32.gmra.mrb[0].mxu0 %v1200
    %v1277 = vpop.f32.mrb[0].mxu0
    %v1278 = vadd.f32 0.0, %v1277
    %v1279 = vpop.f32.mrb[0].mxu0
    %1280 = vmatprep.mubr.f32.mxu0 0.0
    %1281 = vmatmul.mubr.f32.gmra.mrb[0].mxu0 %v1203
    %v1282 = vpop.f32.mrb[0].mxu0
    %v1283 = vadd.f32 0.0, %v1282
    %v1284 = vpop.f32.mrb[0].mxu0
    %1285 = vdwg.mxu0
    %v1287 = vsel %vm200, %v101, 0
    %1289 = vmatprep.subr.mxu0 0.0
    %1290 = vmatpush1.xpose.msra.mxu0 %v1206
    %1291 = vmatprep.subr.mxu0 0.0
    %1292 = vmatpush1.xpose.msra.mxu0 %v1209
    %1293 = vmatprep.subr.mxu0 0.0
    %1294 = vmatpush1.xpose.msra.mxu0 0.0
    %1295 = vmatprep.subr.mxu0 0.0
    %1296 = vmatpush1.xpose.msra.mxu0 0.0
    %1297 = vmatprep.subr.mxu0 0.0
    %1298 = vmatpush1.xpose.msra.mxu0 0.0
    %1299 = vmatprep.subr.mxu0 0.0
    %1300 = vmatpush1.xpose.msra.mxu0 0.0
    %1301 = vmatprep.subr.mxu0 0.0
    %1302 = vmatpush1.xpose.msra.mxu0 0.0
    %1303 = vmatprep.subr.mxu0 0.0
    %1304 = vmatpush1.xpose.msra.mxu0 0.0
    %1305 = vmatprep.subr.mxu0 0.0
    %1306 = vmatpush1.xpose.msra.mxu0 0.0
    %1307 = vmatprep.subr.mxu0 0.0
    %1308 = vmatpush1.xpose.msra.mxu0 0.0
    %1309 = vmatprep.subr.mxu0 0.0
    %1310 = vmatpush1.xpose.msra.mxu0 0.0
    %1311 = vmatprep.subr.mxu0 0.0
    %1312 = vmatpush1.xpose.msra.mxu0 0.0
    %1313 = vmatprep.subr.mxu0 0.0
    %1314 = vmatpush1.xpose.msra.mxu0 0.0
    %1315 = vmatprep.subr.mxu0 0.0
    %1316 = vmatpush1.xpose.msra.mxu0 0.0
    %1317 = vmatprep.subr.mxu0 0.0
    %1318 = vmatpush1.xpose.msra.mxu0 0.0
    %1319 = vmatprep.subr.mxu0 0.0
    %1320 = vmatpush1.xpose.msra.mxu0 0.0
    %1321 = vmatprep.subr.mxu0 0.0
    %1322 = vmatpush1.xpose.msra.mxu0 0.0
    %1323 = vmatprep.subr.mxu0 0.0
    %1324 = vmatpush1.xpose.msra.mxu0 0.0
    %1325 = vmatprep.subr.mxu0 0.0
    %1326 = vmatpush1.xpose.msra.mxu0 0.0
    %1327 = vmatprep.subr.mxu0 0.0
    %1328 = vmatpush1.xpose.msra.mxu0 0.0
    %1329 = vmatprep.subr.mxu0 0.0
    %1330 = vmatpush1.xpose.msra.mxu0 0.0
    %1331 = vmatprep.subr.mxu0 0.0
    %1332 = vmatpush1.xpose.msra.mxu0 0.0
    %1333 = vmatprep.subr.mxu0 0.0
    %1334 = vmatpush1.xpose.msra.mxu0 0.0
    %1335 = vmatprep.subr.mxu0 0.0
    %1336 = vmatpush1.xpose.msra.mxu0 0.0
    %1337 = vmatprep.subr.mxu0 0.0
    %1338 = vmatpush1.xpose.msra.mxu0 0.0
    %1339 = vmatprep.subr.mxu0 0.0
    %1340 = vmatpush1.xpose.msra.mxu0 0.0
    %1341 = vmatprep.subr.mxu0 0.0
    %1342 = vmatpush1.xpose.msra.mxu0 0.0
    %1343 = vmatprep.subr.mxu0 0.0
    %1344 = vmatpush1.xpose.msra.mxu0 0.0
    %1345 = vmatprep.subr.mxu0 0.0
    %1346 = vmatpush1.xpose.msra.mxu0 0.0
    %1347 = vmatprep.subr.mxu0 0.0
    %1348 = vmatpush1.xpose.msra.mxu0 0.0
    %1349 = vmatprep.subr.mxu0 0.0
    %1350 = vmatpush1.xpose.msra.mxu0 0.0
    %1351 = vmatprep.subr.mxu0 0.0
    %1352 = vmatpush1.xpose.msra.mxu0 0.0
    %1353 = vmatprep.mubr.f32.mxu0 0.0
    %1354 = vmatmul.mubr.f32.gmra.mrb[0].mxu0 %v1287
    %v1355 = vpop.f32.mrb[0].mxu0
    %v1356 = vadd.f32 0.0, %v1355
    %v1357 = vpop.f32.mrb[0].mxu0
    %1358 = vdwg.mxu0
    %v1359 = vlaneseq
    %v1360 = vand.u32 %v1359, 127
    %vm1361 = vcmp.lt.s32.totalorder %v1360, 0
    %v1362 = vsub.s32 0, %v1360
    %v1363 = vsel %vm1361, %v1362, %v1360
    %v1364 = vshrl.u32 %v1363, 1
    %v1365 = vand.u32 %v1363, 1
    %v1366 = vsub.s32 0, %v1365
    %v1367 = vsel %vm1361, %v1366, %v1365
    %vm1368 = vcmp.ne.s32.totalorder %v1367, 0
    %vm1369 = vcmp.lt.s32.totalorder %v1367, 0
    %vm1370 = vmand %vm1369, %vm1368
    %v1371 = vadd.s32 %v1367, 2
    %v1372 = vsel %vm1370, %v1371, %v1367
    %v1373 = vlaneseq
    %v1374 = vshrl.u32 %v1373, 7
    %vm1375 = vcmp.eq.s32.totalorder %v1372, %v1374
    %v1376 = vsel %vm1375, 0.0, -1e+30
    %v1377 = vlaneseq
    %v1378 = vshrl.u32 %v1377, 7
    %v1379 = vsub.s32 0, %v1378
    %v1380 = vrot.slane %v1356, %v1379
    %v1381 = vadd.f32 %v1376, %v1380
    %1384 = vrot.lane.b32.xlu0 %v71, 16
    %v1385 = vpop.permute.xlu0 %1384
    %1386 = vrot.lane.b32.xlu0 %v72, 16
    %v1387 = vpop.permute.xlu0 %1386
    %v1390 = vsel %vm200, %v1278, %v1385
    %v1391 = vsel %vm200, %v1283, %v1387
    %v1392 = vrot.slane %v52, 6
    %v1393 = vsel %vm114, %v1392, 0
    %v1396 = vsel %vm121, %v58, 0
    %1398 = vmatprep.subr.mxu0 0.0
    %1399 = vmatpush1.msra.mxu0 %v1396
    %1400 = vmatprep.subr.mxu0 0.0
    %1401 = vmatpush1.msra.mxu0 0.0
    %1402 = vmatprep.subr.mxu0 0.0
    %1403 = vmatpush1.msra.mxu0 0.0
    %1404 = vmatprep.subr.mxu0 0.0
    %1405 = vmatpush1.msra.mxu0 0.0
    %1406 = vmatprep.subr.mxu0 0.0
    %1407 = vmatpush1.msra.mxu0 0.0
    %1408 = vmatprep.subr.mxu0 0.0
    %1409 = vmatpush1.msra.mxu0 0.0
    %1410 = vmatprep.subr.mxu0 0.0
    %1411 = vmatpush1.msra.mxu0 0.0
    %1412 = vmatprep.subr.mxu0 0.0
    %1413 = vmatpush1.msra.mxu0 0.0
    %1414 = vmatprep.subr.mxu0 0.0
    %1415 = vmatpush1.msra.mxu0 0.0
    %1416 = vmatprep.subr.mxu0 0.0
    %1417 = vmatpush1.msra.mxu0 0.0
    %1418 = vmatprep.subr.mxu0 0.0
    %1419 = vmatpush1.msra.mxu0 0.0
    %1420 = vmatprep.subr.mxu0 0.0
    %1421 = vmatpush1.msra.mxu0 0.0
    %1422 = vmatprep.subr.mxu0 0.0
    %1423 = vmatpush1.msra.mxu0 0.0
    %1424 = vmatprep.subr.mxu0 0.0
    %1425 = vmatpush1.msra.mxu0 0.0
    %1426 = vmatprep.subr.mxu0 0.0
    %1427 = vmatpush1.msra.mxu0 0.0
    %1428 = vmatprep.subr.mxu0 0.0
    %1429 = vmatpush1.msra.mxu0 0.0
    %1430 = vmatprep.subr.mxu0 0.0
    %1431 = vmatpush1.msra.mxu0 0.0
    %1432 = vmatprep.subr.mxu0 0.0
    %1433 = vmatpush1.msra.mxu0 0.0
    %1434 = vmatprep.subr.mxu0 0.0
    %1435 = vmatpush1.msra.mxu0 0.0
    %1436 = vmatprep.subr.mxu0 0.0
    %1437 = vmatpush1.msra.mxu0 0.0
    %1438 = vmatprep.subr.mxu0 0.0
    %1439 = vmatpush1.msra.mxu0 0.0
    %1440 = vmatprep.subr.mxu0 0.0
    %1441 = vmatpush1.msra.mxu0 0.0
    %1442 = vmatprep.subr.mxu0 0.0
    %1443 = vmatpush1.msra.mxu0 0.0
    %1444 = vmatprep.subr.mxu0 0.0
    %1445 = vmatpush1.msra.mxu0 0.0
    %1446 = vmatprep.subr.mxu0 0.0
    %1447 = vmatpush1.msra.mxu0 0.0
    %1448 = vmatprep.subr.mxu0 0.0
    %1449 = vmatpush1.msra.mxu0 0.0
    %1450 = vmatprep.subr.mxu0 0.0
    %1451 = vmatpush1.msra.mxu0 0.0
    %1452 = vmatprep.subr.mxu0 0.0
    %1453 = vmatpush1.msra.mxu0 0.0
    %1454 = vmatprep.subr.mxu0 0.0
    %1455 = vmatpush1.msra.mxu0 0.0
    %1456 = vmatprep.subr.mxu0 0.0
    %1457 = vmatpush1.msra.mxu0 0.0
    %1458 = vmatprep.subr.mxu0 0.0
    %1459 = vmatpush1.msra.mxu0 0.0
    %1460 = vmatprep.subr.mxu0 0.0
    %1461 = vmatpush1.msra.mxu0 0.0
    %1462 = vmatprep.mubr.f32.mxu0 0.0
    %1463 = vmatmul.mubr.f32.gmra.mrb[0].mxu0 %v1393
    %v1464 = vpop.f32.mrb[0].mxu0
    %v1465 = vadd.f32 0.0, %v1464
    %v1466 = vpop.f32.mrb[0].mxu0
    %1467 = vdwg.mxu0
    %v1468 = vrot.slane %v1092, 6
    %1469 = vrot.lane.b32.xlu0 %v1468, 112
    %v1470 = vpop.permute.xlu0 %1469
    %v1471 = vsel %vm200, %v1470, 0
    %1473 = vmatprep.subr.mxu0 0.0
    %1474 = vmatpush1.msra.mxu0 %v59
    %1475 = vmatprep.subr.mxu0 0.0
    %1476 = vmatpush1.msra.mxu0 %v60
    %1477 = vmatprep.subr.mxu0 0.0
    %1478 = vmatpush1.msra.mxu0 0.0
    %1479 = vmatprep.subr.mxu0 0.0
    %1480 = vmatpush1.msra.mxu0 0.0
    %1481 = vmatprep.subr.mxu0 0.0
    %1482 = vmatpush1.msra.mxu0 0.0
    %1483 = vmatprep.subr.mxu0 0.0
    %1484 = vmatpush1.msra.mxu0 0.0
    %1485 = vmatprep.subr.mxu0 0.0
    %1486 = vmatpush1.msra.mxu0 0.0
    %1487 = vmatprep.subr.mxu0 0.0
    %1488 = vmatpush1.msra.mxu0 0.0
    %1489 = vmatprep.subr.mxu0 0.0
    %1490 = vmatpush1.msra.mxu0 0.0
    %1491 = vmatprep.subr.mxu0 0.0
    %1492 = vmatpush1.msra.mxu0 0.0
    %1493 = vmatprep.subr.mxu0 0.0
    %1494 = vmatpush1.msra.mxu0 0.0
    %1495 = vmatprep.subr.mxu0 0.0
    %1496 = vmatpush1.msra.mxu0 0.0
    %1497 = vmatprep.subr.mxu0 0.0
    %1498 = vmatpush1.msra.mxu0 0.0
    %1499 = vmatprep.subr.mxu0 0.0
    %1500 = vmatpush1.msra.mxu0 0.0
    %1501 = vmatprep.subr.mxu0 0.0
    %1502 = vmatpush1.msra.mxu0 0.0
    %1503 = vmatprep.subr.mxu0 0.0
    %1504 = vmatpush1.msra.mxu0 0.0
    %1505 = vmatprep.subr.mxu0 0.0
    %1506 = vmatpush1.msra.mxu0 0.0
    %1507 = vmatprep.subr.mxu0 0.0
    %1508 = vmatpush1.msra.mxu0 0.0
    %1509 = vmatprep.subr.mxu0 0.0
    %1510 = vmatpush1.msra.mxu0 0.0
    %1511 = vmatprep.subr.mxu0 0.0
    %1512 = vmatpush1.msra.mxu0 0.0
    %1513 = vmatprep.subr.mxu0 0.0
    %1514 = vmatpush1.msra.mxu0 0.0
    %1515 = vmatprep.subr.mxu0 0.0
    %1516 = vmatpush1.msra.mxu0 0.0
    %1517 = vmatprep.subr.mxu0 0.0
    %1518 = vmatpush1.msra.mxu0 0.0
    %1519 = vmatprep.subr.mxu0 0.0
    %1520 = vmatpush1.msra.mxu0 0.0
    %1521 = vmatprep.subr.mxu0 0.0
    %1522 = vmatpush1.msra.mxu0 0.0
    %1523 = vmatprep.subr.mxu0 0.0
    %1524 = vmatpush1.msra.mxu0 0.0
    %1525 = vmatprep.subr.mxu0 0.0
    %1526 = vmatpush1.msra.mxu0 0.0
    %1527 = vmatprep.subr.mxu0 0.0
    %1528 = vmatpush1.msra.mxu0 0.0
    %1529 = vmatprep.subr.mxu0 0.0
    %1530 = vmatpush1.msra.mxu0 0.0
    %1531 = vmatprep.subr.mxu0 0.0
    %1532 = vmatpush1.msra.mxu0 0.0
    %1533 = vmatprep.subr.mxu0 0.0
    %1534 = vmatpush1.msra.mxu0 0.0
    %1535 = vmatprep.subr.mxu0 0.0
    %1536 = vmatpush1.msra.mxu0 0.0
    %1537 = vmatprep.mubr.f32.mxu0 0.0
    %1538 = vmatmul.mubr.f32.gmra.mrb[0].mxu0 %v1471
    %v1539 = vpop.f32.mrb[0].mxu0
    %v1540 = vadd.f32 0.0, %v1539
    %v1541 = vpop.f32.mrb[0].mxu0
    %1542 = vdwg.mxu0
    %v1543 = vadd.f32 %v1465, %v1540
    %v1544 = vadd.f32 %v1543, %v85
    %v1545 = vxor.u32 %v1544, 2147483648
    %v1546 = vmul.f32 %v1545, 1.442695
    %v1547 = vpow.pop %v1546
    %v1548 = vadd.f32 %v1547, 1.0
    %v1549 = vrcp.pop %v1548
    %v1550 = vmul.f32 1.0, %v1549
    %v1551 = vadd.f32 %v1465, %v91
    %v1552 = vadd.f32 %v1540, %v97
    %1554 = vrot.lane.b32.xlu0 %v1552, 96
    %v1555 = vpop.permute.xlu0 %1554
    %v1557 = vmul.f32 %v1550, %v1555
    %1559 = vrot.lane.b32.xlu0 %v1557, 32
    %v1560 = vpop.permute.xlu0 %1559
    %v1562 = vadd.f32 %v1551, %v1560
    %v1563 = vtanh.pop %v1562
    %v1564 = vsub.f32 1.0, %v1550
    %1566 = vrot.lane.b32.xlu0 %v1563, 112
    %v1567 = vpop.permute.xlu0 %1566
    %v1569 = vmul.f32 %v1564, %v1567
    %v1571 = vmul.f32 %v1550, %v1468
    %v1572 = vadd.f32 %v1569, %v1571
    %1574 = vrot.lane.b32.xlu0 %v1572, 112
    %v1575 = vpop.permute.xlu0 %1574
    %v1576 = vsel %vm200, %v1575, 0
    %1578 = vmatprep.subr.mxu0 0.0
    %1579 = vmatpush1.msra.mxu0 %v1390
    %1580 = vmatprep.subr.mxu0 0.0
    %1581 = vmatpush1.msra.mxu0 %v1391
    %1582 = vmatprep.subr.mxu0 0.0
    %1583 = vmatpush1.msra.mxu0 0.0
    %1584 = vmatprep.subr.mxu0 0.0
    %1585 = vmatpush1.msra.mxu0 0.0
    %1586 = vmatprep.subr.mxu0 0.0
    %1587 = vmatpush1.msra.mxu0 0.0
    %1588 = vmatprep.subr.mxu0 0.0
    %1589 = vmatpush1.msra.mxu0 0.0
    %1590 = vmatprep.subr.mxu0 0.0
    %1591 = vmatpush1.msra.mxu0 0.0
    %1592 = vmatprep.subr.mxu0 0.0
    %1593 = vmatpush1.msra.mxu0 0.0
    %1594 = vmatprep.subr.mxu0 0.0
    %1595 = vmatpush1.msra.mxu0 0.0
    %1596 = vmatprep.subr.mxu0 0.0
    %1597 = vmatpush1.msra.mxu0 0.0
    %1598 = vmatprep.subr.mxu0 0.0
    %1599 = vmatpush1.msra.mxu0 0.0
    %1600 = vmatprep.subr.mxu0 0.0
    %1601 = vmatpush1.msra.mxu0 0.0
    %1602 = vmatprep.subr.mxu0 0.0
    %1603 = vmatpush1.msra.mxu0 0.0
    %1604 = vmatprep.subr.mxu0 0.0
    %1605 = vmatpush1.msra.mxu0 0.0
    %1606 = vmatprep.subr.mxu0 0.0
    %1607 = vmatpush1.msra.mxu0 0.0
    %1608 = vmatprep.subr.mxu0 0.0
    %1609 = vmatpush1.msra.mxu0 0.0
    %1610 = vmatprep.subr.mxu0 0.0
    %1611 = vmatpush1.msra.mxu0 0.0
    %1612 = vmatprep.subr.mxu0 0.0
    %1613 = vmatpush1.msra.mxu0 0.0
    %1614 = vmatprep.subr.mxu0 0.0
    %1615 = vmatpush1.msra.mxu0 0.0
    %1616 = vmatprep.subr.mxu0 0.0
    %1617 = vmatpush1.msra.mxu0 0.0
    %1618 = vmatprep.subr.mxu0 0.0
    %1619 = vmatpush1.msra.mxu0 0.0
    %1620 = vmatprep.subr.mxu0 0.0
    %1621 = vmatpush1.msra.mxu0 0.0
    %1622 = vmatprep.subr.mxu0 0.0
    %1623 = vmatpush1.msra.mxu0 0.0
    %1624 = vmatprep.subr.mxu0 0.0
    %1625 = vmatpush1.msra.mxu0 0.0
    %1626 = vmatprep.subr.mxu0 0.0
    %1627 = vmatpush1.msra.mxu0 0.0
    %1628 = vmatprep.subr.mxu0 0.0
    %1629 = vmatpush1.msra.mxu0 0.0
    %1630 = vmatprep.subr.mxu0 0.0
    %1631 = vmatpush1.msra.mxu0 0.0
    %1632 = vmatprep.subr.mxu0 0.0
    %1633 = vmatpush1.msra.mxu0 0.0
    %1634 = vmatprep.subr.mxu0 0.0
    %1635 = vmatpush1.msra.mxu0 0.0
    %1636 = vmatprep.subr.mxu0 0.0
    %1637 = vmatpush1.msra.mxu0 0.0
    %1638 = vmatprep.subr.mxu0 0.0
    %1639 = vmatpush1.msra.mxu0 0.0
    %1640 = vmatprep.subr.mxu0 0.0
    %1641 = vmatpush1.msra.mxu0 0.0
    %1642 = vmatprep.mubr.f32.mxu0 0.0
    %1643 = vmatmul.mubr.f32.gmra.mrb[0].mxu0 %v1576
    %v1644 = vpop.f32.mrb[0].mxu0
    %v1645 = vadd.f32 0.0, %v1644
    %v1646 = vpop.f32.mrb[0].mxu0
    %1647 = vdwg.mxu0
    %v1648 = vadd.f32 %v1645, %v1381
    %v1649 = vsel %vm306, %v1648, -inf
    %1650 = vmax.xlane.f32.xlu0 %v1649
    %v1651 = vpop.xlane.xlu0 %1650
    %v1652 = vsub.f32 %v1648, %v1651
    %v1653 = vmul.f32 %v1652, 1.442695
    %v1654 = vpow.pop %v1653
    %v1655 = vsel %vm306, %v1654, 0.0
    %1656 = vadd.xlane.f32.xlu0 %v1655
    %v1657 = vpop.xlane.xlu0 %1656
    %1660 = vrot.lane.b32.xlu0 %v1183, 112
    %v1661 = vpop.permute.xlu0 %1660
    %1662 = vrot.lane.b32.xlu0 %v1188, 112
    %v1663 = vpop.permute.xlu0 %1662
    %v1667 = vsel %vm200, %v1654, 0
    %1669 = vmatprep.subr.mxu0 0.0
    %1670 = vmatpush1.msra.mxu0 %v1661
    %1671 = vmatprep.subr.mxu0 0.0
    %1672 = vmatpush1.msra.mxu0 %v1663
    %1673 = vmatprep.subr.mxu0 0.0
    %1674 = vmatpush1.msra.mxu0 0.0
    %1675 = vmatprep.subr.mxu0 0.0
    %1676 = vmatpush1.msra.mxu0 0.0
    %1677 = vmatprep.subr.mxu0 0.0
    %1678 = vmatpush1.msra.mxu0 0.0
    %1679 = vmatprep.subr.mxu0 0.0
    %1680 = vmatpush1.msra.mxu0 0.0
    %1681 = vmatprep.subr.mxu0 0.0
    %1682 = vmatpush1.msra.mxu0 0.0
    %1683 = vmatprep.subr.mxu0 0.0
    %1684 = vmatpush1.msra.mxu0 0.0
    %1685 = vmatprep.subr.mxu0 0.0
    %1686 = vmatpush1.msra.mxu0 0.0
    %1687 = vmatprep.subr.mxu0 0.0
    %1688 = vmatpush1.msra.mxu0 0.0
    %1689 = vmatprep.subr.mxu0 0.0
    %1690 = vmatpush1.msra.mxu0 0.0
    %1691 = vmatprep.subr.mxu0 0.0
    %1692 = vmatpush1.msra.mxu0 0.0
    %1693 = vmatprep.subr.mxu0 0.0
    %1694 = vmatpush1.msra.mxu0 0.0
    %1695 = vmatprep.subr.mxu0 0.0
    %1696 = vmatpush1.msra.mxu0 0.0
    %1697 = vmatprep.subr.mxu0 0.0
    %1698 = vmatpush1.msra.mxu0 0.0
    %1699 = vmatprep.subr.mxu0 0.0
    %1700 = vmatpush1.msra.mxu0 0.0
    %1701 = vmatprep.subr.mxu0 0.0
    %1702 = vmatpush1.msra.mxu0 0.0
    %1703 = vmatprep.subr.mxu0 0.0
    %1704 = vmatpush1.msra.mxu0 0.0
    %1705 = vmatprep.subr.mxu0 0.0
    %1706 = vmatpush1.msra.mxu0 0.0
    %1707 = vmatprep.subr.mxu0 0.0
    %1708 = vmatpush1.msra.mxu0 0.0
    %1709 = vmatprep.subr.mxu0 0.0
    %1710 = vmatpush1.msra.mxu0 0.0
    %1711 = vmatprep.subr.mxu0 0.0
    %1712 = vmatpush1.msra.mxu0 0.0
    %1713 = vmatprep.subr.mxu0 0.0
    %1714 = vmatpush1.msra.mxu0 0.0
    %1715 = vmatprep.subr.mxu0 0.0
    %1716 = vmatpush1.msra.mxu0 0.0
    %1717 = vmatprep.subr.mxu0 0.0
    %1718 = vmatpush1.msra.mxu0 0.0
    %1719 = vmatprep.subr.mxu0 0.0
    %1720 = vmatpush1.msra.mxu0 0.0
    %1721 = vmatprep.subr.mxu0 0.0
    %1722 = vmatpush1.msra.mxu0 0.0
    %1723 = vmatprep.subr.mxu0 0.0
    %1724 = vmatpush1.msra.mxu0 0.0
    %1725 = vmatprep.subr.mxu0 0.0
    %1726 = vmatpush1.msra.mxu0 0.0
    %1727 = vmatprep.subr.mxu0 0.0
    %1728 = vmatpush1.msra.mxu0 0.0
    %1729 = vmatprep.subr.mxu0 0.0
    %1730 = vmatpush1.msra.mxu0 0.0
    %1731 = vmatprep.subr.mxu0 0.0
    %1732 = vmatpush1.msra.mxu0 0.0
    %1733 = vmatprep.mubr.f32.mxu0 0.0
    %1734 = vmatmul.mubr.f32.gmra.mrb[0].mxu0 %v1667
    %v1735 = vpop.f32.mrb[0].mxu0
    %v1736 = vadd.f32 0.0, %v1735
    %v1737 = vpop.f32.mrb[0].mxu0
    %1738 = vdwg.mxu0
    %v1739 = vrcp.pop %v1657
    %v1740 = vmul.f32 1.0, %v1739
    %v1741 = vmul.f32 %v1736, %v1740
    %1743 = vrot.lane.b32.xlu0 %v1645, 112
    %v1744 = vpop.permute.xlu0 %1743
    %v1746 = vadd.f32 %v1741, %v1744
    %v1747 = vadd.f32 %v1746, %v106
    %vm1748 = vcmask 25600
    %1749 = vst.msk [vmem:[#allocation3] sm:$0x3] %vm1748, %v1747
    %v1751 = vsel %vm114, %v1747, 0
    %1753 = vmatprep.subr.mxu0 0.0
    %1754 = vmatpush1.msra.mxu0 %v1396
    %1755 = vmatprep.subr.mxu0 0.0
    %1756 = vmatpush1.msra.mxu0 0.0
    %1757 = vmatprep.subr.mxu0 0.0
    %1758 = vmatpush1.msra.mxu0 0.0
    %1759 = vmatprep.subr.mxu0 0.0
    %1760 = vmatpush1.msra.mxu0 0.0
    %1761 = vmatprep.subr.mxu0 0.0
    %1762 = vmatpush1.msra.mxu0 0.0
    %1763 = vmatprep.subr.mxu0 0.0
    %1764 = vmatpush1.msra.mxu0 0.0
    %1765 = vmatprep.subr.mxu0 0.0
    %1766 = vmatpush1.msra.mxu0 0.0
    %1767 = vmatprep.subr.mxu0 0.0
    %1768 = vmatpush1.msra.mxu0 0.0
    %1769 = vmatprep.subr.mxu0 0.0
    %1770 = vmatpush1.msra.mxu0 0.0
    %1771 = vmatprep.subr.mxu0 0.0
    %1772 = vmatpush1.msra.mxu0 0.0
    %1773 = vmatprep.subr.mxu0 0.0
    %1774 = vmatpush1.msra.mxu0 0.0
    %1775 = vmatprep.subr.mxu0 0.0
    %1776 = vmatpush1.msra.mxu0 0.0
    %1777 = vmatprep.subr.mxu0 0.0
    %1778 = vmatpush1.msra.mxu0 0.0
    %1779 = vmatprep.subr.mxu0 0.0
    %1780 = vmatpush1.msra.mxu0 0.0
    %1781 = vmatprep.subr.mxu0 0.0
    %1782 = vmatpush1.msra.mxu0 0.0
    %1783 = vmatprep.subr.mxu0 0.0
    %1784 = vmatpush1.msra.mxu0 0.0
    %1785 = vmatprep.subr.mxu0 0.0
    %1786 = vmatpush1.msra.mxu0 0.0
    %1787 = vmatprep.subr.mxu0 0.0
    %1788 = vmatpush1.msra.mxu0 0.0
    %1789 = vmatprep.subr.mxu0 0.0
    %1790 = vmatpush1.msra.mxu0 0.0
    %1791 = vmatprep.subr.mxu0 0.0
    %1792 = vmatpush1.msra.mxu0 0.0
    %1793 = vmatprep.subr.mxu0 0.0
    %1794 = vmatpush1.msra.mxu0 0.0
    %1795 = vmatprep.subr.mxu0 0.0
    %1796 = vmatpush1.msra.mxu0 0.0
    %1797 = vmatprep.subr.mxu0 0.0
    %1798 = vmatpush1.msra.mxu0 0.0
    %1799 = vmatprep.subr.mxu0 0.0
    %1800 = vmatpush1.msra.mxu0 0.0
    %1801 = vmatprep.subr.mxu0 0.0
    %1802 = vmatpush1.msra.mxu0 0.0
    %1803 = vmatprep.subr.mxu0 0.0
    %1804 = vmatpush1.msra.mxu0 0.0
    %1805 = vmatprep.subr.mxu0 0.0
    %1806 = vmatpush1.msra.mxu0 0.0
    %1807 = vmatprep.subr.mxu0 0.0
    %1808 = vmatpush1.msra.mxu0 0.0
    %1809 = vmatprep.subr.mxu0 0.0
    %1810 = vmatpush1.msra.mxu0 0.0
    %1811 = vmatprep.subr.mxu0 0.0
    %1812 = vmatpush1.msra.mxu0 0.0
    %1813 = vmatprep.subr.mxu0 0.0
    %1814 = vmatpush1.msra.mxu0 0.0
    %1815 = vmatprep.subr.mxu0 0.0
    %1816 = vmatpush1.msra.mxu0 0.0
    %1817 = vmatprep.mubr.f32.mxu0 0.0
    %1818 = vmatmul.mubr.f32.gmra.mrb[0].mxu0 %v1751
    %v1819 = vpop.f32.mrb[0].mxu0
    %v1820 = vadd.f32 0.0, %v1819
    %v1821 = vpop.f32.mrb[0].mxu0
    %1822 = vdwg.mxu0
    %1823 = vmatprep.subr.mxu0 0.0
    %1824 = vmatpush1.msra.mxu0 %v59
    %1825 = vmatprep.subr.mxu0 0.0
    %1826 = vmatpush1.msra.mxu0 %v60
    %1827 = vmatprep.subr.mxu0 0.0
    %1828 = vmatpush1.msra.mxu0 0.0
    %1829 = vmatprep.subr.mxu0 0.0
    %1830 = vmatpush1.msra.mxu0 0.0
    %1831 = vmatprep.subr.mxu0 0.0
    %1832 = vmatpush1.msra.mxu0 0.0
    %1833 = vmatprep.subr.mxu0 0.0
    %1834 = vmatpush1.msra.mxu0 0.0
    %1835 = vmatprep.subr.mxu0 0.0
    %1836 = vmatpush1.msra.mxu0 0.0
    %1837 = vmatprep.subr.mxu0 0.0
    %1838 = vmatpush1.msra.mxu0 0.0
    %1839 = vmatprep.subr.mxu0 0.0
    %1840 = vmatpush1.msra.mxu0 0.0
    %1841 = vmatprep.subr.mxu0 0.0
    %1842 = vmatpush1.msra.mxu0 0.0
    %1843 = vmatprep.subr.mxu0 0.0
    %1844 = vmatpush1.msra.mxu0 0.0
    %1845 = vmatprep.subr.mxu0 0.0
    %1846 = vmatpush1.msra.mxu0 0.0
    %1847 = vmatprep.subr.mxu0 0.0
    %1848 = vmatpush1.msra.mxu0 0.0
    %1849 = vmatprep.subr.mxu0 0.0
    %1850 = vmatpush1.msra.mxu0 0.0
    %1851 = vmatprep.subr.mxu0 0.0
    %1852 = vmatpush1.msra.mxu0 0.0
    %1853 = vmatprep.subr.mxu0 0.0
    %1854 = vmatpush1.msra.mxu0 0.0
    %1855 = vmatprep.subr.mxu0 0.0
    %1856 = vmatpush1.msra.mxu0 0.0
    %1857 = vmatprep.subr.mxu0 0.0
    %1858 = vmatpush1.msra.mxu0 0.0
    %1859 = vmatprep.subr.mxu0 0.0
    %1860 = vmatpush1.msra.mxu0 0.0
    %1861 = vmatprep.subr.mxu0 0.0
    %1862 = vmatpush1.msra.mxu0 0.0
    %1863 = vmatprep.subr.mxu0 0.0
    %1864 = vmatpush1.msra.mxu0 0.0
    %1865 = vmatprep.subr.mxu0 0.0
    %1866 = vmatpush1.msra.mxu0 0.0
    %1867 = vmatprep.subr.mxu0 0.0
    %1868 = vmatpush1.msra.mxu0 0.0
    %1869 = vmatprep.subr.mxu0 0.0
    %1870 = vmatpush1.msra.mxu0 0.0
    %1871 = vmatprep.subr.mxu0 0.0
    %1872 = vmatpush1.msra.mxu0 0.0
    %1873 = vmatprep.subr.mxu0 0.0
    %1874 = vmatpush1.msra.mxu0 0.0
    %1875 = vmatprep.subr.mxu0 0.0
    %1876 = vmatpush1.msra.mxu0 0.0
    %1877 = vmatprep.subr.mxu0 0.0
    %1878 = vmatpush1.msra.mxu0 0.0
    %1879 = vmatprep.subr.mxu0 0.0
    %1880 = vmatpush1.msra.mxu0 0.0
    %1881 = vmatprep.subr.mxu0 0.0
    %1882 = vmatpush1.msra.mxu0 0.0
    %1883 = vmatprep.subr.mxu0 0.0
    %1884 = vmatpush1.msra.mxu0 0.0
    %1885 = vmatprep.subr.mxu0 0.0
    %1886 = vmatpush1.msra.mxu0 0.0
    %1887 = vmatprep.mubr.f32.mxu0 0.0
    %1888 = vmatmul.mubr.f32.gmra.mrb[0].mxu0 %v1576
    %v1889 = vpop.f32.mrb[0].mxu0
    %v1890 = vadd.f32 0.0, %v1889
    %v1891 = vpop.f32.mrb[0].mxu0
    %1892 = vdwg.mxu0
    %v1893 = vadd.f32 %v1820, %v1890
    %v1894 = vadd.f32 %v1893, %v85
    %v1895 = vxor.u32 %v1894, 2147483648
    %v1896 = vmul.f32 %v1895, 1.442695
    %v1897 = vpow.pop %v1896
    %v1898 = vadd.f32 %v1897, 1.0
    %v1899 = vrcp.pop %v1898
    %v1900 = vmul.f32 1.0, %v1899
    %v1901 = vadd.f32 %v1820, %v91
    %v1902 = vadd.f32 %v1890, %v97
    %1904 = vrot.lane.b32.xlu0 %v1902, 96
    %v1905 = vpop.permute.xlu0 %1904
    %v1907 = vmul.f32 %v1900, %v1905
    %1909 = vrot.lane.b32.xlu0 %v1907, 32
    %v1910 = vpop.permute.xlu0 %1909
    %v1912 = vadd.f32 %v1901, %v1910
    %v1913 = vtanh.pop %v1912
    %v1914 = vsub.f32 1.0, %v1900
    %1916 = vrot.lane.b32.xlu0 %v1913, 112
    %v1917 = vpop.permute.xlu0 %1916
    %v1919 = vmul.f32 %v1914, %v1917
    %v1920 = vmul.f32 %v1900, %v1572
    %v1921 = vadd.f32 %v1919, %v1920
    %1923 = vrot.lane.b32.xlu0 %v1921, 112
    %v1924 = vpop.permute.xlu0 %1923
    %v1925 = vsel %vm200, %v1924, 0
    %1927 = vmatprep.subr.mxu0 0.0
    %1928 = vmatpush1.msra.mxu0 %v1390
    %1929 = vmatprep.subr.mxu0 0.0
    %1930 = vmatpush1.msra.mxu0 %v1391
    %1931 = vmatprep.subr.mxu0 0.0
    %1932 = vmatpush1.msra.mxu0 0.0
    %1933 = vmatprep.subr.mxu0 0.0
    %1934 = vmatpush1.msra.mxu0 0.0
    %1935 = vmatprep.subr.mxu0 0.0
    %1936 = vmatpush1.msra.mxu0 0.0
    %1937 = vmatprep.subr.mxu0 0.0
    %1938 = vmatpush1.msra.mxu0 0.0
    %1939 = vmatprep.subr.mxu0 0.0
    %1940 = vmatpush1.msra.mxu0 0.0
    %1941 = vmatprep.subr.mxu0 0.0
    %1942 = vmatpush1.msra.mxu0 0.0
    %1943 = vmatprep.subr.mxu0 0.0
    %1944 = vmatpush1.msra.mxu0 0.0
    %1945 = vmatprep.subr.mxu0 0.0
    %1946 = vmatpush1.msra.mxu0 0.0
    %1947 = vmatprep.subr.mxu0 0.0
    %1948 = vmatpush1.msra.mxu0 0.0
    %1949 = vmatprep.subr.mxu0 0.0
    %1950 = vmatpush1.msra.mxu0 0.0
    %1951 = vmatprep.subr.mxu0 0.0
    %1952 = vmatpush1.msra.mxu0 0.0
    %1953 = vmatprep.subr.mxu0 0.0
    %1954 = vmatpush1.msra.mxu0 0.0
    %1955 = vmatprep.subr.mxu0 0.0
    %1956 = vmatpush1.msra.mxu0 0.0
    %1957 = vmatprep.subr.mxu0 0.0
    %1958 = vmatpush1.msra.mxu0 0.0
    %1959 = vmatprep.subr.mxu0 0.0
    %1960 = vmatpush1.msra.mxu0 0.0
    %1961 = vmatprep.subr.mxu0 0.0
    %1962 = vmatpush1.msra.mxu0 0.0
    %1963 = vmatprep.subr.mxu0 0.0
    %1964 = vmatpush1.msra.mxu0 0.0
    %1965 = vmatprep.subr.mxu0 0.0
    %1966 = vmatpush1.msra.mxu0 0.0
    %1967 = vmatprep.subr.mxu0 0.0
    %1968 = vmatpush1.msra.mxu0 0.0
    %1969 = vmatprep.subr.mxu0 0.0
    %1970 = vmatpush1.msra.mxu0 0.0
    %1971 = vmatprep.subr.mxu0 0.0
    %1972 = vmatpush1.msra.mxu0 0.0
    %1973 = vmatprep.subr.mxu0 0.0
    %1974 = vmatpush1.msra.mxu0 0.0
    %1975 = vmatprep.subr.mxu0 0.0
    %1976 = vmatpush1.msra.mxu0 0.0
    %1977 = vmatprep.subr.mxu0 0.0
    %1978 = vmatpush1.msra.mxu0 0.0
    %1979 = vmatprep.subr.mxu0 0.0
    %1980 = vmatpush1.msra.mxu0 0.0
    %1981 = vmatprep.subr.mxu0 0.0
    %1982 = vmatpush1.msra.mxu0 0.0
    %1983 = vmatprep.subr.mxu0 0.0
    %1984 = vmatpush1.msra.mxu0 0.0
    %1985 = vmatprep.subr.mxu0 0.0
    %1986 = vmatpush1.msra.mxu0 0.0
    %1987 = vmatprep.subr.mxu0 0.0
    %1988 = vmatpush1.msra.mxu0 0.0
    %1989 = vmatprep.subr.mxu0 0.0
    %1990 = vmatpush1.msra.mxu0 0.0
    %1991 = vmatprep.mubr.f32.mxu0 0.0
    %1992 = vmatmul.mubr.f32.gmra.mrb[0].mxu0 %v1925
    %v1993 = vpop.f32.mrb[0].mxu0
    %v1994 = vadd.f32 0.0, %v1993
    %v1995 = vpop.f32.mrb[0].mxu0
    %1996 = vdwg.mxu0
    %v1997 = vadd.f32 %v1994, %v1381
    %v1998 = vsel %vm306, %v1997, -inf
    %1999 = vmax.xlane.f32.xlu0 %v1998
    %v2000 = vpop.xlane.xlu0 %1999
    %v2001 = vsub.f32 %v1997, %v2000
    %v2002 = vmul.f32 %v2001, 1.442695
    %v2003 = vpow.pop %v2002
    %v2004 = vsel %vm306, %v2003, 0.0
    %2005 = vadd.xlane.f32.xlu0 %v2004
    %v2006 = vpop.xlane.xlu0 %2005
    %v2008 = vsel %vm200, %v2003, 0
    %2010 = vmatprep.subr.mxu0 0.0
    %2011 = vmatpush1.msra.mxu0 %v1661
    %2012 = vmatprep.subr.mxu0 0.0
    %2013 = vmatpush1.msra.mxu0 %v1663
    %2014 = vmatprep.subr.mxu0 0.0
    %2015 = vmatpush1.msra.mxu0 0.0
    %2016 = vmatprep.subr.mxu0 0.0
    %2017 = vmatpush1.msra.mxu0 0.0
    %2018 = vmatprep.subr.mxu0 0.0
    %2019 = vmatpush1.msra.mxu0 0.0
    %2020 = vmatprep.subr.mxu0 0.0
    %2021 = vmatpush1.msra.mxu0 0.0
    %2022 = vmatprep.subr.mxu0 0.0
    %2023 = vmatpush1.msra.mxu0 0.0
    %2024 = vmatprep.subr.mxu0 0.0
    %2025 = vmatpush1.msra.mxu0 0.0
    %2026 = vmatprep.subr.mxu0 0.0
    %2027 = vmatpush1.msra.mxu0 0.0
    %2028 = vmatprep.subr.mxu0 0.0
    %2029 = vmatpush1.msra.mxu0 0.0
    %2030 = vmatprep.subr.mxu0 0.0
    %2031 = vmatpush1.msra.mxu0 0.0
    %2032 = vmatprep.subr.mxu0 0.0
    %2033 = vmatpush1.msra.mxu0 0.0
    %2034 = vmatprep.subr.mxu0 0.0
    %2035 = vmatpush1.msra.mxu0 0.0
    %2036 = vmatprep.subr.mxu0 0.0
    %2037 = vmatpush1.msra.mxu0 0.0
    %2038 = vmatprep.subr.mxu0 0.0
    %2039 = vmatpush1.msra.mxu0 0.0
    %2040 = vmatprep.subr.mxu0 0.0
    %2041 = vmatpush1.msra.mxu0 0.0
    %2042 = vmatprep.subr.mxu0 0.0
    %2043 = vmatpush1.msra.mxu0 0.0
    %2044 = vmatprep.subr.mxu0 0.0
    %2045 = vmatpush1.msra.mxu0 0.0
    %2046 = vmatprep.subr.mxu0 0.0
    %2047 = vmatpush1.msra.mxu0 0.0
    %2048 = vmatprep.subr.mxu0 0.0
    %2049 = vmatpush1.msra.mxu0 0.0
    %2050 = vmatprep.subr.mxu0 0.0
    %2051 = vmatpush1.msra.mxu0 0.0
    %2052 = vmatprep.subr.mxu0 0.0
    %2053 = vmatpush1.msra.mxu0 0.0
    %2054 = vmatprep.subr.mxu0 0.0
    %2055 = vmatpush1.msra.mxu0 0.0
    %2056 = vmatprep.subr.mxu0 0.0
    %2057 = vmatpush1.msra.mxu0 0.0
    %2058 = vmatprep.subr.mxu0 0.0
    %2059 = vmatpush1.msra.mxu0 0.0
    %2060 = vmatprep.subr.mxu0 0.0
    %2061 = vmatpush1.msra.mxu0 0.0
    %2062 = vmatprep.subr.mxu0 0.0
    %2063 = vmatpush1.msra.mxu0 0.0
    %2064 = vmatprep.subr.mxu0 0.0
    %2065 = vmatpush1.msra.mxu0 0.0
    %2066 = vmatprep.subr.mxu0 0.0
    %2067 = vmatpush1.msra.mxu0 0.0
    %2068 = vmatprep.subr.mxu0 0.0
    %2069 = vmatpush1.msra.mxu0 0.0
    %2070 = vmatprep.subr.mxu0 0.0
    %2071 = vmatpush1.msra.mxu0 0.0
    %2072 = vmatprep.subr.mxu0 0.0
    %2073 = vmatpush1.msra.mxu0 0.0
    %2074 = vmatprep.mubr.f32.mxu0 0.0
    %2075 = vmatmul.mubr.f32.gmra.mrb[0].mxu0 %v2008
    %v2076 = vpop.f32.mrb[0].mxu0
    %v2077 = vadd.f32 0.0, %v2076
    %v2078 = vpop.f32.mrb[0].mxu0
    %2079 = vdwg.mxu0
    %v2080 = vrcp.pop %v2006
    %v2081 = vmul.f32 1.0, %v2080
    %v2082 = vmul.f32 %v2077, %v2081
    %2084 = vrot.lane.b32.xlu0 %v1994, 112
    %v2085 = vpop.permute.xlu0 %2084
    %v2087 = vadd.f32 %v2082, %v2085
    %v2088 = vadd.f32 %v2087, %v106
    %2090 = vrot.lane.b32.xlu0 %v2088, 4
    %v2091 = vpop.permute.xlu0 %2090
    %vm2093 = vcmask 58400
    %2094 = vst.msk [vmem:[#allocation3] sm:$0x3] %vm2093, %v2091
    %v2095 = vsel %vm114, %v2088, 0
    %2097 = vmatprep.subr.mxu0 0.0
    %2098 = vmatpush1.msra.mxu0 %v1396
    %2099 = vmatprep.subr.mxu0 0.0
    %2100 = vmatpush1.msra.mxu0 0.0
    %2101 = vmatprep.subr.mxu0 0.0
    %2102 = vmatpush1.msra.mxu0 0.0
    %2103 = vmatprep.subr.mxu0 0.0
    %2104 = vmatpush1.msra.mxu0 0.0
    %2105 = vmatprep.subr.mxu0 0.0
    %2106 = vmatpush1.msra.mxu0 0.0
    %2107 = vmatprep.subr.mxu0 0.0
    %2108 = vmatpush1.msra.mxu0 0.0
    %2109 = vmatprep.subr.mxu0 0.0
    %2110 = vmatpush1.msra.mxu0 0.0
    %2111 = vmatprep.subr.mxu0 0.0
    %2112 = vmatpush1.msra.mxu0 0.0
    %2113 = vmatprep.subr.mxu0 0.0
    %2114 = vmatpush1.msra.mxu0 0.0
    %2115 = vmatprep.subr.mxu0 0.0
    %2116 = vmatpush1.msra.mxu0 0.0
    %2117 = vmatprep.subr.mxu0 0.0
    %2118 = vmatpush1.msra.mxu0 0.0
    %2119 = vmatprep.subr.mxu0 0.0
    %2120 = vmatpush1.msra.mxu0 0.0
    %2121 = vmatprep.subr.mxu0 0.0
    %2122 = vmatpush1.msra.mxu0 0.0
    %2123 = vmatprep.subr.mxu0 0.0
    %2124 = vmatpush1.msra.mxu0 0.0
    %2125 = vmatprep.subr.mxu0 0.0
    %2126 = vmatpush1.msra.mxu0 0.0
    %2127 = vmatprep.subr.mxu0 0.0
    %2128 = vmatpush1.msra.mxu0 0.0
    %2129 = vmatprep.subr.mxu0 0.0
    %2130 = vmatpush1.msra.mxu0 0.0
    %2131 = vmatprep.subr.mxu0 0.0
    %2132 = vmatpush1.msra.mxu0 0.0
    %2133 = vmatprep.subr.mxu0 0.0
    %2134 = vmatpush1.msra.mxu0 0.0
    %2135 = vmatprep.subr.mxu0 0.0
    %2136 = vmatpush1.msra.mxu0 0.0
    %2137 = vmatprep.subr.mxu0 0.0
    %2138 = vmatpush1.msra.mxu0 0.0
    %2139 = vmatprep.subr.mxu0 0.0
    %2140 = vmatpush1.msra.mxu0 0.0
    %2141 = vmatprep.subr.mxu0 0.0
    %2142 = vmatpush1.msra.mxu0 0.0
    %2143 = vmatprep.subr.mxu0 0.0
    %2144 = vmatpush1.msra.mxu0 0.0
    %2145 = vmatprep.subr.mxu0 0.0
    %2146 = vmatpush1.msra.mxu0 0.0
    %2147 = vmatprep.subr.mxu0 0.0
    %2148 = vmatpush1.msra.mxu0 0.0
    %2149 = vmatprep.subr.mxu0 0.0
    %2150 = vmatpush1.msra.mxu0 0.0
    %2151 = vmatprep.subr.mxu0 0.0
    %2152 = vmatpush1.msra.mxu0 0.0
    %2153 = vmatprep.subr.mxu0 0.0
    %2154 = vmatpush1.msra.mxu0 0.0
    %2155 = vmatprep.subr.mxu0 0.0
    %2156 = vmatpush1.msra.mxu0 0.0
    %2157 = vmatprep.subr.mxu0 0.0
    %2158 = vmatpush1.msra.mxu0 0.0
    %2159 = vmatprep.subr.mxu0 0.0
    %2160 = vmatpush1.msra.mxu0 0.0
    %2161 = vmatprep.mubr.f32.mxu0 0.0
    %2162 = vmatmul.mubr.f32.gmra.mrb[0].mxu0 %v2095
    %v2163 = vpop.f32.mrb[0].mxu0
    %v2164 = vadd.f32 0.0, %v2163
    %v2165 = vpop.f32.mrb[0].mxu0
    %2166 = vdwg.mxu0
    %2167 = vmatprep.subr.mxu0 0.0
    %2168 = vmatpush1.msra.mxu0 %v59
    %2169 = vmatprep.subr.mxu0 0.0
    %2170 = vmatpush1.msra.mxu0 %v60
    %2171 = vmatprep.subr.mxu0 0.0
    %2172 = vmatpush1.msra.mxu0 0.0
    %2173 = vmatprep.subr.mxu0 0.0
    %2174 = vmatpush1.msra.mxu0 0.0
    %2175 = vmatprep.subr.mxu0 0.0
    %2176 = vmatpush1.msra.mxu0 0.0
    %2177 = vmatprep.subr.mxu0 0.0
    %2178 = vmatpush1.msra.mxu0 0.0
    %2179 = vmatprep.subr.mxu0 0.0
    %2180 = vmatpush1.msra.mxu0 0.0
    %2181 = vmatprep.subr.mxu0 0.0
    %2182 = vmatpush1.msra.mxu0 0.0
    %2183 = vmatprep.subr.mxu0 0.0
    %2184 = vmatpush1.msra.mxu0 0.0
    %2185 = vmatprep.subr.mxu0 0.0
    %2186 = vmatpush1.msra.mxu0 0.0
    %2187 = vmatprep.subr.mxu0 0.0
    %2188 = vmatpush1.msra.mxu0 0.0
    %2189 = vmatprep.subr.mxu0 0.0
    %2190 = vmatpush1.msra.mxu0 0.0
    %2191 = vmatprep.subr.mxu0 0.0
    %2192 = vmatpush1.msra.mxu0 0.0
    %2193 = vmatprep.subr.mxu0 0.0
    %2194 = vmatpush1.msra.mxu0 0.0
    %2195 = vmatprep.subr.mxu0 0.0
    %2196 = vmatpush1.msra.mxu0 0.0
    %2197 = vmatprep.subr.mxu0 0.0
    %2198 = vmatpush1.msra.mxu0 0.0
    %2199 = vmatprep.subr.mxu0 0.0
    %2200 = vmatpush1.msra.mxu0 0.0
    %2201 = vmatprep.subr.mxu0 0.0
    %2202 = vmatpush1.msra.mxu0 0.0
    %2203 = vmatprep.subr.mxu0 0.0
    %2204 = vmatpush1.msra.mxu0 0.0
    %2205 = vmatprep.subr.mxu0 0.0
    %2206 = vmatpush1.msra.mxu0 0.0
    %2207 = vmatprep.subr.mxu0 0.0
    %2208 = vmatpush1.msra.mxu0 0.0
    %2209 = vmatprep.subr.mxu0 0.0
    %2210 = vmatpush1.msra.mxu0 0.0
    %2211 = vmatprep.subr.mxu0 0.0
    %2212 = vmatpush1.msra.mxu0 0.0
    %2213 = vmatprep.subr.mxu0 0.0
    %2214 = vmatpush1.msra.mxu0 0.0
    %2215 = vmatprep.subr.mxu0 0.0
    %2216 = vmatpush1.msra.mxu0 0.0
    %2217 = vmatprep.subr.mxu0 0.0
    %2218 = vmatpush1.msra.mxu0 0.0
    %2219 = vmatprep.subr.mxu0 0.0
    %2220 = vmatpush1.msra.mxu0 0.0
    %2221 = vmatprep.subr.mxu0 0.0
    %2222 = vmatpush1.msra.mxu0 0.0
    %2223 = vmatprep.subr.mxu0 0.0
    %2224 = vmatpush1.msra.mxu0 0.0
    %2225 = vmatprep.subr.mxu0 0.0
    %2226 = vmatpush1.msra.mxu0 0.0
    %2227 = vmatprep.subr.mxu0 0.0
    %2228 = vmatpush1.msra.mxu0 0.0
    %2229 = vmatprep.subr.mxu0 0.0
    %2230 = vmatpush1.msra.mxu0 0.0
    %2231 = vmatprep.mubr.f32.mxu0 0.0
    %2232 = vmatmul.mubr.f32.gmra.mrb[0].mxu0 %v1925
    %v2233 = vpop.f32.mrb[0].mxu0
    %v2234 = vadd.f32 0.0, %v2233
    %v2235 = vpop.f32.mrb[0].mxu0
    %2236 = vdwg.mxu0
    %v2237 = vadd.f32 %v2164, %v2234
    %v2238 = vadd.f32 %v2237, %v85
    %v2239 = vxor.u32 %v2238, 2147483648
    %v2240 = vmul.f32 %v2239, 1.442695
    %v2241 = vpow.pop %v2240
    %v2242 = vadd.f32 %v2241, 1.0
    %v2243 = vrcp.pop %v2242
    %v2244 = vmul.f32 1.0, %v2243
    %v2245 = vadd.f32 %v2164, %v91
    %v2246 = vadd.f32 %v2234, %v97
    %2248 = vrot.lane.b32.xlu0 %v2246, 96
    %v2249 = vpop.permute.xlu0 %2248
    %v2251 = vmul.f32 %v2244, %v2249
    %2253 = vrot.lane.b32.xlu0 %v2251, 32
    %v2254 = vpop.permute.xlu0 %2253
    %v2256 = vadd.f32 %v2245, %v2254
    %v2257 = vtanh.pop %v2256
    %v2258 = vsub.f32 1.0, %v2244
    %2260 = vrot.lane.b32.xlu0 %v2257, 112
    %v2261 = vpop.permute.xlu0 %2260
    %v2263 = vmul.f32 %v2258, %v2261
    %v2264 = vmul.f32 %v2244, %v1921
    %v2265 = vadd.f32 %v2263, %v2264
    %2267 = vrot.lane.b32.xlu0 %v2265, 112
    %v2268 = vpop.permute.xlu0 %2267
    %v2269 = vsel %vm200, %v2268, 0
    %2271 = vmatprep.subr.mxu0 0.0
    %2272 = vmatpush1.msra.mxu0 %v1390
    %2273 = vmatprep.subr.mxu0 0.0
    %2274 = vmatpush1.msra.mxu0 %v1391
    %2275 = vmatprep.subr.mxu0 0.0
    %2276 = vmatpush1.msra.mxu0 0.0
    %2277 = vmatprep.subr.mxu0 0.0
    %2278 = vmatpush1.msra.mxu0 0.0
    %2279 = vmatprep.subr.mxu0 0.0
    %2280 = vmatpush1.msra.mxu0 0.0
    %2281 = vmatprep.subr.mxu0 0.0
    %2282 = vmatpush1.msra.mxu0 0.0
    %2283 = vmatprep.subr.mxu0 0.0
    %2284 = vmatpush1.msra.mxu0 0.0
    %2285 = vmatprep.subr.mxu0 0.0
    %2286 = vmatpush1.msra.mxu0 0.0
    %2287 = vmatprep.subr.mxu0 0.0
    %2288 = vmatpush1.msra.mxu0 0.0
    %2289 = vmatprep.subr.mxu0 0.0
    %2290 = vmatpush1.msra.mxu0 0.0
    %2291 = vmatprep.subr.mxu0 0.0
    %2292 = vmatpush1.msra.mxu0 0.0
    %2293 = vmatprep.subr.mxu0 0.0
    %2294 = vmatpush1.msra.mxu0 0.0
    %2295 = vmatprep.subr.mxu0 0.0
    %2296 = vmatpush1.msra.mxu0 0.0
    %2297 = vmatprep.subr.mxu0 0.0
    %2298 = vmatpush1.msra.mxu0 0.0
    %2299 = vmatprep.subr.mxu0 0.0
    %2300 = vmatpush1.msra.mxu0 0.0
    %2301 = vmatprep.subr.mxu0 0.0
    %2302 = vmatpush1.msra.mxu0 0.0
    %2303 = vmatprep.subr.mxu0 0.0
    %2304 = vmatpush1.msra.mxu0 0.0
    %2305 = vmatprep.subr.mxu0 0.0
    %2306 = vmatpush1.msra.mxu0 0.0
    %2307 = vmatprep.subr.mxu0 0.0
    %2308 = vmatpush1.msra.mxu0 0.0
    %2309 = vmatprep.subr.mxu0 0.0
    %2310 = vmatpush1.msra.mxu0 0.0
    %2311 = vmatprep.subr.mxu0 0.0
    %2312 = vmatpush1.msra.mxu0 0.0
    %2313 = vmatprep.subr.mxu0 0.0
    %2314 = vmatpush1.msra.mxu0 0.0
    %2315 = vmatprep.subr.mxu0 0.0
    %2316 = vmatpush1.msra.mxu0 0.0
    %2317 = vmatprep.subr.mxu0 0.0
    %2318 = vmatpush1.msra.mxu0 0.0
    %2319 = vmatprep.subr.mxu0 0.0
    %2320 = vmatpush1.msra.mxu0 0.0
    %2321 = vmatprep.subr.mxu0 0.0
    %2322 = vmatpush1.msra.mxu0 0.0
    %2323 = vmatprep.subr.mxu0 0.0
    %2324 = vmatpush1.msra.mxu0 0.0
    %2325 = vmatprep.subr.mxu0 0.0
    %2326 = vmatpush1.msra.mxu0 0.0
    %2327 = vmatprep.subr.mxu0 0.0
    %2328 = vmatpush1.msra.mxu0 0.0
    %2329 = vmatprep.subr.mxu0 0.0
    %2330 = vmatpush1.msra.mxu0 0.0
    %2331 = vmatprep.subr.mxu0 0.0
    %2332 = vmatpush1.msra.mxu0 0.0
    %2333 = vmatprep.subr.mxu0 0.0
    %2334 = vmatpush1.msra.mxu0 0.0
    %2335 = vmatprep.mubr.f32.mxu0 0.0
    %2336 = vmatmul.mubr.f32.gmra.mrb[0].mxu0 %v2269
    %v2337 = vpop.f32.mrb[0].mxu0
    %v2338 = vadd.f32 0.0, %v2337
    %v2339 = vpop.f32.mrb[0].mxu0
    %2340 = vdwg.mxu0
    %v2341 = vadd.f32 %v2338, %v1381
    %v2342 = vsel %vm306, %v2341, -inf
    %2343 = vmax.xlane.f32.xlu0 %v2342
    %v2344 = vpop.xlane.xlu0 %2343
    %v2345 = vsub.f32 %v2341, %v2344
    %v2346 = vmul.f32 %v2345, 1.442695
    %v2347 = vpow.pop %v2346
    %v2348 = vsel %vm306, %v2347, 0.0
    %2349 = vadd.xlane.f32.xlu0 %v2348
    %v2350 = vpop.xlane.xlu0 %2349
    %v2352 = vsel %vm200, %v2347, 0
    %2354 = vmatprep.subr.mxu0 0.0
    %2355 = vmatpush1.msra.mxu0 %v1661
    %2356 = vmatprep.subr.mxu0 0.0
    %2357 = vmatpush1.msra.mxu0 %v1663
    %2358 = vmatprep.subr.mxu0 0.0
    %2359 = vmatpush1.msra.mxu0 0.0
    %2360 = vmatprep.subr.mxu0 0.0
    %2361 = vmatpush1.msra.mxu0 0.0
    %2362 = vmatprep.subr.mxu0 0.0
    %2363 = vmatpush1.msra.mxu0 0.0
    %2364 = vmatprep.subr.mxu0 0.0
    %2365 = vmatpush1.msra.mxu0 0.0
    %2366 = vmatprep.subr.mxu0 0.0
    %2367 = vmatpush1.msra.mxu0 0.0
    %2368 = vmatprep.subr.mxu0 0.0
    %2369 = vmatpush1.msra.mxu0 0.0
    %2370 = vmatprep.subr.mxu0 0.0
    %2371 = vmatpush1.msra.mxu0 0.0
    %2372 = vmatprep.subr.mxu0 0.0
    %2373 = vmatpush1.msra.mxu0 0.0
    %2374 = vmatprep.subr.mxu0 0.0
    %2375 = vmatpush1.msra.mxu0 0.0
    %2376 = vmatprep.subr.mxu0 0.0
    %2377 = vmatpush1.msra.mxu0 0.0
    %2378 = vmatprep.subr.mxu0 0.0
    %2379 = vmatpush1.msra.mxu0 0.0
    %2380 = vmatprep.subr.mxu0 0.0
    %2381 = vmatpush1.msra.mxu0 0.0
    %2382 = vmatprep.subr.mxu0 0.0
    %2383 = vmatpush1.msra.mxu0 0.0
    %2384 = vmatprep.subr.mxu0 0.0
    %2385 = vmatpush1.msra.mxu0 0.0
    %2386 = vmatprep.subr.mxu0 0.0
    %2387 = vmatpush1.msra.mxu0 0.0
    %2388 = vmatprep.subr.mxu0 0.0
    %2389 = vmatpush1.msra.mxu0 0.0
    %2390 = vmatprep.subr.mxu0 0.0
    %2391 = vmatpush1.msra.mxu0 0.0
    %2392 = vmatprep.subr.mxu0 0.0
    %2393 = vmatpush1.msra.mxu0 0.0
    %2394 = vmatprep.subr.mxu0 0.0
    %2395 = vmatpush1.msra.mxu0 0.0
    %2396 = vmatprep.subr.mxu0 0.0
    %2397 = vmatpush1.msra.mxu0 0.0
    %2398 = vmatprep.subr.mxu0 0.0
    %2399 = vmatpush1.msra.mxu0 0.0
    %2400 = vmatprep.subr.mxu0 0.0
    %2401 = vmatpush1.msra.mxu0 0.0
    %2402 = vmatprep.subr.mxu0 0.0
    %2403 = vmatpush1.msra.mxu0 0.0
    %2404 = vmatprep.subr.mxu0 0.0
    %2405 = vmatpush1.msra.mxu0 0.0
    %2406 = vmatprep.subr.mxu0 0.0
    %2407 = vmatpush1.msra.mxu0 0.0
    %2408 = vmatprep.subr.mxu0 0.0
    %2409 = vmatpush1.msra.mxu0 0.0
    %2410 = vmatprep.subr.mxu0 0.0
    %2411 = vmatpush1.msra.mxu0 0.0
    %2412 = vmatprep.subr.mxu0 0.0
    %2413 = vmatpush1.msra.mxu0 0.0
    %2414 = vmatprep.subr.mxu0 0.0
    %2415 = vmatpush1.msra.mxu0 0.0
    %2416 = vmatprep.subr.mxu0 0.0
    %2417 = vmatpush1.msra.mxu0 0.0
    %2418 = vmatprep.mubr.f32.mxu0 0.0
    %2419 = vmatmul.mubr.f32.gmra.mrb[0].mxu0 %v2352
    %v2420 = vpop.f32.mrb[0].mxu0
    %v2421 = vadd.f32 0.0, %v2420
    %v2422 = vpop.f32.mrb[0].mxu0
    %2423 = vdwg.mxu0
    %v2424 = vrcp.pop %v2350
    %v2425 = vmul.f32 1.0, %v2424
    %v2426 = vmul.f32 %v2421, %v2425
    %2428 = vrot.lane.b32.xlu0 %v2338, 112
    %v2429 = vpop.permute.xlu0 %2428
    %v2431 = vadd.f32 %v2426, %v2429
    %v2432 = vadd.f32 %v2431, %v106
    %2434 = vrot.lane.b32.xlu0 %v2432, 8
    %v2435 = vpop.permute.xlu0 %2434
    %vm2437 = vcmask 91200
    %2438 = vst.msk [vmem:[#allocation3] sm:$0x3] %vm2437, %v2435
    %v2439 = vsel %vm114, %v2432, 0
    %2441 = vmatprep.subr.mxu0 0.0
    %2442 = vmatpush1.msra.mxu0 %v1396
    %2443 = vmatprep.subr.mxu0 0.0
    %2444 = vmatpush1.msra.mxu0 0.0
    %2445 = vmatprep.subr.mxu0 0.0
    %2446 = vmatpush1.msra.mxu0 0.0
    %2447 = vmatprep.subr.mxu0 0.0
    %2448 = vmatpush1.msra.mxu0 0.0
    %2449 = vmatprep.subr.mxu0 0.0
    %2450 = vmatpush1.msra.mxu0 0.0
    %2451 = vmatprep.subr.mxu0 0.0
    %2452 = vmatpush1.msra.mxu0 0.0
    %2453 = vmatprep.subr.mxu0 0.0
    %2454 = vmatpush1.msra.mxu0 0.0
    %2455 = vmatprep.subr.mxu0 0.0
    %2456 = vmatpush1.msra.mxu0 0.0
    %2457 = vmatprep.subr.mxu0 0.0
    %2458 = vmatpush1.msra.mxu0 0.0
    %2459 = vmatprep.subr.mxu0 0.0
    %2460 = vmatpush1.msra.mxu0 0.0
    %2461 = vmatprep.subr.mxu0 0.0
    %2462 = vmatpush1.msra.mxu0 0.0
    %2463 = vmatprep.subr.mxu0 0.0
    %2464 = vmatpush1.msra.mxu0 0.0
    %2465 = vmatprep.subr.mxu0 0.0
    %2466 = vmatpush1.msra.mxu0 0.0
    %2467 = vmatprep.subr.mxu0 0.0
    %2468 = vmatpush1.msra.mxu0 0.0
    %2469 = vmatprep.subr.mxu0 0.0
    %2470 = vmatpush1.msra.mxu0 0.0
    %2471 = vmatprep.subr.mxu0 0.0
    %2472 = vmatpush1.msra.mxu0 0.0
    %2473 = vmatprep.subr.mxu0 0.0
    %2474 = vmatpush1.msra.mxu0 0.0
    %2475 = vmatprep.subr.mxu0 0.0
    %2476 = vmatpush1.msra.mxu0 0.0
    %2477 = vmatprep.subr.mxu0 0.0
    %2478 = vmatpush1.msra.mxu0 0.0
    %2479 = vmatprep.subr.mxu0 0.0
    %2480 = vmatpush1.msra.mxu0 0.0
    %2481 = vmatprep.subr.mxu0 0.0
    %2482 = vmatpush1.msra.mxu0 0.0
    %2483 = vmatprep.subr.mxu0 0.0
    %2484 = vmatpush1.msra.mxu0 0.0
    %2485 = vmatprep.subr.mxu0 0.0
    %2486 = vmatpush1.msra.mxu0 0.0
    %2487 = vmatprep.subr.mxu0 0.0
    %2488 = vmatpush1.msra.mxu0 0.0
    %2489 = vmatprep.subr.mxu0 0.0
    %2490 = vmatpush1.msra.mxu0 0.0
    %2491 = vmatprep.subr.mxu0 0.0
    %2492 = vmatpush1.msra.mxu0 0.0
    %2493 = vmatprep.subr.mxu0 0.0
    %2494 = vmatpush1.msra.mxu0 0.0
    %2495 = vmatprep.subr.mxu0 0.0
    %2496 = vmatpush1.msra.mxu0 0.0
    %2497 = vmatprep.subr.mxu0 0.0
    %2498 = vmatpush1.msra.mxu0 0.0
    %2499 = vmatprep.subr.mxu0 0.0
    %2500 = vmatpush1.msra.mxu0 0.0
    %2501 = vmatprep.subr.mxu0 0.0
    %2502 = vmatpush1.msra.mxu0 0.0
    %2503 = vmatprep.subr.mxu0 0.0
    %2504 = vmatpush1.msra.mxu0 0.0
    %2505 = vmatprep.mubr.f32.mxu0 0.0
    %2506 = vmatmul.mubr.f32.gmra.mrb[0].mxu0 %v2439
    %v2507 = vpop.f32.mrb[0].mxu0
    %v2508 = vadd.f32 0.0, %v2507
    %v2509 = vpop.f32.mrb[0].mxu0
    %2510 = vdwg.mxu0
    %2511 = vmatprep.subr.mxu0 0.0
    %2512 = vmatpush1.msra.mxu0 %v59
    %2513 = vmatprep.subr.mxu0 0.0
    %2514 = vmatpush1.msra.mxu0 %v60
    %2515 = vmatprep.subr.mxu0 0.0
    %2516 = vmatpush1.msra.mxu0 0.0
    %2517 = vmatprep.subr.mxu0 0.0
    %2518 = vmatpush1.msra.mxu0 0.0
    %2519 = vmatprep.subr.mxu0 0.0
    %2520 = vmatpush1.msra.mxu0 0.0
    %2521 = vmatprep.subr.mxu0 0.0
    %2522 = vmatpush1.msra.mxu0 0.0
    %2523 = vmatprep.subr.mxu0 0.0
    %2524 = vmatpush1.msra.mxu0 0.0
    %2525 = vmatprep.subr.mxu0 0.0
    %2526 = vmatpush1.msra.mxu0 0.0
    %2527 = vmatprep.subr.mxu0 0.0
    %2528 = vmatpush1.msra.mxu0 0.0
    %2529 = vmatprep.subr.mxu0 0.0
    %2530 = vmatpush1.msra.mxu0 0.0
    %2531 = vmatprep.subr.mxu0 0.0
    %2532 = vmatpush1.msra.mxu0 0.0
    %2533 = vmatprep.subr.mxu0 0.0
    %2534 = vmatpush1.msra.mxu0 0.0
    %2535 = vmatprep.subr.mxu0 0.0
    %2536 = vmatpush1.msra.mxu0 0.0
    %2537 = vmatprep.subr.mxu0 0.0
    %2538 = vmatpush1.msra.mxu0 0.0
    %2539 = vmatprep.subr.mxu0 0.0
    %2540 = vmatpush1.msra.mxu0 0.0
    %2541 = vmatprep.subr.mxu0 0.0
    %2542 = vmatpush1.msra.mxu0 0.0
    %2543 = vmatprep.subr.mxu0 0.0
    %2544 = vmatpush1.msra.mxu0 0.0
    %2545 = vmatprep.subr.mxu0 0.0
    %2546 = vmatpush1.msra.mxu0 0.0
    %2547 = vmatprep.subr.mxu0 0.0
    %2548 = vmatpush1.msra.mxu0 0.0
    %2549 = vmatprep.subr.mxu0 0.0
    %2550 = vmatpush1.msra.mxu0 0.0
    %2551 = vmatprep.subr.mxu0 0.0
    %2552 = vmatpush1.msra.mxu0 0.0
    %2553 = vmatprep.subr.mxu0 0.0
    %2554 = vmatpush1.msra.mxu0 0.0
    %2555 = vmatprep.subr.mxu0 0.0
    %2556 = vmatpush1.msra.mxu0 0.0
    %2557 = vmatprep.subr.mxu0 0.0
    %2558 = vmatpush1.msra.mxu0 0.0
    %2559 = vmatprep.subr.mxu0 0.0
    %2560 = vmatpush1.msra.mxu0 0.0
    %2561 = vmatprep.subr.mxu0 0.0
    %2562 = vmatpush1.msra.mxu0 0.0
    %2563 = vmatprep.subr.mxu0 0.0
    %2564 = vmatpush1.msra.mxu0 0.0
    %2565 = vmatprep.subr.mxu0 0.0
    %2566 = vmatpush1.msra.mxu0 0.0
    %2567 = vmatprep.subr.mxu0 0.0
    %2568 = vmatpush1.msra.mxu0 0.0
    %2569 = vmatprep.subr.mxu0 0.0
    %2570 = vmatpush1.msra.mxu0 0.0
    %2571 = vmatprep.subr.mxu0 0.0
    %2572 = vmatpush1.msra.mxu0 0.0
    %2573 = vmatprep.subr.mxu0 0.0
    %2574 = vmatpush1.msra.mxu0 0.0
    %2575 = vmatprep.mubr.f32.mxu0 0.0
    %2576 = vmatmul.mubr.f32.gmra.mrb[0].mxu0 %v2269
    %v2577 = vpop.f32.mrb[0].mxu0
    %v2578 = vadd.f32 0.0, %v2577
    %v2579 = vpop.f32.mrb[0].mxu0
    %2580 = vdwg.mxu0
    %v2581 = vadd.f32 %v2508, %v2578
    %v2582 = vadd.f32 %v2581, %v85
    %v2583 = vxor.u32 %v2582, 2147483648
    %v2584 = vmul.f32 %v2583, 1.442695
    %v2585 = vpow.pop %v2584
    %v2586 = vadd.f32 %v2585, 1.0
    %v2587 = vrcp.pop %v2586
    %v2588 = vmul.f32 1.0, %v2587
    %v2589 = vadd.f32 %v2508, %v91
    %v2590 = vadd.f32 %v2578, %v97
    %2592 = vrot.lane.b32.xlu0 %v2590, 96
    %v2593 = vpop.permute.xlu0 %2592
    %v2595 = vmul.f32 %v2588, %v2593
    %2597 = vrot.lane.b32.xlu0 %v2595, 32
    %v2598 = vpop.permute.xlu0 %2597
    %v2600 = vadd.f32 %v2589, %v2598
    %v2601 = vtanh.pop %v2600
    %v2602 = vsub.f32 1.0, %v2588
    %2604 = vrot.lane.b32.xlu0 %v2601, 112
    %v2605 = vpop.permute.xlu0 %2604
    %v2607 = vmul.f32 %v2602, %v2605
    %v2608 = vmul.f32 %v2588, %v2265
    %v2609 = vadd.f32 %v2607, %v2608
    %2611 = vrot.lane.b32.xlu0 %v2609, 112
    %v2612 = vpop.permute.xlu0 %2611
    %v2613 = vsel %vm200, %v2612, 0
    %2615 = vmatprep.subr.mxu0 0.0
    %2616 = vmatpush1.msra.mxu0 %v1390
    %2617 = vmatprep.subr.mxu0 0.0
    %2618 = vmatpush1.msra.mxu0 %v1391
    %2619 = vmatprep.subr.mxu0 0.0
    %2620 = vmatpush1.msra.mxu0 0.0
    %2621 = vmatprep.subr.mxu0 0.0
    %2622 = vmatpush1.msra.mxu0 0.0
    %2623 = vmatprep.subr.mxu0 0.0
    %2624 = vmatpush1.msra.mxu0 0.0
    %2625 = vmatprep.subr.mxu0 0.0
    %2626 = vmatpush1.msra.mxu0 0.0
    %2627 = vmatprep.subr.mxu0 0.0
    %2628 = vmatpush1.msra.mxu0 0.0
    %2629 = vmatprep.subr.mxu0 0.0
    %2630 = vmatpush1.msra.mxu0 0.0
    %2631 = vmatprep.subr.mxu0 0.0
    %2632 = vmatpush1.msra.mxu0 0.0
    %2633 = vmatprep.subr.mxu0 0.0
    %2634 = vmatpush1.msra.mxu0 0.0
    %2635 = vmatprep.subr.mxu0 0.0
    %2636 = vmatpush1.msra.mxu0 0.0
    %2637 = vmatprep.subr.mxu0 0.0
    %2638 = vmatpush1.msra.mxu0 0.0
    %2639 = vmatprep.subr.mxu0 0.0
    %2640 = vmatpush1.msra.mxu0 0.0
    %2641 = vmatprep.subr.mxu0 0.0
    %2642 = vmatpush1.msra.mxu0 0.0
    %2643 = vmatprep.subr.mxu0 0.0
    %2644 = vmatpush1.msra.mxu0 0.0
    %2645 = vmatprep.subr.mxu0 0.0
    %2646 = vmatpush1.msra.mxu0 0.0
    %2647 = vmatprep.subr.mxu0 0.0
    %2648 = vmatpush1.msra.mxu0 0.0
    %2649 = vmatprep.subr.mxu0 0.0
    %2650 = vmatpush1.msra.mxu0 0.0
    %2651 = vmatprep.subr.mxu0 0.0
    %2652 = vmatpush1.msra.mxu0 0.0
    %2653 = vmatprep.subr.mxu0 0.0
    %2654 = vmatpush1.msra.mxu0 0.0
    %2655 = vmatprep.subr.mxu0 0.0
    %2656 = vmatpush1.msra.mxu0 0.0
    %2657 = vmatprep.subr.mxu0 0.0
    %2658 = vmatpush1.msra.mxu0 0.0
    %2659 = vmatprep.subr.mxu0 0.0
    %2660 = vmatpush1.msra.mxu0 0.0
    %2661 = vmatprep.subr.mxu0 0.0
    %2662 = vmatpush1.msra.mxu0 0.0
    %2663 = vmatprep.subr.mxu0 0.0
    %2664 = vmatpush1.msra.mxu0 0.0
    %2665 = vmatprep.subr.mxu0 0.0
    %2666 = vmatpush1.msra.mxu0 0.0
    %2667 = vmatprep.subr.mxu0 0.0
    %2668 = vmatpush1.msra.mxu0 0.0
    %2669 = vmatprep.subr.mxu0 0.0
    %2670 = vmatpush1.msra.mxu0 0.0
    %2671 = vmatprep.subr.mxu0 0.0
    %2672 = vmatpush1.msra.mxu0 0.0
    %2673 = vmatprep.subr.mxu0 0.0
    %2674 = vmatpush1.msra.mxu0 0.0
    %2675 = vmatprep.subr.mxu0 0.0
    %2676 = vmatpush1.msra.mxu0 0.0
    %2677 = vmatprep.subr.mxu0 0.0
    %2678 = vmatpush1.msra.mxu0 0.0
    %2679 = vmatprep.mubr.f32.mxu0 0.0
    %2680 = vmatmul.mubr.f32.gmra.mrb[0].mxu0 %v2613
    %v2681 = vpop.f32.mrb[0].mxu0
    %v2682 = vadd.f32 0.0, %v2681
    %v2683 = vpop.f32.mrb[0].mxu0
    %2684 = vdwg.mxu0
    %v2685 = vadd.f32 %v2682, %v1381
    %v2686 = vsel %vm306, %v2685, -inf
    %2687 = vmax.xlane.f32.xlu0 %v2686
    %v2688 = vpop.xlane.xlu0 %2687
    %v2689 = vsub.f32 %v2685, %v2688
    %v2690 = vmul.f32 %v2689, 1.442695
    %v2691 = vpow.pop %v2690
    %v2692 = vsel %vm306, %v2691, 0.0
    %2693 = vadd.xlane.f32.xlu0 %v2692
    %v2694 = vpop.xlane.xlu0 %2693
    %v2696 = vsel %vm200, %v2691, 0
    %2698 = vmatprep.subr.mxu0 0.0
    %2699 = vmatpush1.msra.mxu0 %v1661
    %2700 = vmatprep.subr.mxu0 0.0
    %2701 = vmatpush1.msra.mxu0 %v1663
    %2702 = vmatprep.subr.mxu0 0.0
    %2703 = vmatpush1.msra.mxu0 0.0
    %2704 = vmatprep.subr.mxu0 0.0
    %2705 = vmatpush1.msra.mxu0 0.0
    %2706 = vmatprep.subr.mxu0 0.0
    %2707 = vmatpush1.msra.mxu0 0.0
    %2708 = vmatprep.subr.mxu0 0.0
    %2709 = vmatpush1.msra.mxu0 0.0
    %2710 = vmatprep.subr.mxu0 0.0
    %2711 = vmatpush1.msra.mxu0 0.0
    %2712 = vmatprep.subr.mxu0 0.0
    %2713 = vmatpush1.msra.mxu0 0.0
    %2714 = vmatprep.subr.mxu0 0.0
    %2715 = vmatpush1.msra.mxu0 0.0
    %2716 = vmatprep.subr.mxu0 0.0
    %2717 = vmatpush1.msra.mxu0 0.0
    %2718 = vmatprep.subr.mxu0 0.0
    %2719 = vmatpush1.msra.mxu0 0.0
    %2720 = vmatprep.subr.mxu0 0.0
    %2721 = vmatpush1.msra.mxu0 0.0
    %2722 = vmatprep.subr.mxu0 0.0
    %2723 = vmatpush1.msra.mxu0 0.0
    %2724 = vmatprep.subr.mxu0 0.0
    %2725 = vmatpush1.msra.mxu0 0.0
    %2726 = vmatprep.subr.mxu0 0.0
    %2727 = vmatpush1.msra.mxu0 0.0
    %2728 = vmatprep.subr.mxu0 0.0
    %2729 = vmatpush1.msra.mxu0 0.0
    %2730 = vmatprep.subr.mxu0 0.0
    %2731 = vmatpush1.msra.mxu0 0.0
    %2732 = vmatprep.subr.mxu0 0.0
    %2733 = vmatpush1.msra.mxu0 0.0
    %2734 = vmatprep.subr.mxu0 0.0
    %2735 = vmatpush1.msra.mxu0 0.0
    %2736 = vmatprep.subr.mxu0 0.0
    %2737 = vmatpush1.msra.mxu0 0.0
    %2738 = vmatprep.subr.mxu0 0.0
    %2739 = vmatpush1.msra.mxu0 0.0
    %2740 = vmatprep.subr.mxu0 0.0
    %2741 = vmatpush1.msra.mxu0 0.0
    %2742 = vmatprep.subr.mxu0 0.0
    %2743 = vmatpush1.msra.mxu0 0.0
    %2744 = vmatprep.subr.mxu0 0.0
    %2745 = vmatpush1.msra.mxu0 0.0
    %2746 = vmatprep.subr.mxu0 0.0
    %2747 = vmatpush1.msra.mxu0 0.0
    %2748 = vmatprep.subr.mxu0 0.0
    %2749 = vmatpush1.msra.mxu0 0.0
    %2750 = vmatprep.subr.mxu0 0.0
    %2751 = vmatpush1.msra.mxu0 0.0
    %2752 = vmatprep.subr.mxu0 0.0
    %2753 = vmatpush1.msra.mxu0 0.0
    %2754 = vmatprep.subr.mxu0 0.0
    %2755 = vmatpush1.msra.mxu0 0.0
    %2756 = vmatprep.subr.mxu0 0.0
    %2757 = vmatpush1.msra.mxu0 0.0
    %2758 = vmatprep.subr.mxu0 0.0
    %2759 = vmatpush1.msra.mxu0 0.0
    %2760 = vmatprep.subr.mxu0 0.0
    %2761 = vmatpush1.msra.mxu0 0.0
    %2762 = vmatprep.mubr.f32.mxu0 0.0
    %2763 = vmatmul.mubr.f32.gmra.mrb[0].mxu0 %v2696
    %v2764 = vpop.f32.mrb[0].mxu0
    %v2765 = vadd.f32 0.0, %v2764
    %v2766 = vpop.f32.mrb[0].mxu0
    %2767 = vdwg.mxu0
    %v2768 = vrcp.pop %v2694
    %v2769 = vmul.f32 1.0, %v2768
    %v2770 = vmul.f32 %v2765, %v2769
    %2772 = vrot.lane.b32.xlu0 %v2682, 112
    %v2773 = vpop.permute.xlu0 %2772
    %v2775 = vadd.f32 %v2770, %v2773
    %v2776 = vadd.f32 %v2775, %v106
    %2778 = vrot.lane.b32.xlu0 %v2776, 12
    %v2779 = vpop.permute.xlu0 %2778
    %vm2781 = vcmask 124000
    %2782 = vst.msk [vmem:[#allocation3] sm:$0x3] %vm2781, %v2779
    %v2783 = vsel %vm114, %v2776, 0
    %2785 = vmatprep.subr.mxu0 0.0
    %2786 = vmatpush1.msra.mxu0 %v1396
    %2787 = vmatprep.subr.mxu0 0.0
    %2788 = vmatpush1.msra.mxu0 0.0
    %2789 = vmatprep.subr.mxu0 0.0
    %2790 = vmatpush1.msra.mxu0 0.0
    %2791 = vmatprep.subr.mxu0 0.0
    %2792 = vmatpush1.msra.mxu0 0.0
    %2793 = vmatprep.subr.mxu0 0.0
    %2794 = vmatpush1.msra.mxu0 0.0
    %2795 = vmatprep.subr.mxu0 0.0
    %2796 = vmatpush1.msra.mxu0 0.0
    %2797 = vmatprep.subr.mxu0 0.0
    %2798 = vmatpush1.msra.mxu0 0.0
    %2799 = vmatprep.subr.mxu0 0.0
    %2800 = vmatpush1.msra.mxu0 0.0
    %2801 = vmatprep.subr.mxu0 0.0
    %2802 = vmatpush1.msra.mxu0 0.0
    %2803 = vmatprep.subr.mxu0 0.0
    %2804 = vmatpush1.msra.mxu0 0.0
    %2805 = vmatprep.subr.mxu0 0.0
    %2806 = vmatpush1.msra.mxu0 0.0
    %2807 = vmatprep.subr.mxu0 0.0
    %2808 = vmatpush1.msra.mxu0 0.0
    %2809 = vmatprep.subr.mxu0 0.0
    %2810 = vmatpush1.msra.mxu0 0.0
    %2811 = vmatprep.subr.mxu0 0.0
    %2812 = vmatpush1.msra.mxu0 0.0
    %2813 = vmatprep.subr.mxu0 0.0
    %2814 = vmatpush1.msra.mxu0 0.0
    %2815 = vmatprep.subr.mxu0 0.0
    %2816 = vmatpush1.msra.mxu0 0.0
    %2817 = vmatprep.subr.mxu0 0.0
    %2818 = vmatpush1.msra.mxu0 0.0
    %2819 = vmatprep.subr.mxu0 0.0
    %2820 = vmatpush1.msra.mxu0 0.0
    %2821 = vmatprep.subr.mxu0 0.0
    %2822 = vmatpush1.msra.mxu0 0.0
    %2823 = vmatprep.subr.mxu0 0.0
    %2824 = vmatpush1.msra.mxu0 0.0
    %2825 = vmatprep.subr.mxu0 0.0
    %2826 = vmatpush1.msra.mxu0 0.0
    %2827 = vmatprep.subr.mxu0 0.0
    %2828 = vmatpush1.msra.mxu0 0.0
    %2829 = vmatprep.subr.mxu0 0.0
    %2830 = vmatpush1.msra.mxu0 0.0
    %2831 = vmatprep.subr.mxu0 0.0
    %2832 = vmatpush1.msra.mxu0 0.0
    %2833 = vmatprep.subr.mxu0 0.0
    %2834 = vmatpush1.msra.mxu0 0.0
    %2835 = vmatprep.subr.mxu0 0.0
    %2836 = vmatpush1.msra.mxu0 0.0
    %2837 = vmatprep.subr.mxu0 0.0
    %2838 = vmatpush1.msra.mxu0 0.0
    %2839 = vmatprep.subr.mxu0 0.0
    %2840 = vmatpush1.msra.mxu0 0.0
    %2841 = vmatprep.subr.mxu0 0.0
    %2842 = vmatpush1.msra.mxu0 0.0
    %2843 = vmatprep.subr.mxu0 0.0
    %2844 = vmatpush1.msra.mxu0 0.0
    %2845 = vmatprep.subr.mxu0 0.0
    %2846 = vmatpush1.msra.mxu0 0.0
    %2847 = vmatprep.subr.mxu0 0.0
    %2848 = vmatpush1.msra.mxu0 0.0
    %2849 = vmatprep.mubr.f32.mxu0 0.0
    %2850 = vmatmul.mubr.f32.gmra.mrb[0].mxu0 %v2783
    %v2851 = vpop.f32.mrb[0].mxu0
    %v2852 = vadd.f32 0.0, %v2851
    %v2853 = vpop.f32.mrb[0].mxu0
    %2854 = vdwg.mxu0
    %2855 = vmatprep.subr.mxu0 0.0
    %2856 = vmatpush1.msra.mxu0 %v59
    %2857 = vmatprep.subr.mxu0 0.0
    %2858 = vmatpush1.msra.mxu0 %v60
    %2859 = vmatprep.subr.mxu0 0.0
    %2860 = vmatpush1.msra.mxu0 0.0
    %2861 = vmatprep.subr.mxu0 0.0
    %2862 = vmatpush1.msra.mxu0 0.0
    %2863 = vmatprep.subr.mxu0 0.0
    %2864 = vmatpush1.msra.mxu0 0.0
    %2865 = vmatprep.subr.mxu0 0.0
    %2866 = vmatpush1.msra.mxu0 0.0
    %2867 = vmatprep.subr.mxu0 0.0
    %2868 = vmatpush1.msra.mxu0 0.0
    %2869 = vmatprep.subr.mxu0 0.0
    %2870 = vmatpush1.msra.mxu0 0.0
    %2871 = vmatprep.subr.mxu0 0.0
    %2872 = vmatpush1.msra.mxu0 0.0
    %2873 = vmatprep.subr.mxu0 0.0
    %2874 = vmatpush1.msra.mxu0 0.0
    %2875 = vmatprep.subr.mxu0 0.0
    %2876 = vmatpush1.msra.mxu0 0.0
    %2877 = vmatprep.subr.mxu0 0.0
    %2878 = vmatpush1.msra.mxu0 0.0
    %2879 = vmatprep.subr.mxu0 0.0
    %2880 = vmatpush1.msra.mxu0 0.0
    %2881 = vmatprep.subr.mxu0 0.0
    %2882 = vmatpush1.msra.mxu0 0.0
    %2883 = vmatprep.subr.mxu0 0.0
    %2884 = vmatpush1.msra.mxu0 0.0
    %2885 = vmatprep.subr.mxu0 0.0
    %2886 = vmatpush1.msra.mxu0 0.0
    %2887 = vmatprep.subr.mxu0 0.0
    %2888 = vmatpush1.msra.mxu0 0.0
    %2889 = vmatprep.subr.mxu0 0.0
    %2890 = vmatpush1.msra.mxu0 0.0
    %2891 = vmatprep.subr.mxu0 0.0
    %2892 = vmatpush1.msra.mxu0 0.0
    %2893 = vmatprep.subr.mxu0 0.0
    %2894 = vmatpush1.msra.mxu0 0.0
    %2895 = vmatprep.subr.mxu0 0.0
    %2896 = vmatpush1.msra.mxu0 0.0
    %2897 = vmatprep.subr.mxu0 0.0
    %2898 = vmatpush1.msra.mxu0 0.0
    %2899 = vmatprep.subr.mxu0 0.0
    %2900 = vmatpush1.msra.mxu0 0.0
    %2901 = vmatprep.subr.mxu0 0.0
    %2902 = vmatpush1.msra.mxu0 0.0
    %2903 = vmatprep.subr.mxu0 0.0
    %2904 = vmatpush1.msra.mxu0 0.0
    %2905 = vmatprep.subr.mxu0 0.0
    %2906 = vmatpush1.msra.mxu0 0.0
    %2907 = vmatprep.subr.mxu0 0.0
    %2908 = vmatpush1.msra.mxu0 0.0
    %2909 = vmatprep.subr.mxu0 0.0
    %2910 = vmatpush1.msra.mxu0 0.0
    %2911 = vmatprep.subr.mxu0 0.0
    %2912 = vmatpush1.msra.mxu0 0.0
    %2913 = vmatprep.subr.mxu0 0.0
    %2914 = vmatpush1.msra.mxu0 0.0
    %2915 = vmatprep.subr.mxu0 0.0
    %2916 = vmatpush1.msra.mxu0 0.0
    %2917 = vmatprep.subr.mxu0 0.0
    %2918 = vmatpush1.msra.mxu0 0.0
    %2919 = vmatprep.mubr.f32.mxu0 0.0
    %2920 = vmatmul.mubr.f32.gmra.mrb[0].mxu0 %v2613
    %v2921 = vpop.f32.mrb[0].mxu0
    %v2922 = vadd.f32 0.0, %v2921
    %v2923 = vpop.f32.mrb[0].mxu0
    %2924 = vdwg.mxu0
    %v2925 = vadd.f32 %v2852, %v2922
    %v2926 = vadd.f32 %v2925, %v85
    %v2927 = vxor.u32 %v2926, 2147483648
    %v2928 = vmul.f32 %v2927, 1.442695
    %v2929 = vpow.pop %v2928
    %v2930 = vadd.f32 %v2929, 1.0
    %v2931 = vrcp.pop %v2930
    %v2932 = vmul.f32 1.0, %v2931
    %v2933 = vadd.f32 %v2852, %v91
    %v2934 = vadd.f32 %v2922, %v97
    %2936 = vrot.lane.b32.xlu0 %v2934, 96
    %v2937 = vpop.permute.xlu0 %2936
    %v2939 = vmul.f32 %v2932, %v2937
    %2941 = vrot.lane.b32.xlu0 %v2939, 32
    %v2942 = vpop.permute.xlu0 %2941
    %v2944 = vadd.f32 %v2933, %v2942
    %v2945 = vtanh.pop %v2944
    %v2946 = vsub.f32 1.0, %v2932
    %2948 = vrot.lane.b32.xlu0 %v2945, 112
    %v2949 = vpop.permute.xlu0 %2948
    %v2951 = vmul.f32 %v2946, %v2949
    %v2952 = vmul.f32 %v2932, %v2609
    %v2953 = vadd.f32 %v2951, %v2952
    %2955 = vrot.lane.b32.xlu0 %v2953, 112
    %v2956 = vpop.permute.xlu0 %2955
    %v2957 = vsel %vm200, %v2956, 0
    %2959 = vmatprep.subr.mxu0 0.0
    %2960 = vmatpush1.msra.mxu0 %v1390
    %2961 = vmatprep.subr.mxu0 0.0
    %2962 = vmatpush1.msra.mxu0 %v1391
    %2963 = vmatprep.subr.mxu0 0.0
    %2964 = vmatpush1.msra.mxu0 0.0
    %2965 = vmatprep.subr.mxu0 0.0
    %2966 = vmatpush1.msra.mxu0 0.0
    %2967 = vmatprep.subr.mxu0 0.0
    %2968 = vmatpush1.msra.mxu0 0.0
    %2969 = vmatprep.subr.mxu0 0.0
    %2970 = vmatpush1.msra.mxu0 0.0
    %2971 = vmatprep.subr.mxu0 0.0
    %2972 = vmatpush1.msra.mxu0 0.0
    %2973 = vmatprep.subr.mxu0 0.0
    %2974 = vmatpush1.msra.mxu0 0.0
    %2975 = vmatprep.subr.mxu0 0.0
    %2976 = vmatpush1.msra.mxu0 0.0
    %2977 = vmatprep.subr.mxu0 0.0
    %2978 = vmatpush1.msra.mxu0 0.0
    %2979 = vmatprep.subr.mxu0 0.0
    %2980 = vmatpush1.msra.mxu0 0.0
    %2981 = vmatprep.subr.mxu0 0.0
    %2982 = vmatpush1.msra.mxu0 0.0
    %2983 = vmatprep.subr.mxu0 0.0
    %2984 = vmatpush1.msra.mxu0 0.0
    %2985 = vmatprep.subr.mxu0 0.0
    %2986 = vmatpush1.msra.mxu0 0.0
    %2987 = vmatprep.subr.mxu0 0.0
    %2988 = vmatpush1.msra.mxu0 0.0
    %2989 = vmatprep.subr.mxu0 0.0
    %2990 = vmatpush1.msra.mxu0 0.0
    %2991 = vmatprep.subr.mxu0 0.0
    %2992 = vmatpush1.msra.mxu0 0.0
    %2993 = vmatprep.subr.mxu0 0.0
    %2994 = vmatpush1.msra.mxu0 0.0
    %2995 = vmatprep.subr.mxu0 0.0
    %2996 = vmatpush1.msra.mxu0 0.0
    %2997 = vmatprep.subr.mxu0 0.0
    %2998 = vmatpush1.msra.mxu0 0.0
    %2999 = vmatprep.subr.mxu0 0.0
    %3000 = vmatpush1.msra.mxu0 0.0
    %3001 = vmatprep.subr.mxu0 0.0
    %3002 = vmatpush1.msra.mxu0 0.0
    %3003 = vmatprep.subr.mxu0 0.0
    %3004 = vmatpush1.msra.mxu0 0.0
    %3005 = vmatprep.subr.mxu0 0.0
    %3006 = vmatpush1.msra.mxu0 0.0
    %3007 = vmatprep.subr.mxu0 0.0
    %3008 = vmatpush1.msra.mxu0 0.0
    %3009 = vmatprep.subr.mxu0 0.0
    %3010 = vmatpush1.msra.mxu0 0.0
    %3011 = vmatprep.subr.mxu0 0.0
    %3012 = vmatpush1.msra.mxu0 0.0
    %3013 = vmatprep.subr.mxu0 0.0
    %3014 = vmatpush1.msra.mxu0 0.0
    %3015 = vmatprep.subr.mxu0 0.0
    %3016 = vmatpush1.msra.mxu0 0.0
    %3017 = vmatprep.subr.mxu0 0.0
    %3018 = vmatpush1.msra.mxu0 0.0
    %3019 = vmatprep.subr.mxu0 0.0
    %3020 = vmatpush1.msra.mxu0 0.0
    %3021 = vmatprep.subr.mxu0 0.0
    %3022 = vmatpush1.msra.mxu0 0.0
    %3023 = vmatprep.mubr.f32.mxu0 0.0
    %3024 = vmatmul.mubr.f32.gmra.mrb[0].mxu0 %v2957
    %v3025 = vpop.f32.mrb[0].mxu0
    %v3026 = vadd.f32 0.0, %v3025
    %v3027 = vpop.f32.mrb[0].mxu0
    %3028 = vdwg.mxu0
    %v3029 = vadd.f32 %v3026, %v1381
    %v3030 = vsel %vm306, %v3029, -inf
    %3031 = vmax.xlane.f32.xlu0 %v3030
    %v3032 = vpop.xlane.xlu0 %3031
    %v3033 = vsub.f32 %v3029, %v3032
    %v3034 = vmul.f32 %v3033, 1.442695
    %v3035 = vpow.pop %v3034
    %v3036 = vsel %vm306, %v3035, 0.0
    %3037 = vadd.xlane.f32.xlu0 %v3036
    %v3038 = vpop.xlane.xlu0 %3037
    %v3040 = vsel %vm200, %v3035, 0
    %3042 = vmatprep.subr.mxu0 0.0
    %3043 = vmatpush1.msra.mxu0 %v1661
    %3044 = vmatprep.subr.mxu0 0.0
    %3045 = vmatpush1.msra.mxu0 %v1663
    %3046 = vmatprep.subr.mxu0 0.0
    %3047 = vmatpush1.msra.mxu0 0.0
    %3048 = vmatprep.subr.mxu0 0.0
    %3049 = vmatpush1.msra.mxu0 0.0
    %3050 = vmatprep.subr.mxu0 0.0
    %3051 = vmatpush1.msra.mxu0 0.0
    %3052 = vmatprep.subr.mxu0 0.0
    %3053 = vmatpush1.msra.mxu0 0.0
    %3054 = vmatprep.subr.mxu0 0.0
    %3055 = vmatpush1.msra.mxu0 0.0
    %3056 = vmatprep.subr.mxu0 0.0
    %3057 = vmatpush1.msra.mxu0 0.0
    %3058 = vmatprep.subr.mxu0 0.0
    %3059 = vmatpush1.msra.mxu0 0.0
    %3060 = vmatprep.subr.mxu0 0.0
    %3061 = vmatpush1.msra.mxu0 0.0
    %3062 = vmatprep.subr.mxu0 0.0
    %3063 = vmatpush1.msra.mxu0 0.0
    %3064 = vmatprep.subr.mxu0 0.0
    %3065 = vmatpush1.msra.mxu0 0.0
    %3066 = vmatprep.subr.mxu0 0.0
    %3067 = vmatpush1.msra.mxu0 0.0
    %3068 = vmatprep.subr.mxu0 0.0
    %3069 = vmatpush1.msra.mxu0 0.0
    %3070 = vmatprep.subr.mxu0 0.0
    %3071 = vmatpush1.msra.mxu0 0.0
    %3072 = vmatprep.subr.mxu0 0.0
    %3073 = vmatpush1.msra.mxu0 0.0
    %3074 = vmatprep.subr.mxu0 0.0
    %3075 = vmatpush1.msra.mxu0 0.0
    %3076 = vmatprep.subr.mxu0 0.0
    %3077 = vmatpush1.msra.mxu0 0.0
    %3078 = vmatprep.subr.mxu0 0.0
    %3079 = vmatpush1.msra.mxu0 0.0
    %3080 = vmatprep.subr.mxu0 0.0
    %3081 = vmatpush1.msra.mxu0 0.0
    %3082 = vmatprep.subr.mxu0 0.0
    %3083 = vmatpush1.msra.mxu0 0.0
    %3084 = vmatprep.subr.mxu0 0.0
    %3085 = vmatpush1.msra.mxu0 0.0
    %3086 = vmatprep.subr.mxu0 0.0
    %3087 = vmatpush1.msra.mxu0 0.0
    %3088 = vmatprep.subr.mxu0 0.0
    %3089 = vmatpush1.msra.mxu0 0.0
    %3090 = vmatprep.subr.mxu0 0.0
    %3091 = vmatpush1.msra.mxu0 0.0
    %3092 = vmatprep.subr.mxu0 0.0
    %3093 = vmatpush1.msra.mxu0 0.0
    %3094 = vmatprep.subr.mxu0 0.0
    %3095 = vmatpush1.msra.mxu0 0.0
    %3096 = vmatprep.subr.mxu0 0.0
    %3097 = vmatpush1.msra.mxu0 0.0
    %3098 = vmatprep.subr.mxu0 0.0
    %3099 = vmatpush1.msra.mxu0 0.0
    %3100 = vmatprep.subr.mxu0 0.0
    %3101 = vmatpush1.msra.mxu0 0.0
    %3102 = vmatprep.subr.mxu0 0.0
    %3103 = vmatpush1.msra.mxu0 0.0
    %3104 = vmatprep.subr.mxu0 0.0
    %3105 = vmatpush1.msra.mxu0 0.0
    %3106 = vmatprep.mubr.f32.mxu0 0.0
    %3107 = vmatmul.mubr.f32.gmra.mrb[0].mxu0 %v3040
    %v3108 = vpop.f32.mrb[0].mxu0
    %v3109 = vadd.f32 0.0, %v3108
    %v3110 = vpop.f32.mrb[0].mxu0
    %3111 = vdwg.mxu0
    %v3112 = vrcp.pop %v3038
    %v3113 = vmul.f32 1.0, %v3112
    %v3114 = vmul.f32 %v3109, %v3113
    %3116 = vrot.lane.b32.xlu0 %v3026, 112
    %v3117 = vpop.permute.xlu0 %3116
    %v3119 = vadd.f32 %v3114, %v3117
    %v3120 = vadd.f32 %v3119, %v106
    %3122 = vrot.lane.b32.xlu0 %v3120, 16
    %v3123 = vpop.permute.xlu0 %3122
    %vm3125 = vcmask 156800
    %3126 = vst.msk [vmem:[#allocation3] sm:$0x3] %vm3125, %v3123
    %v3127 = vsel %vm114, %v3120, 0
    %3129 = vmatprep.subr.mxu0 0.0
    %3130 = vmatpush1.msra.mxu0 %v1396
    %3131 = vmatprep.subr.mxu0 0.0
    %3132 = vmatpush1.msra.mxu0 0.0
    %3133 = vmatprep.subr.mxu0 0.0
    %3134 = vmatpush1.msra.mxu0 0.0
    %3135 = vmatprep.subr.mxu0 0.0
    %3136 = vmatpush1.msra.mxu0 0.0
    %3137 = vmatprep.subr.mxu0 0.0
    %3138 = vmatpush1.msra.mxu0 0.0
    %3139 = vmatprep.subr.mxu0 0.0
    %3140 = vmatpush1.msra.mxu0 0.0
    %3141 = vmatprep.subr.mxu0 0.0
    %3142 = vmatpush1.msra.mxu0 0.0
    %3143 = vmatprep.subr.mxu0 0.0
    %3144 = vmatpush1.msra.mxu0 0.0
    %3145 = vmatprep.subr.mxu0 0.0
    %3146 = vmatpush1.msra.mxu0 0.0
    %3147 = vmatprep.subr.mxu0 0.0
    %3148 = vmatpush1.msra.mxu0 0.0
    %3149 = vmatprep.subr.mxu0 0.0
    %3150 = vmatpush1.msra.mxu0 0.0
    %3151 = vmatprep.subr.mxu0 0.0
    %3152 = vmatpush1.msra.mxu0 0.0
    %3153 = vmatprep.subr.mxu0 0.0
    %3154 = vmatpush1.msra.mxu0 0.0
    %3155 = vmatprep.subr.mxu0 0.0
    %3156 = vmatpush1.msra.mxu0 0.0
    %3157 = vmatprep.subr.mxu0 0.0
    %3158 = vmatpush1.msra.mxu0 0.0
    %3159 = vmatprep.subr.mxu0 0.0
    %3160 = vmatpush1.msra.mxu0 0.0
    %3161 = vmatprep.subr.mxu0 0.0
    %3162 = vmatpush1.msra.mxu0 0.0
    %3163 = vmatprep.subr.mxu0 0.0
    %3164 = vmatpush1.msra.mxu0 0.0
    %3165 = vmatprep.subr.mxu0 0.0
    %3166 = vmatpush1.msra.mxu0 0.0
    %3167 = vmatprep.subr.mxu0 0.0
    %3168 = vmatpush1.msra.mxu0 0.0
    %3169 = vmatprep.subr.mxu0 0.0
    %3170 = vmatpush1.msra.mxu0 0.0
    %3171 = vmatprep.subr.mxu0 0.0
    %3172 = vmatpush1.msra.mxu0 0.0
    %3173 = vmatprep.subr.mxu0 0.0
    %3174 = vmatpush1.msra.mxu0 0.0
    %3175 = vmatprep.subr.mxu0 0.0
    %3176 = vmatpush1.msra.mxu0 0.0
    %3177 = vmatprep.subr.mxu0 0.0
    %3178 = vmatpush1.msra.mxu0 0.0
    %3179 = vmatprep.subr.mxu0 0.0
    %3180 = vmatpush1.msra.mxu0 0.0
    %3181 = vmatprep.subr.mxu0 0.0
    %3182 = vmatpush1.msra.mxu0 0.0
    %3183 = vmatprep.subr.mxu0 0.0
    %3184 = vmatpush1.msra.mxu0 0.0
    %3185 = vmatprep.subr.mxu0 0.0
    %3186 = vmatpush1.msra.mxu0 0.0
    %3187 = vmatprep.subr.mxu0 0.0
    %3188 = vmatpush1.msra.mxu0 0.0
    %3189 = vmatprep.subr.mxu0 0.0
    %3190 = vmatpush1.msra.mxu0 0.0
    %3191 = vmatprep.subr.mxu0 0.0
    %3192 = vmatpush1.msra.mxu0 0.0
    %3193 = vmatprep.mubr.f32.mxu0 0.0
    %3194 = vmatmul.mubr.f32.gmra.mrb[0].mxu0 %v3127
    %v3195 = vpop.f32.mrb[0].mxu0
    %v3196 = vadd.f32 0.0, %v3195
    %v3197 = vpop.f32.mrb[0].mxu0
    %3198 = vdwg.mxu0
    %3199 = vmatprep.subr.mxu0 0.0
    %3200 = vmatpush1.msra.mxu0 %v59
    %3201 = vmatprep.subr.mxu0 0.0
    %3202 = vmatpush1.msra.mxu0 %v60
    %3203 = vmatprep.subr.mxu0 0.0
    %3204 = vmatpush1.msra.mxu0 0.0
    %3205 = vmatprep.subr.mxu0 0.0
    %3206 = vmatpush1.msra.mxu0 0.0
    %3207 = vmatprep.subr.mxu0 0.0
    %3208 = vmatpush1.msra.mxu0 0.0
    %3209 = vmatprep.subr.mxu0 0.0
    %3210 = vmatpush1.msra.mxu0 0.0
    %3211 = vmatprep.subr.mxu0 0.0
    %3212 = vmatpush1.msra.mxu0 0.0
    %3213 = vmatprep.subr.mxu0 0.0
    %3214 = vmatpush1.msra.mxu0 0.0
    %3215 = vmatprep.subr.mxu0 0.0
    %3216 = vmatpush1.msra.mxu0 0.0
    %3217 = vmatprep.subr.mxu0 0.0
    %3218 = vmatpush1.msra.mxu0 0.0
    %3219 = vmatprep.subr.mxu0 0.0
    %3220 = vmatpush1.msra.mxu0 0.0
    %3221 = vmatprep.subr.mxu0 0.0
    %3222 = vmatpush1.msra.mxu0 0.0
    %3223 = vmatprep.subr.mxu0 0.0
    %3224 = vmatpush1.msra.mxu0 0.0
    %3225 = vmatprep.subr.mxu0 0.0
    %3226 = vmatpush1.msra.mxu0 0.0
    %3227 = vmatprep.subr.mxu0 0.0
    %3228 = vmatpush1.msra.mxu0 0.0
    %3229 = vmatprep.subr.mxu0 0.0
    %3230 = vmatpush1.msra.mxu0 0.0
    %3231 = vmatprep.subr.mxu0 0.0
    %3232 = vmatpush1.msra.mxu0 0.0
    %3233 = vmatprep.subr.mxu0 0.0
    %3234 = vmatpush1.msra.mxu0 0.0
    %3235 = vmatprep.subr.mxu0 0.0
    %3236 = vmatpush1.msra.mxu0 0.0
    %3237 = vmatprep.subr.mxu0 0.0
    %3238 = vmatpush1.msra.mxu0 0.0
    %3239 = vmatprep.subr.mxu0 0.0
    %3240 = vmatpush1.msra.mxu0 0.0
    %3241 = vmatprep.subr.mxu0 0.0
    %3242 = vmatpush1.msra.mxu0 0.0
    %3243 = vmatprep.subr.mxu0 0.0
    %3244 = vmatpush1.msra.mxu0 0.0
    %3245 = vmatprep.subr.mxu0 0.0
    %3246 = vmatpush1.msra.mxu0 0.0
    %3247 = vmatprep.subr.mxu0 0.0
    %3248 = vmatpush1.msra.mxu0 0.0
    %3249 = vmatprep.subr.mxu0 0.0
    %3250 = vmatpush1.msra.mxu0 0.0
    %3251 = vmatprep.subr.mxu0 0.0
    %3252 = vmatpush1.msra.mxu0 0.0
    %3253 = vmatprep.subr.mxu0 0.0
    %3254 = vmatpush1.msra.mxu0 0.0
    %3255 = vmatprep.subr.mxu0 0.0
    %3256 = vmatpush1.msra.mxu0 0.0
    %3257 = vmatprep.subr.mxu0 0.0
    %3258 = vmatpush1.msra.mxu0 0.0
    %3259 = vmatprep.subr.mxu0 0.0
    %3260 = vmatpush1.msra.mxu0 0.0
    %3261 = vmatprep.subr.mxu0 0.0
    %3262 = vmatpush1.msra.mxu0 0.0
    %3263 = vmatprep.mubr.f32.mxu0 0.0
    %3264 = vmatmul.mubr.f32.gmra.mrb[0].mxu0 %v2957
    %v3265 = vpop.f32.mrb[0].mxu0
    %v3266 = vadd.f32 0.0, %v3265
    %v3267 = vpop.f32.mrb[0].mxu0
    %3268 = vdwg.mxu0
    %v3269 = vadd.f32 %v3196, %v3266
    %v3270 = vadd.f32 %v3269, %v85
    %v3271 = vxor.u32 %v3270, 2147483648
    %v3272 = vmul.f32 %v3271, 1.442695
    %v3273 = vpow.pop %v3272
    %v3274 = vadd.f32 %v3273, 1.0
    %v3275 = vrcp.pop %v3274
    %v3276 = vmul.f32 1.0, %v3275
    %v3277 = vadd.f32 %v3196, %v91
    %v3278 = vadd.f32 %v3266, %v97
    %3280 = vrot.lane.b32.xlu0 %v3278, 96
    %v3281 = vpop.permute.xlu0 %3280
    %v3283 = vmul.f32 %v3276, %v3281
    %3285 = vrot.lane.b32.xlu0 %v3283, 32
    %v3286 = vpop.permute.xlu0 %3285
    %v3288 = vadd.f32 %v3277, %v3286
    %v3289 = vtanh.pop %v3288
    %v3290 = vsub.f32 1.0, %v3276
    %3292 = vrot.lane.b32.xlu0 %v3289, 112
    %v3293 = vpop.permute.xlu0 %3292
    %v3295 = vmul.f32 %v3290, %v3293
    %v3296 = vmul.f32 %v3276, %v2953
    %v3297 = vadd.f32 %v3295, %v3296
    %3299 = vrot.lane.b32.xlu0 %v3297, 112
    %v3300 = vpop.permute.xlu0 %3299
    %v3301 = vsel %vm200, %v3300, 0
    %3303 = vmatprep.subr.mxu0 0.0
    %3304 = vmatpush1.msra.mxu0 %v1390
    %3305 = vmatprep.subr.mxu0 0.0
    %3306 = vmatpush1.msra.mxu0 %v1391
    %3307 = vmatprep.subr.mxu0 0.0
    %3308 = vmatpush1.msra.mxu0 0.0
    %3309 = vmatprep.subr.mxu0 0.0
    %3310 = vmatpush1.msra.mxu0 0.0
    %3311 = vmatprep.subr.mxu0 0.0
    %3312 = vmatpush1.msra.mxu0 0.0
    %3313 = vmatprep.subr.mxu0 0.0
    %3314 = vmatpush1.msra.mxu0 0.0
    %3315 = vmatprep.subr.mxu0 0.0
    %3316 = vmatpush1.msra.mxu0 0.0
    %3317 = vmatprep.subr.mxu0 0.0
    %3318 = vmatpush1.msra.mxu0 0.0
    %3319 = vmatprep.subr.mxu0 0.0
    %3320 = vmatpush1.msra.mxu0 0.0
    %3321 = vmatprep.subr.mxu0 0.0
    %3322 = vmatpush1.msra.mxu0 0.0
    %3323 = vmatprep.subr.mxu0 0.0
    %3324 = vmatpush1.msra.mxu0 0.0
    %3325 = vmatprep.subr.mxu0 0.0
    %3326 = vmatpush1.msra.mxu0 0.0
    %3327 = vmatprep.subr.mxu0 0.0
    %3328 = vmatpush1.msra.mxu0 0.0
    %3329 = vmatprep.subr.mxu0 0.0
    %3330 = vmatpush1.msra.mxu0 0.0
    %3331 = vmatprep.subr.mxu0 0.0
    %3332 = vmatpush1.msra.mxu0 0.0
    %3333 = vmatprep.subr.mxu0 0.0
    %3334 = vmatpush1.msra.mxu0 0.0
    %3335 = vmatprep.subr.mxu0 0.0
    %3336 = vmatpush1.msra.mxu0 0.0
    %3337 = vmatprep.subr.mxu0 0.0
    %3338 = vmatpush1.msra.mxu0 0.0
    %3339 = vmatprep.subr.mxu0 0.0
    %3340 = vmatpush1.msra.mxu0 0.0
    %3341 = vmatprep.subr.mxu0 0.0
    %3342 = vmatpush1.msra.mxu0 0.0
    %3343 = vmatprep.subr.mxu0 0.0
    %3344 = vmatpush1.msra.mxu0 0.0
    %3345 = vmatprep.subr.mxu0 0.0
    %3346 = vmatpush1.msra.mxu0 0.0
    %3347 = vmatprep.subr.mxu0 0.0
    %3348 = vmatpush1.msra.mxu0 0.0
    %3349 = vmatprep.subr.mxu0 0.0
    %3350 = vmatpush1.msra.mxu0 0.0
    %3351 = vmatprep.subr.mxu0 0.0
    %3352 = vmatpush1.msra.mxu0 0.0
    %3353 = vmatprep.subr.mxu0 0.0
    %3354 = vmatpush1.msra.mxu0 0.0
    %3355 = vmatprep.subr.mxu0 0.0
    %3356 = vmatpush1.msra.mxu0 0.0
    %3357 = vmatprep.subr.mxu0 0.0
    %3358 = vmatpush1.msra.mxu0 0.0
    %3359 = vmatprep.subr.mxu0 0.0
    %3360 = vmatpush1.msra.mxu0 0.0
    %3361 = vmatprep.subr.mxu0 0.0
    %3362 = vmatpush1.msra.mxu0 0.0
    %3363 = vmatprep.subr.mxu0 0.0
    %3364 = vmatpush1.msra.mxu0 0.0
    %3365 = vmatprep.subr.mxu0 0.0
    %3366 = vmatpush1.msra.mxu0 0.0
    %3367 = vmatprep.mubr.f32.mxu0 0.0
    %3368 = vmatmul.mubr.f32.gmra.mrb[0].mxu0 %v3301
    %v3369 = vpop.f32.mrb[0].mxu0
    %v3370 = vadd.f32 0.0, %v3369
    %v3371 = vpop.f32.mrb[0].mxu0
    %3372 = vdwg.mxu0
    %v3373 = vadd.f32 %v3370, %v1381
    %v3374 = vsel %vm306, %v3373, -inf
    %3375 = vmax.xlane.f32.xlu0 %v3374
    %v3376 = vpop.xlane.xlu0 %3375
    %v3377 = vsub.f32 %v3373, %v3376
    %v3378 = vmul.f32 %v3377, 1.442695
    %v3379 = vpow.pop %v3378
    %v3380 = vsel %vm306, %v3379, 0.0
    %3381 = vadd.xlane.f32.xlu0 %v3380
    %v3382 = vpop.xlane.xlu0 %3381
    %v3384 = vsel %vm200, %v3379, 0
    %3386 = vmatprep.subr.mxu0 0.0
    %3387 = vmatpush1.msra.mxu0 %v1661
    %3388 = vmatprep.subr.mxu0 0.0
    %3389 = vmatpush1.msra.mxu0 %v1663
    %3390 = vmatprep.subr.mxu0 0.0
    %3391 = vmatpush1.msra.mxu0 0.0
    %3392 = vmatprep.subr.mxu0 0.0
    %3393 = vmatpush1.msra.mxu0 0.0
    %3394 = vmatprep.subr.mxu0 0.0
    %3395 = vmatpush1.msra.mxu0 0.0
    %3396 = vmatprep.subr.mxu0 0.0
    %3397 = vmatpush1.msra.mxu0 0.0
    %3398 = vmatprep.subr.mxu0 0.0
    %3399 = vmatpush1.msra.mxu0 0.0
    %3400 = vmatprep.subr.mxu0 0.0
    %3401 = vmatpush1.msra.mxu0 0.0
    %3402 = vmatprep.subr.mxu0 0.0
    %3403 = vmatpush1.msra.mxu0 0.0
    %3404 = vmatprep.subr.mxu0 0.0
    %3405 = vmatpush1.msra.mxu0 0.0
    %3406 = vmatprep.subr.mxu0 0.0
    %3407 = vmatpush1.msra.mxu0 0.0
    %3408 = vmatprep.subr.mxu0 0.0
    %3409 = vmatpush1.msra.mxu0 0.0
    %3410 = vmatprep.subr.mxu0 0.0
    %3411 = vmatpush1.msra.mxu0 0.0
    %3412 = vmatprep.subr.mxu0 0.0
    %3413 = vmatpush1.msra.mxu0 0.0
    %3414 = vmatprep.subr.mxu0 0.0
    %3415 = vmatpush1.msra.mxu0 0.0
    %3416 = vmatprep.subr.mxu0 0.0
    %3417 = vmatpush1.msra.mxu0 0.0
    %3418 = vmatprep.subr.mxu0 0.0
    %3419 = vmatpush1.msra.mxu0 0.0
    %3420 = vmatprep.subr.mxu0 0.0
    %3421 = vmatpush1.msra.mxu0 0.0
    %3422 = vmatprep.subr.mxu0 0.0
    %3423 = vmatpush1.msra.mxu0 0.0
    %3424 = vmatprep.subr.mxu0 0.0
    %3425 = vmatpush1.msra.mxu0 0.0
    %3426 = vmatprep.subr.mxu0 0.0
    %3427 = vmatpush1.msra.mxu0 0.0
    %3428 = vmatprep.subr.mxu0 0.0
    %3429 = vmatpush1.msra.mxu0 0.0
    %3430 = vmatprep.subr.mxu0 0.0
    %3431 = vmatpush1.msra.mxu0 0.0
    %3432 = vmatprep.subr.mxu0 0.0
    %3433 = vmatpush1.msra.mxu0 0.0
    %3434 = vmatprep.subr.mxu0 0.0
    %3435 = vmatpush1.msra.mxu0 0.0
    %3436 = vmatprep.subr.mxu0 0.0
    %3437 = vmatpush1.msra.mxu0 0.0
    %3438 = vmatprep.subr.mxu0 0.0
    %3439 = vmatpush1.msra.mxu0 0.0
    %3440 = vmatprep.subr.mxu0 0.0
    %3441 = vmatpush1.msra.mxu0 0.0
    %3442 = vmatprep.subr.mxu0 0.0
    %3443 = vmatpush1.msra.mxu0 0.0
    %3444 = vmatprep.subr.mxu0 0.0
    %3445 = vmatpush1.msra.mxu0 0.0
    %3446 = vmatprep.subr.mxu0 0.0
    %3447 = vmatpush1.msra.mxu0 0.0
    %3448 = vmatprep.subr.mxu0 0.0
    %3449 = vmatpush1.msra.mxu0 0.0
    %3450 = vmatprep.mubr.f32.mxu0 0.0
    %3451 = vmatmul.mubr.f32.gmra.mrb[0].mxu0 %v3384
    %v3452 = vpop.f32.mrb[0].mxu0
    %v3453 = vadd.f32 0.0, %v3452
    %v3454 = vpop.f32.mrb[0].mxu0
    %3455 = vdwg.mxu0
    %v3456 = vrcp.pop %v3382
    %v3457 = vmul.f32 1.0, %v3456
    %v3458 = vmul.f32 %v3453, %v3457
    %3460 = vrot.lane.b32.xlu0 %v3370, 112
    %v3461 = vpop.permute.xlu0 %3460
    %v3463 = vadd.f32 %v3458, %v3461
    %v3464 = vadd.f32 %v3463, %v106
    %3466 = vrot.lane.b32.xlu0 %v3464, 20
    %v3467 = vpop.permute.xlu0 %3466
    %vm3469 = vcmask 189600
    %3470 = vst.msk [vmem:[#allocation3] sm:$0x3] %vm3469, %v3467
    %v3471 = vsel %vm114, %v3464, 0
    %3473 = vmatprep.subr.mxu0 0.0
    %3474 = vmatpush1.msra.mxu0 %v1396
    %3475 = vmatprep.subr.mxu0 0.0
    %3476 = vmatpush1.msra.mxu0 0.0
    %3477 = vmatprep.subr.mxu0 0.0
    %3478 = vmatpush1.msra.mxu0 0.0
    %3479 = vmatprep.subr.mxu0 0.0
    %3480 = vmatpush1.msra.mxu0 0.0
    %3481 = vmatprep.subr.mxu0 0.0
    %3482 = vmatpush1.msra.mxu0 0.0
    %3483 = vmatprep.subr.mxu0 0.0
    %3484 = vmatpush1.msra.mxu0 0.0
    %3485 = vmatprep.subr.mxu0 0.0
    %3486 = vmatpush1.msra.mxu0 0.0
    %3487 = vmatprep.subr.mxu0 0.0
    %3488 = vmatpush1.msra.mxu0 0.0
    %3489 = vmatprep.subr.mxu0 0.0
    %3490 = vmatpush1.msra.mxu0 0.0
    %3491 = vmatprep.subr.mxu0 0.0
    %3492 = vmatpush1.msra.mxu0 0.0
    %3493 = vmatprep.subr.mxu0 0.0
    %3494 = vmatpush1.msra.mxu0 0.0
    %3495 = vmatprep.subr.mxu0 0.0
    %3496 = vmatpush1.msra.mxu0 0.0
    %3497 = vmatprep.subr.mxu0 0.0
    %3498 = vmatpush1.msra.mxu0 0.0
    %3499 = vmatprep.subr.mxu0 0.0
    %3500 = vmatpush1.msra.mxu0 0.0
    %3501 = vmatprep.subr.mxu0 0.0
    %3502 = vmatpush1.msra.mxu0 0.0
    %3503 = vmatprep.subr.mxu0 0.0
    %3504 = vmatpush1.msra.mxu0 0.0
    %3505 = vmatprep.subr.mxu0 0.0
    %3506 = vmatpush1.msra.mxu0 0.0
    %3507 = vmatprep.subr.mxu0 0.0
    %3508 = vmatpush1.msra.mxu0 0.0
    %3509 = vmatprep.subr.mxu0 0.0
    %3510 = vmatpush1.msra.mxu0 0.0
    %3511 = vmatprep.subr.mxu0 0.0
    %3512 = vmatpush1.msra.mxu0 0.0
    %3513 = vmatprep.subr.mxu0 0.0
    %3514 = vmatpush1.msra.mxu0 0.0
    %3515 = vmatprep.subr.mxu0 0.0
    %3516 = vmatpush1.msra.mxu0 0.0
    %3517 = vmatprep.subr.mxu0 0.0
    %3518 = vmatpush1.msra.mxu0 0.0
    %3519 = vmatprep.subr.mxu0 0.0
    %3520 = vmatpush1.msra.mxu0 0.0
    %3521 = vmatprep.subr.mxu0 0.0
    %3522 = vmatpush1.msra.mxu0 0.0
    %3523 = vmatprep.subr.mxu0 0.0
    %3524 = vmatpush1.msra.mxu0 0.0
    %3525 = vmatprep.subr.mxu0 0.0
    %3526 = vmatpush1.msra.mxu0 0.0
    %3527 = vmatprep.subr.mxu0 0.0
    %3528 = vmatpush1.msra.mxu0 0.0
    %3529 = vmatprep.subr.mxu0 0.0
    %3530 = vmatpush1.msra.mxu0 0.0
    %3531 = vmatprep.subr.mxu0 0.0
    %3532 = vmatpush1.msra.mxu0 0.0
    %3533 = vmatprep.subr.mxu0 0.0
    %3534 = vmatpush1.msra.mxu0 0.0
    %3535 = vmatprep.subr.mxu0 0.0
    %3536 = vmatpush1.msra.mxu0 0.0
    %3537 = vmatprep.mubr.f32.mxu0 0.0
    %3538 = vmatmul.mubr.f32.gmra.mrb[0].mxu0 %v3471
    %v3539 = vpop.f32.mrb[0].mxu0
    %v3540 = vadd.f32 0.0, %v3539
    %v3541 = vpop.f32.mrb[0].mxu0
    %3542 = vdwg.mxu0
    %3543 = vmatprep.subr.mxu0 0.0
    %3544 = vmatpush1.msra.mxu0 %v59
    %3545 = vmatprep.subr.mxu0 0.0
    %3546 = vmatpush1.msra.mxu0 %v60
    %3547 = vmatprep.subr.mxu0 0.0
    %3548 = vmatpush1.msra.mxu0 0.0
    %3549 = vmatprep.subr.mxu0 0.0
    %3550 = vmatpush1.msra.mxu0 0.0
    %3551 = vmatprep.subr.mxu0 0.0
    %3552 = vmatpush1.msra.mxu0 0.0
    %3553 = vmatprep.subr.mxu0 0.0
    %3554 = vmatpush1.msra.mxu0 0.0
    %3555 = vmatprep.subr.mxu0 0.0
    %3556 = vmatpush1.msra.mxu0 0.0
    %3557 = vmatprep.subr.mxu0 0.0
    %3558 = vmatpush1.msra.mxu0 0.0
    %3559 = vmatprep.subr.mxu0 0.0
    %3560 = vmatpush1.msra.mxu0 0.0
    %3561 = vmatprep.subr.mxu0 0.0
    %3562 = vmatpush1.msra.mxu0 0.0
    %3563 = vmatprep.subr.mxu0 0.0
    %3564 = vmatpush1.msra.mxu0 0.0
    %3565 = vmatprep.subr.mxu0 0.0
    %3566 = vmatpush1.msra.mxu0 0.0
    %3567 = vmatprep.subr.mxu0 0.0
    %3568 = vmatpush1.msra.mxu0 0.0
    %3569 = vmatprep.subr.mxu0 0.0
    %3570 = vmatpush1.msra.mxu0 0.0
    %3571 = vmatprep.subr.mxu0 0.0
    %3572 = vmatpush1.msra.mxu0 0.0
    %3573 = vmatprep.subr.mxu0 0.0
    %3574 = vmatpush1.msra.mxu0 0.0
    %3575 = vmatprep.subr.mxu0 0.0
    %3576 = vmatpush1.msra.mxu0 0.0
    %3577 = vmatprep.subr.mxu0 0.0
    %3578 = vmatpush1.msra.mxu0 0.0
    %3579 = vmatprep.subr.mxu0 0.0
    %3580 = vmatpush1.msra.mxu0 0.0
    %3581 = vmatprep.subr.mxu0 0.0
    %3582 = vmatpush1.msra.mxu0 0.0
    %3583 = vmatprep.subr.mxu0 0.0
    %3584 = vmatpush1.msra.mxu0 0.0
    %3585 = vmatprep.subr.mxu0 0.0
    %3586 = vmatpush1.msra.mxu0 0.0
    %3587 = vmatprep.subr.mxu0 0.0
    %3588 = vmatpush1.msra.mxu0 0.0
    %3589 = vmatprep.subr.mxu0 0.0
    %3590 = vmatpush1.msra.mxu0 0.0
    %3591 = vmatprep.subr.mxu0 0.0
    %3592 = vmatpush1.msra.mxu0 0.0
    %3593 = vmatprep.subr.mxu0 0.0
    %3594 = vmatpush1.msra.mxu0 0.0
    %3595 = vmatprep.subr.mxu0 0.0
    %3596 = vmatpush1.msra.mxu0 0.0
    %3597 = vmatprep.subr.mxu0 0.0
    %3598 = vmatpush1.msra.mxu0 0.0
    %3599 = vmatprep.subr.mxu0 0.0
    %3600 = vmatpush1.msra.mxu0 0.0
    %3601 = vmatprep.subr.mxu0 0.0
    %3602 = vmatpush1.msra.mxu0 0.0
    %3603 = vmatprep.subr.mxu0 0.0
    %3604 = vmatpush1.msra.mxu0 0.0
    %3605 = vmatprep.subr.mxu0 0.0
    %3606 = vmatpush1.msra.mxu0 0.0
    %3607 = vmatprep.mubr.f32.mxu0 0.0
    %3608 = vmatmul.mubr.f32.gmra.mrb[0].mxu0 %v3301
    %v3609 = vpop.f32.mrb[0].mxu0
    %v3610 = vadd.f32 0.0, %v3609
    %v3611 = vpop.f32.mrb[0].mxu0
    %3612 = vdwg.mxu0
    %v3613 = vadd.f32 %v3540, %v3610
    %v3614 = vadd.f32 %v3613, %v85
    %v3615 = vxor.u32 %v3614, 2147483648
    %v3616 = vmul.f32 %v3615, 1.442695
    %v3617 = vpow.pop %v3616
    %v3618 = vadd.f32 %v3617, 1.0
    %v3619 = vrcp.pop %v3618
    %v3620 = vmul.f32 1.0, %v3619
    %v3621 = vadd.f32 %v3540, %v91
    %v3622 = vadd.f32 %v3610, %v97
    %3624 = vrot.lane.b32.xlu0 %v3622, 96
    %v3625 = vpop.permute.xlu0 %3624
    %v3627 = vmul.f32 %v3620, %v3625
    %3629 = vrot.lane.b32.xlu0 %v3627, 32
    %v3630 = vpop.permute.xlu0 %3629
    %v3632 = vadd.f32 %v3621, %v3630
    %v3633 = vtanh.pop %v3632
    %v3634 = vsub.f32 1.0, %v3620
    %3636 = vrot.lane.b32.xlu0 %v3633, 112
    %v3637 = vpop.permute.xlu0 %3636
    %v3639 = vmul.f32 %v3634, %v3637
    %v3640 = vmul.f32 %v3620, %v3297
    %v3641 = vadd.f32 %v3639, %v3640
    %3643 = vrot.lane.b32.xlu0 %v3641, 112
    %v3644 = vpop.permute.xlu0 %3643
    %v3645 = vsel %vm200, %v3644, 0
    %3647 = vmatprep.subr.mxu0 0.0
    %3648 = vmatpush1.msra.mxu0 %v1390
    %3649 = vmatprep.subr.mxu0 0.0
    %3650 = vmatpush1.msra.mxu0 %v1391
    %3651 = vmatprep.subr.mxu0 0.0
    %3652 = vmatpush1.msra.mxu0 0.0
    %3653 = vmatprep.subr.mxu0 0.0
    %3654 = vmatpush1.msra.mxu0 0.0
    %3655 = vmatprep.subr.mxu0 0.0
    %3656 = vmatpush1.msra.mxu0 0.0
    %3657 = vmatprep.subr.mxu0 0.0
    %3658 = vmatpush1.msra.mxu0 0.0
    %3659 = vmatprep.subr.mxu0 0.0
    %3660 = vmatpush1.msra.mxu0 0.0
    %3661 = vmatprep.subr.mxu0 0.0
    %3662 = vmatpush1.msra.mxu0 0.0
    %3663 = vmatprep.subr.mxu0 0.0
    %3664 = vmatpush1.msra.mxu0 0.0
    %3665 = vmatprep.subr.mxu0 0.0
    %3666 = vmatpush1.msra.mxu0 0.0
    %3667 = vmatprep.subr.mxu0 0.0
    %3668 = vmatpush1.msra.mxu0 0.0
    %3669 = vmatprep.subr.mxu0 0.0
    %3670 = vmatpush1.msra.mxu0 0.0
    %3671 = vmatprep.subr.mxu0 0.0
    %3672 = vmatpush1.msra.mxu0 0.0
    %3673 = vmatprep.subr.mxu0 0.0
    %3674 = vmatpush1.msra.mxu0 0.0
    %3675 = vmatprep.subr.mxu0 0.0
    %3676 = vmatpush1.msra.mxu0 0.0
    %3677 = vmatprep.subr.mxu0 0.0
    %3678 = vmatpush1.msra.mxu0 0.0
    %3679 = vmatprep.subr.mxu0 0.0
    %3680 = vmatpush1.msra.mxu0 0.0
    %3681 = vmatprep.subr.mxu0 0.0
    %3682 = vmatpush1.msra.mxu0 0.0
    %3683 = vmatprep.subr.mxu0 0.0
    %3684 = vmatpush1.msra.mxu0 0.0
    %3685 = vmatprep.subr.mxu0 0.0
    %3686 = vmatpush1.msra.mxu0 0.0
    %3687 = vmatprep.subr.mxu0 0.0
    %3688 = vmatpush1.msra.mxu0 0.0
    %3689 = vmatprep.subr.mxu0 0.0
    %3690 = vmatpush1.msra.mxu0 0.0
    %3691 = vmatprep.subr.mxu0 0.0
    %3692 = vmatpush1.msra.mxu0 0.0
    %3693 = vmatprep.subr.mxu0 0.0
    %3694 = vmatpush1.msra.mxu0 0.0
    %3695 = vmatprep.subr.mxu0 0.0
    %3696 = vmatpush1.msra.mxu0 0.0
    %3697 = vmatprep.subr.mxu0 0.0
    %3698 = vmatpush1.msra.mxu0 0.0
    %3699 = vmatprep.subr.mxu0 0.0
    %3700 = vmatpush1.msra.mxu0 0.0
    %3701 = vmatprep.subr.mxu0 0.0
    %3702 = vmatpush1.msra.mxu0 0.0
    %3703 = vmatprep.subr.mxu0 0.0
    %3704 = vmatpush1.msra.mxu0 0.0
    %3705 = vmatprep.subr.mxu0 0.0
    %3706 = vmatpush1.msra.mxu0 0.0
    %3707 = vmatprep.subr.mxu0 0.0
    %3708 = vmatpush1.msra.mxu0 0.0
    %3709 = vmatprep.subr.mxu0 0.0
    %3710 = vmatpush1.msra.mxu0 0.0
    %3711 = vmatprep.mubr.f32.mxu0 0.0
    %3712 = vmatmul.mubr.f32.gmra.mrb[0].mxu0 %v3645
    %v3713 = vpop.f32.mrb[0].mxu0
    %v3714 = vadd.f32 0.0, %v3713
    %v3715 = vpop.f32.mrb[0].mxu0
    %3716 = vdwg.mxu0
    %v3717 = vadd.f32 %v3714, %v1381
    %v3718 = vsel %vm306, %v3717, -inf
    %3719 = vmax.xlane.f32.xlu0 %v3718
    %v3720 = vpop.xlane.xlu0 %3719
    %v3721 = vsub.f32 %v3717, %v3720
    %v3722 = vmul.f32 %v3721, 1.442695
    %v3723 = vpow.pop %v3722
    %v3724 = vsel %vm306, %v3723, 0.0
    %3725 = vadd.xlane.f32.xlu0 %v3724
    %v3726 = vpop.xlane.xlu0 %3725
    %v3728 = vsel %vm200, %v3723, 0
    %3730 = vmatprep.subr.mxu0 0.0
    %3731 = vmatpush1.msra.mxu0 %v1661
    %3732 = vmatprep.subr.mxu0 0.0
    %3733 = vmatpush1.msra.mxu0 %v1663
    %3734 = vmatprep.subr.mxu0 0.0
    %3735 = vmatpush1.msra.mxu0 0.0
    %3736 = vmatprep.subr.mxu0 0.0
    %3737 = vmatpush1.msra.mxu0 0.0
    %3738 = vmatprep.subr.mxu0 0.0
    %3739 = vmatpush1.msra.mxu0 0.0
    %3740 = vmatprep.subr.mxu0 0.0
    %3741 = vmatpush1.msra.mxu0 0.0
    %3742 = vmatprep.subr.mxu0 0.0
    %3743 = vmatpush1.msra.mxu0 0.0
    %3744 = vmatprep.subr.mxu0 0.0
    %3745 = vmatpush1.msra.mxu0 0.0
    %3746 = vmatprep.subr.mxu0 0.0
    %3747 = vmatpush1.msra.mxu0 0.0
    %3748 = vmatprep.subr.mxu0 0.0
    %3749 = vmatpush1.msra.mxu0 0.0
    %3750 = vmatprep.subr.mxu0 0.0
    %3751 = vmatpush1.msra.mxu0 0.0
    %3752 = vmatprep.subr.mxu0 0.0
    %3753 = vmatpush1.msra.mxu0 0.0
    %3754 = vmatprep.subr.mxu0 0.0
    %3755 = vmatpush1.msra.mxu0 0.0
    %3756 = vmatprep.subr.mxu0 0.0
    %3757 = vmatpush1.msra.mxu0 0.0
    %3758 = vmatprep.subr.mxu0 0.0
    %3759 = vmatpush1.msra.mxu0 0.0
    %3760 = vmatprep.subr.mxu0 0.0
    %3761 = vmatpush1.msra.mxu0 0.0
    %3762 = vmatprep.subr.mxu0 0.0
    %3763 = vmatpush1.msra.mxu0 0.0
    %3764 = vmatprep.subr.mxu0 0.0
    %3765 = vmatpush1.msra.mxu0 0.0
    %3766 = vmatprep.subr.mxu0 0.0
    %3767 = vmatpush1.msra.mxu0 0.0
    %3768 = vmatprep.subr.mxu0 0.0
    %3769 = vmatpush1.msra.mxu0 0.0
    %3770 = vmatprep.subr.mxu0 0.0
    %3771 = vmatpush1.msra.mxu0 0.0
    %3772 = vmatprep.subr.mxu0 0.0
    %3773 = vmatpush1.msra.mxu0 0.0
    %3774 = vmatprep.subr.mxu0 0.0
    %3775 = vmatpush1.msra.mxu0 0.0
    %3776 = vmatprep.subr.mxu0 0.0
    %3777 = vmatpush1.msra.mxu0 0.0
    %3778 = vmatprep.subr.mxu0 0.0
    %3779 = vmatpush1.msra.mxu0 0.0
    %3780 = vmatprep.subr.mxu0 0.0
    %3781 = vmatpush1.msra.mxu0 0.0
    %3782 = vmatprep.subr.mxu0 0.0
    %3783 = vmatpush1.msra.mxu0 0.0
    %3784 = vmatprep.subr.mxu0 0.0
    %3785 = vmatpush1.msra.mxu0 0.0
    %3786 = vmatprep.subr.mxu0 0.0
    %3787 = vmatpush1.msra.mxu0 0.0
    %3788 = vmatprep.subr.mxu0 0.0
    %3789 = vmatpush1.msra.mxu0 0.0
    %3790 = vmatprep.subr.mxu0 0.0
    %3791 = vmatpush1.msra.mxu0 0.0
    %3792 = vmatprep.subr.mxu0 0.0
    %3793 = vmatpush1.msra.mxu0 0.0
    %3794 = vmatprep.mubr.f32.mxu0 0.0
    %3795 = vmatmul.mubr.f32.gmra.mrb[0].mxu0 %v3728
    %v3796 = vpop.f32.mrb[0].mxu0
    %v3797 = vadd.f32 0.0, %v3796
    %v3798 = vpop.f32.mrb[0].mxu0
    %3799 = vdwg.mxu0
    %v3800 = vrcp.pop %v3726
    %v3801 = vmul.f32 1.0, %v3800
    %v3802 = vmul.f32 %v3797, %v3801
    %3804 = vrot.lane.b32.xlu0 %v3714, 112
    %v3805 = vpop.permute.xlu0 %3804
    %v3807 = vadd.f32 %v3802, %v3805
    %v3808 = vadd.f32 %v3807, %v106
    %3810 = vrot.lane.b32.xlu0 %v3808, 24
    %v3811 = vpop.permute.xlu0 %3810
    %vm3813 = vcmask 222400
    %3814 = vst.msk [vmem:[#allocation3] sm:$0x3] %vm3813, %v3811
    %v3815 = vsel %vm114, %v3808, 0
    %3817 = vmatprep.subr.mxu0 0.0
    %3818 = vmatpush1.msra.mxu0 %v1396
    %3819 = vmatprep.subr.mxu0 0.0
    %3820 = vmatpush1.msra.mxu0 0.0
    %3821 = vmatprep.subr.mxu0 0.0
    %3822 = vmatpush1.msra.mxu0 0.0
    %3823 = vmatprep.subr.mxu0 0.0
    %3824 = vmatpush1.msra.mxu0 0.0
    %3825 = vmatprep.subr.mxu0 0.0
    %3826 = vmatpush1.msra.mxu0 0.0
    %3827 = vmatprep.subr.mxu0 0.0
    %3828 = vmatpush1.msra.mxu0 0.0
    %3829 = vmatprep.subr.mxu0 0.0
    %3830 = vmatpush1.msra.mxu0 0.0
    %3831 = vmatprep.subr.mxu0 0.0
    %3832 = vmatpush1.msra.mxu0 0.0
    %3833 = vmatprep.subr.mxu0 0.0
    %3834 = vmatpush1.msra.mxu0 0.0
    %3835 = vmatprep.subr.mxu0 0.0
    %3836 = vmatpush1.msra.mxu0 0.0
    %3837 = vmatprep.subr.mxu0 0.0
    %3838 = vmatpush1.msra.mxu0 0.0
    %3839 = vmatprep.subr.mxu0 0.0
    %3840 = vmatpush1.msra.mxu0 0.0
    %3841 = vmatprep.subr.mxu0 0.0
    %3842 = vmatpush1.msra.mxu0 0.0
    %3843 = vmatprep.subr.mxu0 0.0
    %3844 = vmatpush1.msra.mxu0 0.0
    %3845 = vmatprep.subr.mxu0 0.0
    %3846 = vmatpush1.msra.mxu0 0.0
    %3847 = vmatprep.subr.mxu0 0.0
    %3848 = vmatpush1.msra.mxu0 0.0
    %3849 = vmatprep.subr.mxu0 0.0
    %3850 = vmatpush1.msra.mxu0 0.0
    %3851 = vmatprep.subr.mxu0 0.0
    %3852 = vmatpush1.msra.mxu0 0.0
    %3853 = vmatprep.subr.mxu0 0.0
    %3854 = vmatpush1.msra.mxu0 0.0
    %3855 = vmatprep.subr.mxu0 0.0
    %3856 = vmatpush1.msra.mxu0 0.0
    %3857 = vmatprep.subr.mxu0 0.0
    %3858 = vmatpush1.msra.mxu0 0.0
    %3859 = vmatprep.subr.mxu0 0.0
    %3860 = vmatpush1.msra.mxu0 0.0
    %3861 = vmatprep.subr.mxu0 0.0
    %3862 = vmatpush1.msra.mxu0 0.0
    %3863 = vmatprep.subr.mxu0 0.0
    %3864 = vmatpush1.msra.mxu0 0.0
    %3865 = vmatprep.subr.mxu0 0.0
    %3866 = vmatpush1.msra.mxu0 0.0
    %3867 = vmatprep.subr.mxu0 0.0
    %3868 = vmatpush1.msra.mxu0 0.0
    %3869 = vmatprep.subr.mxu0 0.0
    %3870 = vmatpush1.msra.mxu0 0.0
    %3871 = vmatprep.subr.mxu0 0.0
    %3872 = vmatpush1.msra.mxu0 0.0
    %3873 = vmatprep.subr.mxu0 0.0
    %3874 = vmatpush1.msra.mxu0 0.0
    %3875 = vmatprep.subr.mxu0 0.0
    %3876 = vmatpush1.msra.mxu0 0.0
    %3877 = vmatprep.subr.mxu0 0.0
    %3878 = vmatpush1.msra.mxu0 0.0
    %3879 = vmatprep.subr.mxu0 0.0
    %3880 = vmatpush1.msra.mxu0 0.0
    %3881 = vmatprep.mubr.f32.mxu0 0.0
    %3882 = vmatmul.mubr.f32.gmra.mrb[0].mxu0 %v3815
    %v3883 = vpop.f32.mrb[0].mxu0
    %v3884 = vadd.f32 0.0, %v3883
    %v3885 = vpop.f32.mrb[0].mxu0
    %3886 = vdwg.mxu0
    %3887 = vmatprep.subr.mxu0 0.0
    %3888 = vmatpush1.msra.mxu0 %v59
    %3889 = vmatprep.subr.mxu0 0.0
    %3890 = vmatpush1.msra.mxu0 %v60
    %3891 = vmatprep.subr.mxu0 0.0
    %3892 = vmatpush1.msra.mxu0 0.0
    %3893 = vmatprep.subr.mxu0 0.0
    %3894 = vmatpush1.msra.mxu0 0.0
    %3895 = vmatprep.subr.mxu0 0.0
    %3896 = vmatpush1.msra.mxu0 0.0
    %3897 = vmatprep.subr.mxu0 0.0
    %3898 = vmatpush1.msra.mxu0 0.0
    %3899 = vmatprep.subr.mxu0 0.0
    %3900 = vmatpush1.msra.mxu0 0.0
    %3901 = vmatprep.subr.mxu0 0.0
    %3902 = vmatpush1.msra.mxu0 0.0
    %3903 = vmatprep.subr.mxu0 0.0
    %3904 = vmatpush1.msra.mxu0 0.0
    %3905 = vmatprep.subr.mxu0 0.0
    %3906 = vmatpush1.msra.mxu0 0.0
    %3907 = vmatprep.subr.mxu0 0.0
    %3908 = vmatpush1.msra.mxu0 0.0
    %3909 = vmatprep.subr.mxu0 0.0
    %3910 = vmatpush1.msra.mxu0 0.0
    %3911 = vmatprep.subr.mxu0 0.0
    %3912 = vmatpush1.msra.mxu0 0.0
    %3913 = vmatprep.subr.mxu0 0.0
    %3914 = vmatpush1.msra.mxu0 0.0
    %3915 = vmatprep.subr.mxu0 0.0
    %3916 = vmatpush1.msra.mxu0 0.0
    %3917 = vmatprep.subr.mxu0 0.0
    %3918 = vmatpush1.msra.mxu0 0.0
    %3919 = vmatprep.subr.mxu0 0.0
    %3920 = vmatpush1.msra.mxu0 0.0
    %3921 = vmatprep.subr.mxu0 0.0
    %3922 = vmatpush1.msra.mxu0 0.0
    %3923 = vmatprep.subr.mxu0 0.0
    %3924 = vmatpush1.msra.mxu0 0.0
    %3925 = vmatprep.subr.mxu0 0.0
    %3926 = vmatpush1.msra.mxu0 0.0
    %3927 = vmatprep.subr.mxu0 0.0
    %3928 = vmatpush1.msra.mxu0 0.0
    %3929 = vmatprep.subr.mxu0 0.0
    %3930 = vmatpush1.msra.mxu0 0.0
    %3931 = vmatprep.subr.mxu0 0.0
    %3932 = vmatpush1.msra.mxu0 0.0
    %3933 = vmatprep.subr.mxu0 0.0
    %3934 = vmatpush1.msra.mxu0 0.0
    %3935 = vmatprep.subr.mxu0 0.0
    %3936 = vmatpush1.msra.mxu0 0.0
    %3937 = vmatprep.subr.mxu0 0.0
    %3938 = vmatpush1.msra.mxu0 0.0
    %3939 = vmatprep.subr.mxu0 0.0
    %3940 = vmatpush1.msra.mxu0 0.0
    %3941 = vmatprep.subr.mxu0 0.0
    %3942 = vmatpush1.msra.mxu0 0.0
    %3943 = vmatprep.subr.mxu0 0.0
    %3944 = vmatpush1.msra.mxu0 0.0
    %3945 = vmatprep.subr.mxu0 0.0
    %3946 = vmatpush1.msra.mxu0 0.0
    %3947 = vmatprep.subr.mxu0 0.0
    %3948 = vmatpush1.msra.mxu0 0.0
    %3949 = vmatprep.subr.mxu0 0.0
    %3950 = vmatpush1.msra.mxu0 0.0
    %3951 = vmatprep.mubr.f32.mxu0 0.0
    %3952 = vmatmul.mubr.f32.gmra.mrb[0].mxu0 %v3645
    %v3953 = vpop.f32.mrb[0].mxu0
    %v3954 = vadd.f32 0.0, %v3953
    %v3955 = vpop.f32.mrb[0].mxu0
    %3956 = vdwg.mxu0
    %v3957 = vadd.f32 %v3884, %v3954
    %v3958 = vadd.f32 %v3957, %v85
    %v3959 = vxor.u32 %v3958, 2147483648
    %v3960 = vmul.f32 %v3959, 1.442695
    %v3961 = vpow.pop %v3960
    %v3962 = vadd.f32 %v3961, 1.0
    %v3963 = vrcp.pop %v3962
    %v3964 = vmul.f32 1.0, %v3963
    %v3965 = vadd.f32 %v3884, %v91
    %v3966 = vadd.f32 %v3954, %v97
    %3968 = vrot.lane.b32.xlu0 %v3966, 96
    %v3969 = vpop.permute.xlu0 %3968
    %v3971 = vmul.f32 %v3964, %v3969
    %3973 = vrot.lane.b32.xlu0 %v3971, 32
    %v3974 = vpop.permute.xlu0 %3973
    %v3976 = vadd.f32 %v3965, %v3974
    %v3977 = vtanh.pop %v3976
    %v3978 = vsub.f32 1.0, %v3964
    %3980 = vrot.lane.b32.xlu0 %v3977, 112
    %v3981 = vpop.permute.xlu0 %3980
    %v3983 = vmul.f32 %v3978, %v3981
    %v3984 = vmul.f32 %v3964, %v3641
    %v3985 = vadd.f32 %v3983, %v3984
    %3987 = vrot.lane.b32.xlu0 %v3985, 112
    %v3988 = vpop.permute.xlu0 %3987
    %v3989 = vsel %vm200, %v3988, 0
    %3991 = vmatprep.subr.mxu0 0.0
    %3992 = vmatpush1.msra.mxu0 %v1390
    %3993 = vmatprep.subr.mxu0 0.0
    %3994 = vmatpush1.msra.mxu0 %v1391
    %3995 = vmatprep.subr.mxu0 0.0
    %3996 = vmatpush1.msra.mxu0 0.0
    %3997 = vmatprep.subr.mxu0 0.0
    %3998 = vmatpush1.msra.mxu0 0.0
    %3999 = vmatprep.subr.mxu0 0.0
    %4000 = vmatpush1.msra.mxu0 0.0
    %4001 = vmatprep.subr.mxu0 0.0
    %4002 = vmatpush1.msra.mxu0 0.0
    %4003 = vmatprep.subr.mxu0 0.0
    %4004 = vmatpush1.msra.mxu0 0.0
    %4005 = vmatprep.subr.mxu0 0.0
    %4006 = vmatpush1.msra.mxu0 0.0
    %4007 = vmatprep.subr.mxu0 0.0
    %4008 = vmatpush1.msra.mxu0 0.0
    %4009 = vmatprep.subr.mxu0 0.0
    %4010 = vmatpush1.msra.mxu0 0.0
    %4011 = vmatprep.subr.mxu0 0.0
    %4012 = vmatpush1.msra.mxu0 0.0
    %4013 = vmatprep.subr.mxu0 0.0
    %4014 = vmatpush1.msra.mxu0 0.0
    %4015 = vmatprep.subr.mxu0 0.0
    %4016 = vmatpush1.msra.mxu0 0.0
    %4017 = vmatprep.subr.mxu0 0.0
    %4018 = vmatpush1.msra.mxu0 0.0
    %4019 = vmatprep.subr.mxu0 0.0
    %4020 = vmatpush1.msra.mxu0 0.0
    %4021 = vmatprep.subr.mxu0 0.0
    %4022 = vmatpush1.msra.mxu0 0.0
    %4023 = vmatprep.subr.mxu0 0.0
    %4024 = vmatpush1.msra.mxu0 0.0
    %4025 = vmatprep.subr.mxu0 0.0
    %4026 = vmatpush1.msra.mxu0 0.0
    %4027 = vmatprep.subr.mxu0 0.0
    %4028 = vmatpush1.msra.mxu0 0.0
    %4029 = vmatprep.subr.mxu0 0.0
    %4030 = vmatpush1.msra.mxu0 0.0
    %4031 = vmatprep.subr.mxu0 0.0
    %4032 = vmatpush1.msra.mxu0 0.0
    %4033 = vmatprep.subr.mxu0 0.0
    %4034 = vmatpush1.msra.mxu0 0.0
    %4035 = vmatprep.subr.mxu0 0.0
    %4036 = vmatpush1.msra.mxu0 0.0
    %4037 = vmatprep.subr.mxu0 0.0
    %4038 = vmatpush1.msra.mxu0 0.0
    %4039 = vmatprep.subr.mxu0 0.0
    %4040 = vmatpush1.msra.mxu0 0.0
    %4041 = vmatprep.subr.mxu0 0.0
    %4042 = vmatpush1.msra.mxu0 0.0
    %4043 = vmatprep.subr.mxu0 0.0
    %4044 = vmatpush1.msra.mxu0 0.0
    %4045 = vmatprep.subr.mxu0 0.0
    %4046 = vmatpush1.msra.mxu0 0.0
    %4047 = vmatprep.subr.mxu0 0.0
    %4048 = vmatpush1.msra.mxu0 0.0
    %4049 = vmatprep.subr.mxu0 0.0
    %4050 = vmatpush1.msra.mxu0 0.0
    %4051 = vmatprep.subr.mxu0 0.0
    %4052 = vmatpush1.msra.mxu0 0.0
    %4053 = vmatprep.subr.mxu0 0.0
    %4054 = vmatpush1.msra.mxu0 0.0
    %4055 = vmatprep.mubr.f32.mxu0 0.0
    %4056 = vmatmul.mubr.f32.gmra.mrb[0].mxu0 %v3989
    %v4057 = vpop.f32.mrb[0].mxu0
    %v4058 = vadd.f32 0.0, %v4057
    %v4059 = vpop.f32.mrb[0].mxu0
    %4060 = vdwg.mxu0
    %v4061 = vadd.f32 %v4058, %v1381
    %v4062 = vsel %vm306, %v4061, -inf
    %4063 = vmax.xlane.f32.xlu0 %v4062
    %v4064 = vpop.xlane.xlu0 %4063
    %v4065 = vsub.f32 %v4061, %v4064
    %v4066 = vmul.f32 %v4065, 1.442695
    %v4067 = vpow.pop %v4066
    %v4068 = vsel %vm306, %v4067, 0.0
    %4069 = vadd.xlane.f32.xlu0 %v4068
    %v4070 = vpop.xlane.xlu0 %4069
    %v4072 = vsel %vm200, %v4067, 0
    %4074 = vmatprep.subr.mxu0 0.0
    %4075 = vmatpush1.msra.mxu0 %v1661
    %4076 = vmatprep.subr.mxu0 0.0
    %4077 = vmatpush1.msra.mxu0 %v1663
    %4078 = vmatprep.subr.mxu0 0.0
    %4079 = vmatpush1.msra.mxu0 0.0
    %4080 = vmatprep.subr.mxu0 0.0
    %4081 = vmatpush1.msra.mxu0 0.0
    %4082 = vmatprep.subr.mxu0 0.0
    %4083 = vmatpush1.msra.mxu0 0.0
    %4084 = vmatprep.subr.mxu0 0.0
    %4085 = vmatpush1.msra.mxu0 0.0
    %4086 = vmatprep.subr.mxu0 0.0
    %4087 = vmatpush1.msra.mxu0 0.0
    %4088 = vmatprep.subr.mxu0 0.0
    %4089 = vmatpush1.msra.mxu0 0.0
    %4090 = vmatprep.subr.mxu0 0.0
    %4091 = vmatpush1.msra.mxu0 0.0
    %4092 = vmatprep.subr.mxu0 0.0
    %4093 = vmatpush1.msra.mxu0 0.0
    %4094 = vmatprep.subr.mxu0 0.0
    %4095 = vmatpush1.msra.mxu0 0.0
    %4096 = vmatprep.subr.mxu0 0.0
    %4097 = vmatpush1.msra.mxu0 0.0
    %4098 = vmatprep.subr.mxu0 0.0
    %4099 = vmatpush1.msra.mxu0 0.0
    %4100 = vmatprep.subr.mxu0 0.0
    %4101 = vmatpush1.msra.mxu0 0.0
    %4102 = vmatprep.subr.mxu0 0.0
    %4103 = vmatpush1.msra.mxu0 0.0
    %4104 = vmatprep.subr.mxu0 0.0
    %4105 = vmatpush1.msra.mxu0 0.0
    %4106 = vmatprep.subr.mxu0 0.0
    %4107 = vmatpush1.msra.mxu0 0.0
    %4108 = vmatprep.subr.mxu0 0.0
    %4109 = vmatpush1.msra.mxu0 0.0
    %4110 = vmatprep.subr.mxu0 0.0
    %4111 = vmatpush1.msra.mxu0 0.0
    %4112 = vmatprep.subr.mxu0 0.0
    %4113 = vmatpush1.msra.mxu0 0.0
    %4114 = vmatprep.subr.mxu0 0.0
    %4115 = vmatpush1.msra.mxu0 0.0
    %4116 = vmatprep.subr.mxu0 0.0
    %4117 = vmatpush1.msra.mxu0 0.0
    %4118 = vmatprep.subr.mxu0 0.0
    %4119 = vmatpush1.msra.mxu0 0.0
    %4120 = vmatprep.subr.mxu0 0.0
    %4121 = vmatpush1.msra.mxu0 0.0
    %4122 = vmatprep.subr.mxu0 0.0
    %4123 = vmatpush1.msra.mxu0 0.0
    %4124 = vmatprep.subr.mxu0 0.0
    %4125 = vmatpush1.msra.mxu0 0.0
    %4126 = vmatprep.subr.mxu0 0.0
    %4127 = vmatpush1.msra.mxu0 0.0
    %4128 = vmatprep.subr.mxu0 0.0
    %4129 = vmatpush1.msra.mxu0 0.0
    %4130 = vmatprep.subr.mxu0 0.0
    %4131 = vmatpush1.msra.mxu0 0.0
    %4132 = vmatprep.subr.mxu0 0.0
    %4133 = vmatpush1.msra.mxu0 0.0
    %4134 = vmatprep.subr.mxu0 0.0
    %4135 = vmatpush1.msra.mxu0 0.0
    %4136 = vmatprep.subr.mxu0 0.0
    %4137 = vmatpush1.msra.mxu0 0.0
    %4138 = vmatprep.mubr.f32.mxu0 0.0
    %4139 = vmatmul.mubr.f32.gmra.mrb[0].mxu0 %v4072
    %v4140 = vpop.f32.mrb[0].mxu0
    %v4141 = vadd.f32 0.0, %v4140
    %v4142 = vpop.f32.mrb[0].mxu0
    %4143 = vdwg.mxu0
    %v4144 = vrcp.pop %v4070
    %v4145 = vmul.f32 1.0, %v4144
    %v4146 = vmul.f32 %v4141, %v4145
    %4148 = vrot.lane.b32.xlu0 %v4058, 112
    %v4149 = vpop.permute.xlu0 %4148
    %v4151 = vadd.f32 %v4146, %v4149
    %v4152 = vadd.f32 %v4151, %v106
    %4154 = vrot.lane.b32.xlu0 %v4152, 28
    %v4155 = vpop.permute.xlu0 %4154
    %vm4157 = vcmask 255200
    %4158 = vst.msk [vmem:[#allocation3] sm:$0x3] %vm4157, %v4155
    // Predicated region
    $region62: #{tpu_custom_call.1} parent=1 // pred_check
      _
    $region63: #{tpu_custom_call.1} parent=1 // pred_check_branch
      %4160 = sbr.rel (0) target = $region65
    $region64: #{tpu_custom_call.1} parent=1 // pred_region
      %s4162 = ssub.s32 32, 32
      %4163 = vsyncadd [#allocation4], %s4162
      %s4165 = sshll.u32 [#allocation3], 4
      %s4166 = int_to_ptr.vmem [resolvable:$true] %s4165
      %4168 = dma.vmem_to_hbm [thread:$0]  %s4166, 32, %s15, [#allocation4]
    $region65: #{tpu_custom_call.1} parent=1 // pred_fallthru
      _
    // Predicated region
    $region66: #{tpu_custom_call.1} parent=1 // pred_check
      _
    $region67: #{tpu_custom_call.1} parent=1 // pred_check_branch
      %4170 = sbr.rel (0) target = $region69
    $region68: #{tpu_custom_call.1} parent=1 // pred_region
      %4171 = dma.done [#allocation4], 32
    $region69: #{tpu_custom_call.1} parent=1 // pred_fallthru
      _
    %4172 = vsyncpa [#allocation4], 1

</llo_original>
